<compile_context>
chip_gen: v5e
topology: v5e:2x2
jax: 0.10.0
libtpu: 0.0.40
codegen_flags: <defaults>
</compile_context>

<pallas_src>
import functools
import math

import jax
import jax.numpy as jnp
from jax import lax
from jax.experimental import pallas as pl
from jax.experimental.pallas import tpu as pltpu

N_EMBD = 32
N_HEAD = 4
LN_EPS = 1e-5


def _layernorm(x, gamma, beta):
    # x: (M, C); gamma/beta: (1, C)
    mean = jnp.mean(x, axis=-1, keepdims=True)
    var = jnp.mean((x - mean) ** 2, axis=-1, keepdims=True)
    return (x - mean) * lax.rsqrt(var + LN_EPS) * gamma + beta


def _new_gelu(x):
    return 0.5 * x * (1.0 + jnp.tanh(math.sqrt(2.0 / math.pi)
                                     * (x + 0.044715 * x ** 3)))


def block_kernel(n_head, mm_dtype,
                 x_ref,
                 ln1_g_ref, ln1_b_ref,
                 w_qk_ref, b_qk_ref,
                 w_aproj_ref, b_aproj_ref,
                 ln2_g_ref, ln2_b_ref,
                 w_fc_ref, b_fc_ref,
                 w_mproj_ref, b_mproj_ref,
                 out_ref):
    # One grid step == one batch tile. Block shapes: x/out (B_TILE, T, C).
    bt, T, C = x_ref.shape
    H = n_head
    D = C // H
    M = bt * T
    scale = 1.0 / math.sqrt(D)

    def mm(a, b):
        return jnp.dot(a.astype(mm_dtype), b.astype(mm_dtype),
                       preferred_element_type=jnp.float32)

    def bmm(eq, a, b):
        return jnp.einsum(eq, a.astype(mm_dtype), b.astype(mm_dtype),
                          preferred_element_type=jnp.float32)

    # Fold batch tile into the matmul M dimension (leading-dim merge: cheap, no
    # lane movement since the minor dim C is unchanged).
    x = x_ref[...].reshape(M, C)

    # ---------------- attention branch: x + c_proj(attn(ln_1(x))) -----------
    xn = _layernorm(x, ln1_g_ref[...], ln1_b_ref[...])
    # Dead-V elimination: only Q and K columns of c_attn are passed in.
    qk = mm(xn, w_qk_ref[...]) + b_qk_ref[...]          # (M, 2C)
    q = qk[:, :C]
    k = qk[:, C:]
    # Reference bug reproduced: v is q; the real V projection never exists here.

    # Causal mask as a finite additive bias, built once and reused by all heads.
    row = lax.broadcasted_iota(jnp.int32, (T, T), 0)
    col = lax.broadcasted_iota(jnp.int32, (T, T), 1)
    causal_bias = jnp.where(col <= row, 0.0, -1e30).astype(jnp.float32)  # (T, T)

    w_aproj = w_aproj_ref[...]                          # (C, C), load once

    # Per-head attention, batched over the batch tile with single-batch-dim
    # einsums.  Instead of concatenating head outputs along the lane dim, each
    # head is pushed through its (D, C) slice of the output projection and the
    # projected contributions are accumulated:
    #   y @ W_proj == sum_h y_h @ W_proj[h*D:(h+1)*D, :]
    y_proj = None
    for h in range(H):                                  # H is small & static
        qh = q[:, h * D:(h + 1) * D].reshape(bt, T, D)  # (B_TILE, T, D)
        kh = k[:, h * D:(h + 1) * D].reshape(bt, T, D)
        att = bmm('bqd,bkd->bqk', qh, kh) * scale       # (B_TILE, T, T)
        att = att + causal_bias[None]
        att = att - jnp.max(att, axis=-1, keepdims=True)
        p = jnp.exp(att)
        inv_den = pl.reciprocal(jnp.sum(p, axis=-1, keepdims=True), approx=True)
        p = p * inv_den
        # v == q (reference bug): attend over qh.
        yh = bmm('bqk,bkd->bqd', p, qh).reshape(M, D)   # (M, D)
        contrib = mm(yh, w_aproj[h * D:(h + 1) * D, :]) # (M, C)
        y_proj = contrib if y_proj is None else y_proj + contrib
    y = y_proj + b_aproj_ref[...]
    # attn_dropout / resid_dropout: identity at inference.
    x1 = x + y

    # ---------------- MLP branch: x + c_proj(gelu(c_fc(ln_2(x)))) -----------
    xn2 = _layernorm(x1, ln2_g_ref[...], ln2_b_ref[...])
    hdn = _new_gelu(mm(xn2, w_fc_ref[...]) + b_fc_ref[...])   # (M, 4C)
    m = mm(hdn, w_mproj_ref[...]) + b_mproj_ref[...]
    x2 = x1 + m                                          # mlp dropout: identity

    out_ref[...] = x2.reshape(bt, T, C).astype(out_ref.dtype)


def transformer_block(x, params, *, n_head=N_HEAD, b_tile=8,
                      matmul_dtype=jnp.float32):
    (ln1_g, ln1_b, w_attn, b_attn, w_aproj, b_aproj,
     ln2_g, ln2_b, w_fc, b_fc, w_mproj, b_mproj) = params
    B, T, C = x.shape
    if B % b_tile != 0:
        b_tile = B   # fall back to a single tile for awkward batch sizes

    # Dead-V elimination (v = q bug): columns 2C:3C of c_attn are never used.
    w_qk = w_attn[:, :2 * C]
    b_qk = b_attn[:, :2 * C]
    kparams = [ln1_g, ln1_b, w_qk, b_qk, w_aproj, b_aproj,
               ln2_g, ln2_b, w_fc, b_fc, w_mproj, b_mproj]

    kernel = functools.partial(block_kernel, n_head, matmul_dtype)
    x_spec = pl.BlockSpec((b_tile, T, C), lambda b: (b, 0, 0))
    param_specs = [
        pl.BlockSpec(p.shape, (lambda b, n=p.ndim: (0,) * n)) for p in kparams
    ]
    return pl.pallas_call(
        kernel,
        out_shape=jax.ShapeDtypeStruct((B, T, C), x.dtype),
        grid_spec=pltpu.PrefetchScalarGridSpec(
            num_scalar_prefetch=0,
            grid=(B // b_tile,),
            in_specs=[x_spec] + param_specs,
            out_specs=pl.BlockSpec((b_tile, T, C), lambda b: (b, 0, 0)),
        ),
        compiler_params=pltpu.CompilerParams(
            dimension_semantics=("parallel",)),
    )(x, *kparams)


def init_params(key, n_embd=N_EMBD):
    ks = jax.random.split(key, 8)
    s = 0.02
    f32 = jnp.float32
    ln1_g = jnp.ones((1, n_embd), f32)
    ln1_b = jnp.zeros((1, n_embd), f32)
    w_attn = s * jax.random.normal(ks[0], (n_embd, 3 * n_embd), f32)
    b_attn = s * jax.random.normal(ks[1], (1, 3 * n_embd), f32)
    w_aproj = s * jax.random.normal(ks[2], (n_embd, n_embd), f32)
    b_aproj = s * jax.random.normal(ks[3], (1, n_embd), f32)
    ln2_g = jnp.ones((1, n_embd), f32)
    ln2_b = jnp.zeros((1, n_embd), f32)
    w_fc = s * jax.random.normal(ks[4], (n_embd, 4 * n_embd), f32)
    b_fc = s * jax.random.normal(ks[5], (1, 4 * n_embd), f32)
    w_mproj = s * jax.random.normal(ks[6], (4 * n_embd, n_embd), f32)
    b_mproj = s * jax.random.normal(ks[7], (1, n_embd), f32)
    return [ln1_g, ln1_b, w_attn, b_attn, w_aproj, b_aproj,
            ln2_g, ln2_b, w_fc, b_fc, w_mproj, b_mproj]


def reference_block(x, params, n_head=N_HEAD):
    """Pure-JAX reference mirroring the PyTorch semantics (incl. the v=q bug)."""
    (ln1_g, ln1_b, w_attn, b_attn, w_aproj, b_aproj,
     ln2_g, ln2_b, w_fc, b_fc, w_mproj, b_mproj) = params
    B, T, C = x.shape
    H = n_head
    D = C // H

    def ln(z, g, b):
        m = z.mean(-1, keepdims=True)
        v = ((z - m) ** 2).mean(-1, keepdims=True)
        return (z - m) / jnp.sqrt(v + LN_EPS) * g[0] + b[0]

    xn = ln(x, ln1_g, ln1_b)
    qkv = xn @ w_attn + b_attn[0]
    q, k, _ = jnp.split(qkv, 3, axis=-1)
    v = q  # reference bug
    qh = q.reshape(B, T, H, D).transpose(0, 2, 1, 3)
    kh = k.reshape(B, T, H, D).transpose(0, 2, 1, 3)
    vh = v.reshape(B, T, H, D).transpose(0, 2, 1, 3)
    att = jnp.einsum('bhtd,bhsd->bhts', qh, kh) / math.sqrt(D)
    mask = jnp.tril(jnp.ones((T, T), bool))
    att = jnp.where(mask, att, -jnp.inf)
    att = jax.nn.softmax(att, axis=-1)
    y = jnp.einsum('bhts,bhsd->bhtd', att, vh)
    y = y.transpose(0, 2, 1, 3).reshape(B, T, C)
    x1 = x + (y @ w_aproj + b_aproj[0])
    xn2 = ln(x1, ln2_g, ln2_b)
    h = xn2 @ w_fc + b_fc[0]
    h = 0.5 * h * (1.0 + jnp.tanh(math.sqrt(2.0 / math.pi)
                                  * (h + 0.044715 * h ** 3)))
    return x1 + (h @ w_mproj + b_mproj[0])


if __name__ == "__main__":
    # B=16 with b_tile=8 -> 2 "parallel" grid steps (keeps both v7x TCs busy),
    # each step running all matmuls over a (64, 32) token slab.
    B, T, C = 16, 8, N_EMBD
    key = jax.random.PRNGKey(0)
    kx, kp = jax.random.split(key)
    x = jax.random.normal(kx, (B, T, C), jnp.float32)
    params = init_params(kp)

    out = transformer_block(x, params)     # f32 matmuls; pass matmul_dtype=jnp.bfloat16
    out = jax.block_until_ready(out)       # on v6e/v7x for MXU peak (looser tolerance).

    ref = reference_block(x, params)
    assert out.shape == (B, T, C) and out.dtype == jnp.float32
    assert jnp.allclose(out, ref, atol=5e-4, rtol=5e-4), (
        float(jnp.max(jnp.abs(out - ref))))
    print("KERNEL_OK")
</pallas_src>

<mosaic_0001>
module attributes {stable_mosaic.version = 11 : i64} {
  func.func @block_kernel(%arg0: i32, %arg1: memref<8x8x32xf32, #tpu.memory_space<vmem>>, %arg2: memref<1x32xf32, #tpu.memory_space<vmem>>, %arg3: memref<1x32xf32, #tpu.memory_space<vmem>>, %arg4: memref<32x64xf32, #tpu.memory_space<vmem>>, %arg5: memref<1x64xf32, #tpu.memory_space<vmem>>, %arg6: memref<32x32xf32, #tpu.memory_space<vmem>>, %arg7: memref<1x32xf32, #tpu.memory_space<vmem>>, %arg8: memref<1x32xf32, #tpu.memory_space<vmem>>, %arg9: memref<1x32xf32, #tpu.memory_space<vmem>>, %arg10: memref<32x128xf32, #tpu.memory_space<vmem>>, %arg11: memref<1x128xf32, #tpu.memory_space<vmem>>, %arg12: memref<128x32xf32, #tpu.memory_space<vmem>>, %arg13: memref<1x32xf32, #tpu.memory_space<vmem>>, %arg14: memref<8x8x32xf32, #tpu.memory_space<vmem>>) attributes {dimension_semantics = [#tpu.dimension_semantics<parallel>], iteration_bounds = array<i64: 2>, scalar_prefetch = 0 : i64, scratch_operands = 0 : i64, tpu.core_type = #tpu.core_type<tc>, window_params = [{transform_indices = @transform_0, window_bounds = array<i64: 8, 8, 32>}, {pipeline_mode = #tpu.pipeline_mode<synchronous>, transform_indices = @transform_1, window_bounds = array<i64: 1, 32>}, {pipeline_mode = #tpu.pipeline_mode<synchronous>, transform_indices = @transform_2, window_bounds = array<i64: 1, 32>}, {pipeline_mode = #tpu.pipeline_mode<synchronous>, transform_indices = @transform_3, window_bounds = array<i64: 32, 64>}, {pipeline_mode = #tpu.pipeline_mode<synchronous>, transform_indices = @transform_4, window_bounds = array<i64: 1, 64>}, {pipeline_mode = #tpu.pipeline_mode<synchronous>, transform_indices = @transform_5, window_bounds = array<i64: 32, 32>}, {pipeline_mode = #tpu.pipeline_mode<synchronous>, transform_indices = @transform_6, window_bounds = array<i64: 1, 32>}, {pipeline_mode = #tpu.pipeline_mode<synchronous>, transform_indices = @transform_7, window_bounds = array<i64: 1, 32>}, {pipeline_mode = #tpu.pipeline_mode<synchronous>, transform_indices = @transform_8, window_bounds = array<i64: 1, 32>}, {pipeline_mode = #tpu.pipeline_mode<synchronous>, transform_indices = @transform_9, window_bounds = array<i64: 32, 128>}, {pipeline_mode = #tpu.pipeline_mode<synchronous>, transform_indices = @transform_10, window_bounds = array<i64: 1, 128>}, {pipeline_mode = #tpu.pipeline_mode<synchronous>, transform_indices = @transform_11, window_bounds = array<i64: 128, 32>}, {pipeline_mode = #tpu.pipeline_mode<synchronous>, transform_indices = @transform_12, window_bounds = array<i64: 1, 32>}, {transform_indices = @transform_13, window_bounds = array<i64: 8, 8, 32>}]} {
    %c0 = arith.constant 0 : index
    %c0_0 = arith.constant 0 : index
    %c0_1 = arith.constant 0 : index
    %0 = vector.load %arg1[%c0, %c0_0, %c0_1] : memref<8x8x32xf32, #tpu.memory_space<vmem>>, vector<8x8x32xf32>
    %1 = vector.shape_cast %0 : vector<8x8x32xf32> to vector<64x32xf32>
    %c0_2 = arith.constant 0 : index
    %c0_3 = arith.constant 0 : index
    %2 = vector.load %arg2[%c0_2, %c0_3] : memref<1x32xf32, #tpu.memory_space<vmem>>, vector<1x32xf32>
    %c0_4 = arith.constant 0 : index
    %c0_5 = arith.constant 0 : index
    %3 = vector.load %arg3[%c0_4, %c0_5] : memref<1x32xf32, #tpu.memory_space<vmem>>, vector<1x32xf32>
    %cst = arith.constant dense<0.000000e+00> : vector<64xf32>
    %4 = vector.multi_reduction <add>, %1, %cst [1] : vector<64x32xf32> to vector<64xf32>
    %5 = vector.shape_cast %4 : vector<64xf32> to vector<64x1xf32>
    %cst_6 = arith.constant 3.200000e+01 : f32
    %6 = vector.broadcast %cst_6 : f32 to vector<64x1xf32>
    %7 = arith.divf %5, %6 : vector<64x1xf32>
    %8 = vector.broadcast %7 : vector<64x1xf32> to vector<64x32xf32>
    %9 = arith.subf %1, %8 : vector<64x32xf32>
    %10 = arith.mulf %9, %9 : vector<64x32xf32>
    %cst_7 = arith.constant dense<0.000000e+00> : vector<64xf32>
    %11 = vector.multi_reduction <add>, %10, %cst_7 [1] : vector<64x32xf32> to vector<64xf32>
    %12 = vector.shape_cast %11 : vector<64xf32> to vector<64x1xf32>
    %cst_8 = arith.constant 3.200000e+01 : f32
    %13 = vector.broadcast %cst_8 : f32 to vector<64x1xf32>
    %14 = arith.divf %12, %13 : vector<64x1xf32>
    %15 = vector.broadcast %7 : vector<64x1xf32> to vector<64x32xf32>
    %16 = arith.subf %1, %15 : vector<64x32xf32>
    %cst_9 = arith.constant 9.99999974E-6 : f32
    %17 = vector.broadcast %cst_9 : f32 to vector<64x1xf32>
    %18 = arith.addf %14, %17 : vector<64x1xf32>
    %19 = math.rsqrt %18 : vector<64x1xf32>
    %20 = vector.broadcast %19 : vector<64x1xf32> to vector<64x32xf32>
    %21 = arith.mulf %16, %20 : vector<64x32xf32>
    %22 = vector.broadcast %2 : vector<1x32xf32> to vector<64x32xf32>
    %23 = arith.mulf %21, %22 : vector<64x32xf32>
    %24 = vector.broadcast %3 : vector<1x32xf32> to vector<64x32xf32>
    %25 = arith.addf %23, %24 : vector<64x32xf32>
    %c0_10 = arith.constant 0 : index
    %c0_11 = arith.constant 0 : index
    %26 = vector.load %arg4[%c0_10, %c0_11] : memref<32x64xf32, #tpu.memory_space<vmem>>, vector<32x64xf32>
    %cst_12 = arith.constant dense<0.000000e+00> : vector<64x64xf32>
    %27 = tpu.matmul %25, %26, %cst_12 {dimension_numbers = #tpu.dot_dimension_numbers<[1], [0], [0], [1], [0, 0, 1, 1], [], []>} : vector<64x32xf32>, vector<32x64xf32>, vector<64x64xf32> -> vector<64x64xf32>
    %c0_13 = arith.constant 0 : index
    %c0_14 = arith.constant 0 : index
    %28 = vector.load %arg5[%c0_13, %c0_14] : memref<1x64xf32, #tpu.memory_space<vmem>>, vector<1x64xf32>
    %29 = vector.broadcast %28 : vector<1x64xf32> to vector<64x64xf32>
    %30 = arith.addf %27, %29 : vector<64x64xf32>
    %31 = vector.extract_strided_slice %30 {offsets = [0, 0], sizes = [64, 32], strides = [1, 1]} : vector<64x64xf32> to vector<64x32xf32>
    %32 = vector.extract_strided_slice %30 {offsets = [0, 32], sizes = [64, 32], strides = [1, 1]} : vector<64x64xf32> to vector<64x32xf32>
    %33 = tpu.iota {dimensions = array<i32: 0>} : vector<8x8xi32>
    %34 = tpu.iota {dimensions = array<i32: 1>} : vector<8x8xi32>
    %35 = arith.cmpi sle, %34, %33 : vector<8x8xi32>
    %cst_15 = arith.constant 0.000000e+00 : f32
    %cst_16 = arith.constant -1.000000e+30 : f32
    %36 = vector.broadcast %cst_15 : f32 to vector<8x8xf32>
    %37 = vector.broadcast %cst_16 : f32 to vector<8x8xf32>
    %38 = arith.select %35, %36, %37 : vector<8x8xi1>, vector<8x8xf32>
    %c0_17 = arith.constant 0 : index
    %c0_18 = arith.constant 0 : index
    %39 = vector.load %arg6[%c0_17, %c0_18] : memref<32x32xf32, #tpu.memory_space<vmem>>, vector<32x32xf32>
    %40 = vector.extract_strided_slice %31 {offsets = [0, 0], sizes = [64, 8], strides = [1, 1]} : vector<64x32xf32> to vector<64x8xf32>
    %41 = vector.shape_cast %40 : vector<64x8xf32> to vector<8x8x8xf32>
    %42 = vector.extract_strided_slice %32 {offsets = [0, 0], sizes = [64, 8], strides = [1, 1]} : vector<64x32xf32> to vector<64x8xf32>
    %43 = vector.shape_cast %42 : vector<64x8xf32> to vector<8x8x8xf32>
    "tpu.trace_start"() <{level = 10 : i32, message = "bqd,bkd->bqk"}> : () -> ()
    %cst_19 = arith.constant dense<0.000000e+00> : vector<8x8x8xf32>
    %44 = tpu.matmul %41, %43, %cst_19 {dimension_numbers = #tpu.dot_dimension_numbers<[2], [2], [1], [1], [0, 0, 0, 1, 1, 1], [0], [0]>} : vector<8x8x8xf32>, vector<8x8x8xf32>, vector<8x8x8xf32> -> vector<8x8x8xf32>
    "tpu.trace_stop"() : () -> ()
    %cst_20 = arith.constant 0.353553385 : f32
    %45 = vector.broadcast %cst_20 : f32 to vector<8x8x8xf32>
    %46 = arith.mulf %44, %45 : vector<8x8x8xf32>
    %47 = vector.shape_cast %38 : vector<8x8xf32> to vector<1x8x8xf32>
    %48 = vector.broadcast %47 : vector<1x8x8xf32> to vector<8x8x8xf32>
    %49 = arith.addf %46, %48 : vector<8x8x8xf32>
    %cst_21 = arith.constant dense<0xFF800000> : vector<8x8xf32>
    %50 = vector.multi_reduction <maximumf>, %49, %cst_21 [2] : vector<8x8x8xf32> to vector<8x8xf32>
    %51 = vector.shape_cast %50 : vector<8x8xf32> to vector<8x8x1xf32>
    %52 = vector.broadcast %51 : vector<8x8x1xf32> to vector<8x8x8xf32>
    %53 = arith.subf %49, %52 : vector<8x8x8xf32>
    %54 = math.exp %53 : vector<8x8x8xf32>
    %cst_22 = arith.constant dense<0.000000e+00> : vector<8x8xf32>
    %55 = vector.multi_reduction <add>, %54, %cst_22 [2] : vector<8x8x8xf32> to vector<8x8xf32>
    %56 = vector.shape_cast %55 : vector<8x8xf32> to vector<8x8x1xf32>
    %57 = tpu.reciprocal %56 {approx = true} : vector<8x8x1xf32> -> vector<8x8x1xf32>
    %58 = vector.broadcast %57 : vector<8x8x1xf32> to vector<8x8x8xf32>
    %59 = arith.mulf %54, %58 : vector<8x8x8xf32>
    "tpu.trace_start"() <{level = 10 : i32, message = "bqk,bkd->bqd"}> : () -> ()
    %cst_23 = arith.constant dense<0.000000e+00> : vector<8x8x8xf32>
    %60 = tpu.matmul %59, %41, %cst_23 {dimension_numbers = #tpu.dot_dimension_numbers<[2], [1], [1], [2], [0, 0, 0, 1, 1, 2], [0], [0]>} : vector<8x8x8xf32>, vector<8x8x8xf32>, vector<8x8x8xf32> -> vector<8x8x8xf32>
    "tpu.trace_stop"() : () -> ()
    %61 = vector.shape_cast %60 : vector<8x8x8xf32> to vector<64x8xf32>
    %62 = vector.extract_strided_slice %39 {offsets = [0, 0], sizes = [8, 32], strides = [1, 1]} : vector<32x32xf32> to vector<8x32xf32>
    %cst_24 = arith.constant dense<0.000000e+00> : vector<64x32xf32>
    %63 = tpu.matmul %61, %62, %cst_24 {dimension_numbers = #tpu.dot_dimension_numbers<[1], [0], [0], [1], [0, 0, 1, 1], [], []>} : vector<64x8xf32>, vector<8x32xf32>, vector<64x32xf32> -> vector<64x32xf32>
    %64 = vector.extract_strided_slice %31 {offsets = [0, 8], sizes = [64, 8], strides = [1, 1]} : vector<64x32xf32> to vector<64x8xf32>
    %65 = vector.shape_cast %64 : vector<64x8xf32> to vector<8x8x8xf32>
    %66 = vector.extract_strided_slice %32 {offsets = [0, 8], sizes = [64, 8], strides = [1, 1]} : vector<64x32xf32> to vector<64x8xf32>
    %67 = vector.shape_cast %66 : vector<64x8xf32> to vector<8x8x8xf32>
    "tpu.trace_start"() <{level = 10 : i32, message = "bqd,bkd->bqk"}> : () -> ()
    %cst_25 = arith.constant dense<0.000000e+00> : vector<8x8x8xf32>
    %68 = tpu.matmul %65, %67, %cst_25 {dimension_numbers = #tpu.dot_dimension_numbers<[2], [2], [1], [1], [0, 0, 0, 1, 1, 1], [0], [0]>} : vector<8x8x8xf32>, vector<8x8x8xf32>, vector<8x8x8xf32> -> vector<8x8x8xf32>
    "tpu.trace_stop"() : () -> ()
    %cst_26 = arith.constant 0.353553385 : f32
    %69 = vector.broadcast %cst_26 : f32 to vector<8x8x8xf32>
    %70 = arith.mulf %68, %69 : vector<8x8x8xf32>
    %71 = vector.shape_cast %38 : vector<8x8xf32> to vector<1x8x8xf32>
    %72 = vector.broadcast %71 : vector<1x8x8xf32> to vector<8x8x8xf32>
    %73 = arith.addf %70, %72 : vector<8x8x8xf32>
    %cst_27 = arith.constant dense<0xFF800000> : vector<8x8xf32>
    %74 = vector.multi_reduction <maximumf>, %73, %cst_27 [2] : vector<8x8x8xf32> to vector<8x8xf32>
    %75 = vector.shape_cast %74 : vector<8x8xf32> to vector<8x8x1xf32>
    %76 = vector.broadcast %75 : vector<8x8x1xf32> to vector<8x8x8xf32>
    %77 = arith.subf %73, %76 : vector<8x8x8xf32>
    %78 = math.exp %77 : vector<8x8x8xf32>
    %cst_28 = arith.constant dense<0.000000e+00> : vector<8x8xf32>
    %79 = vector.multi_reduction <add>, %78, %cst_28 [2] : vector<8x8x8xf32> to vector<8x8xf32>
    %80 = vector.shape_cast %79 : vector<8x8xf32> to vector<8x8x1xf32>
    %81 = tpu.reciprocal %80 {approx = true} : vector<8x8x1xf32> -> vector<8x8x1xf32>
    %82 = vector.broadcast %81 : vector<8x8x1xf32> to vector<8x8x8xf32>
    %83 = arith.mulf %78, %82 : vector<8x8x8xf32>
    "tpu.trace_start"() <{level = 10 : i32, message = "bqk,bkd->bqd"}> : () -> ()
    %cst_29 = arith.constant dense<0.000000e+00> : vector<8x8x8xf32>
    %84 = tpu.matmul %83, %65, %cst_29 {dimension_numbers = #tpu.dot_dimension_numbers<[2], [1], [1], [2], [0, 0, 0, 1, 1, 2], [0], [0]>} : vector<8x8x8xf32>, vector<8x8x8xf32>, vector<8x8x8xf32> -> vector<8x8x8xf32>
    "tpu.trace_stop"() : () -> ()
    %85 = vector.shape_cast %84 : vector<8x8x8xf32> to vector<64x8xf32>
    %86 = vector.extract_strided_slice %39 {offsets = [8, 0], sizes = [8, 32], strides = [1, 1]} : vector<32x32xf32> to vector<8x32xf32>
    %cst_30 = arith.constant dense<0.000000e+00> : vector<64x32xf32>
    %87 = tpu.matmul %85, %86, %cst_30 {dimension_numbers = #tpu.dot_dimension_numbers<[1], [0], [0], [1], [0, 0, 1, 1], [], []>} : vector<64x8xf32>, vector<8x32xf32>, vector<64x32xf32> -> vector<64x32xf32>
    %88 = arith.addf %63, %87 : vector<64x32xf32>
    %89 = vector.extract_strided_slice %31 {offsets = [0, 16], sizes = [64, 8], strides = [1, 1]} : vector<64x32xf32> to vector<64x8xf32>
    %90 = vector.shape_cast %89 : vector<64x8xf32> to vector<8x8x8xf32>
    %91 = vector.extract_strided_slice %32 {offsets = [0, 16], sizes = [64, 8], strides = [1, 1]} : vector<64x32xf32> to vector<64x8xf32>
    %92 = vector.shape_cast %91 : vector<64x8xf32> to vector<8x8x8xf32>
    "tpu.trace_start"() <{level = 10 : i32, message = "bqd,bkd->bqk"}> : () -> ()
    %cst_31 = arith.constant dense<0.000000e+00> : vector<8x8x8xf32>
    %93 = tpu.matmul %90, %92, %cst_31 {dimension_numbers = #tpu.dot_dimension_numbers<[2], [2], [1], [1], [0, 0, 0, 1, 1, 1], [0], [0]>} : vector<8x8x8xf32>, vector<8x8x8xf32>, vector<8x8x8xf32> -> vector<8x8x8xf32>
    "tpu.trace_stop"() : () -> ()
    %cst_32 = arith.constant 0.353553385 : f32
    %94 = vector.broadcast %cst_32 : f32 to vector<8x8x8xf32>
    %95 = arith.mulf %93, %94 : vector<8x8x8xf32>
    %96 = vector.shape_cast %38 : vector<8x8xf32> to vector<1x8x8xf32>
    %97 = vector.broadcast %96 : vector<1x8x8xf32> to vector<8x8x8xf32>
    %98 = arith.addf %95, %97 : vector<8x8x8xf32>
    %cst_33 = arith.constant dense<0xFF800000> : vector<8x8xf32>
    %99 = vector.multi_reduction <maximumf>, %98, %cst_33 [2] : vector<8x8x8xf32> to vector<8x8xf32>
    %100 = vector.shape_cast %99 : vector<8x8xf32> to vector<8x8x1xf32>
    %101 = vector.broadcast %100 : vector<8x8x1xf32> to vector<8x8x8xf32>
    %102 = arith.subf %98, %101 : vector<8x8x8xf32>
    %103 = math.exp %102 : vector<8x8x8xf32>
    %cst_34 = arith.constant dense<0.000000e+00> : vector<8x8xf32>
    %104 = vector.multi_reduction <add>, %103, %cst_34 [2] : vector<8x8x8xf32> to vector<8x8xf32>
    %105 = vector.shape_cast %104 : vector<8x8xf32> to vector<8x8x1xf32>
    %106 = tpu.reciprocal %105 {approx = true} : vector<8x8x1xf32> -> vector<8x8x1xf32>
    %107 = vector.broadcast %106 : vector<8x8x1xf32> to vector<8x8x8xf32>
    %108 = arith.mulf %103, %107 : vector<8x8x8xf32>
    "tpu.trace_start"() <{level = 10 : i32, message = "bqk,bkd->bqd"}> : () -> ()
    %cst_35 = arith.constant dense<0.000000e+00> : vector<8x8x8xf32>
    %109 = tpu.matmul %108, %90, %cst_35 {dimension_numbers = #tpu.dot_dimension_numbers<[2], [1], [1], [2], [0, 0, 0, 1, 1, 2], [0], [0]>} : vector<8x8x8xf32>, vector<8x8x8xf32>, vector<8x8x8xf32> -> vector<8x8x8xf32>
    "tpu.trace_stop"() : () -> ()
    %110 = vector.shape_cast %109 : vector<8x8x8xf32> to vector<64x8xf32>
    %111 = vector.extract_strided_slice %39 {offsets = [16, 0], sizes = [8, 32], strides = [1, 1]} : vector<32x32xf32> to vector<8x32xf32>
    %cst_36 = arith.constant dense<0.000000e+00> : vector<64x32xf32>
    %112 = tpu.matmul %110, %111, %cst_36 {dimension_numbers = #tpu.dot_dimension_numbers<[1], [0], [0], [1], [0, 0, 1, 1], [], []>} : vector<64x8xf32>, vector<8x32xf32>, vector<64x32xf32> -> vector<64x32xf32>
    %113 = arith.addf %88, %112 : vector<64x32xf32>
    %114 = vector.extract_strided_slice %31 {offsets = [0, 24], sizes = [64, 8], strides = [1, 1]} : vector<64x32xf32> to vector<64x8xf32>
    %115 = vector.shape_cast %114 : vector<64x8xf32> to vector<8x8x8xf32>
    %116 = vector.extract_strided_slice %32 {offsets = [0, 24], sizes = [64, 8], strides = [1, 1]} : vector<64x32xf32> to vector<64x8xf32>
    %117 = vector.shape_cast %116 : vector<64x8xf32> to vector<8x8x8xf32>
    "tpu.trace_start"() <{level = 10 : i32, message = "bqd,bkd->bqk"}> : () -> ()
    %cst_37 = arith.constant dense<0.000000e+00> : vector<8x8x8xf32>
    %118 = tpu.matmul %115, %117, %cst_37 {dimension_numbers = #tpu.dot_dimension_numbers<[2], [2], [1], [1], [0, 0, 0, 1, 1, 1], [0], [0]>} : vector<8x8x8xf32>, vector<8x8x8xf32>, vector<8x8x8xf32> -> vector<8x8x8xf32>
    "tpu.trace_stop"() : () -> ()
    %cst_38 = arith.constant 0.353553385 : f32
    %119 = vector.broadcast %cst_38 : f32 to vector<8x8x8xf32>
    %120 = arith.mulf %118, %119 : vector<8x8x8xf32>
    %121 = vector.shape_cast %38 : vector<8x8xf32> to vector<1x8x8xf32>
    %122 = vector.broadcast %121 : vector<1x8x8xf32> to vector<8x8x8xf32>
    %123 = arith.addf %120, %122 : vector<8x8x8xf32>
    %cst_39 = arith.constant dense<0xFF800000> : vector<8x8xf32>
    %124 = vector.multi_reduction <maximumf>, %123, %cst_39 [2] : vector<8x8x8xf32> to vector<8x8xf32>
    %125 = vector.shape_cast %124 : vector<8x8xf32> to vector<8x8x1xf32>
    %126 = vector.broadcast %125 : vector<8x8x1xf32> to vector<8x8x8xf32>
    %127 = arith.subf %123, %126 : vector<8x8x8xf32>
    %128 = math.exp %127 : vector<8x8x8xf32>
    %cst_40 = arith.constant dense<0.000000e+00> : vector<8x8xf32>
    %129 = vector.multi_reduction <add>, %128, %cst_40 [2] : vector<8x8x8xf32> to vector<8x8xf32>
    %130 = vector.shape_cast %129 : vector<8x8xf32> to vector<8x8x1xf32>
    %131 = tpu.reciprocal %130 {approx = true} : vector<8x8x1xf32> -> vector<8x8x1xf32>
    %132 = vector.broadcast %131 : vector<8x8x1xf32> to vector<8x8x8xf32>
    %133 = arith.mulf %128, %132 : vector<8x8x8xf32>
    "tpu.trace_start"() <{level = 10 : i32, message = "bqk,bkd->bqd"}> : () -> ()
    %cst_41 = arith.constant dense<0.000000e+00> : vector<8x8x8xf32>
    %134 = tpu.matmul %133, %115, %cst_41 {dimension_numbers = #tpu.dot_dimension_numbers<[2], [1], [1], [2], [0, 0, 0, 1, 1, 2], [0], [0]>} : vector<8x8x8xf32>, vector<8x8x8xf32>, vector<8x8x8xf32> -> vector<8x8x8xf32>
    "tpu.trace_stop"() : () -> ()
    %135 = vector.shape_cast %134 : vector<8x8x8xf32> to vector<64x8xf32>
    %136 = vector.extract_strided_slice %39 {offsets = [24, 0], sizes = [8, 32], strides = [1, 1]} : vector<32x32xf32> to vector<8x32xf32>
    %cst_42 = arith.constant dense<0.000000e+00> : vector<64x32xf32>
    %137 = tpu.matmul %135, %136, %cst_42 {dimension_numbers = #tpu.dot_dimension_numbers<[1], [0], [0], [1], [0, 0, 1, 1], [], []>} : vector<64x8xf32>, vector<8x32xf32>, vector<64x32xf32> -> vector<64x32xf32>
    %138 = arith.addf %113, %137 : vector<64x32xf32>
    %c0_43 = arith.constant 0 : index
    %c0_44 = arith.constant 0 : index
    %139 = vector.load %arg7[%c0_43, %c0_44] : memref<1x32xf32, #tpu.memory_space<vmem>>, vector<1x32xf32>
    %140 = vector.broadcast %139 : vector<1x32xf32> to vector<64x32xf32>
    %141 = arith.addf %138, %140 : vector<64x32xf32>
    %142 = arith.addf %1, %141 : vector<64x32xf32>
    %c0_45 = arith.constant 0 : index
    %c0_46 = arith.constant 0 : index
    %143 = vector.load %arg8[%c0_45, %c0_46] : memref<1x32xf32, #tpu.memory_space<vmem>>, vector<1x32xf32>
    %c0_47 = arith.constant 0 : index
    %c0_48 = arith.constant 0 : index
    %144 = vector.load %arg9[%c0_47, %c0_48] : memref<1x32xf32, #tpu.memory_space<vmem>>, vector<1x32xf32>
    %cst_49 = arith.constant dense<0.000000e+00> : vector<64xf32>
    %145 = vector.multi_reduction <add>, %142, %cst_49 [1] : vector<64x32xf32> to vector<64xf32>
    %146 = vector.shape_cast %145 : vector<64xf32> to vector<64x1xf32>
    %cst_50 = arith.constant 3.200000e+01 : f32
    %147 = vector.broadcast %cst_50 : f32 to vector<64x1xf32>
    %148 = arith.divf %146, %147 : vector<64x1xf32>
    %149 = vector.broadcast %148 : vector<64x1xf32> to vector<64x32xf32>
    %150 = arith.subf %142, %149 : vector<64x32xf32>
    %151 = arith.mulf %150, %150 : vector<64x32xf32>
    %cst_51 = arith.constant dense<0.000000e+00> : vector<64xf32>
    %152 = vector.multi_reduction <add>, %151, %cst_51 [1] : vector<64x32xf32> to vector<64xf32>
    %153 = vector.shape_cast %152 : vector<64xf32> to vector<64x1xf32>
    %cst_52 = arith.constant 3.200000e+01 : f32
    %154 = vector.broadcast %cst_52 : f32 to vector<64x1xf32>
    %155 = arith.divf %153, %154 : vector<64x1xf32>
    %156 = vector.broadcast %148 : vector<64x1xf32> to vector<64x32xf32>
    %157 = arith.subf %142, %156 : vector<64x32xf32>
    %cst_53 = arith.constant 9.99999974E-6 : f32
    %158 = vector.broadcast %cst_53 : f32 to vector<64x1xf32>
    %159 = arith.addf %155, %158 : vector<64x1xf32>
    %160 = math.rsqrt %159 : vector<64x1xf32>
    %161 = vector.broadcast %160 : vector<64x1xf32> to vector<64x32xf32>
    %162 = arith.mulf %157, %161 : vector<64x32xf32>
    %163 = vector.broadcast %143 : vector<1x32xf32> to vector<64x32xf32>
    %164 = arith.mulf %162, %163 : vector<64x32xf32>
    %165 = vector.broadcast %144 : vector<1x32xf32> to vector<64x32xf32>
    %166 = arith.addf %164, %165 : vector<64x32xf32>
    %c0_54 = arith.constant 0 : index
    %c0_55 = arith.constant 0 : index
    %167 = vector.load %arg10[%c0_54, %c0_55] : memref<32x128xf32, #tpu.memory_space<vmem>>, vector<32x128xf32>
    %cst_56 = arith.constant dense<0.000000e+00> : vector<64x128xf32>
    %168 = tpu.matmul %166, %167, %cst_56 {dimension_numbers = #tpu.dot_dimension_numbers<[1], [0], [0], [1], [0, 0, 1, 1], [], []>} : vector<64x32xf32>, vector<32x128xf32>, vector<64x128xf32> -> vector<64x128xf32>
    %c0_57 = arith.constant 0 : index
    %c0_58 = arith.constant 0 : index
    %169 = vector.load %arg11[%c0_57, %c0_58] : memref<1x128xf32, #tpu.memory_space<vmem>>, vector<1x128xf32>
    %170 = vector.broadcast %169 : vector<1x128xf32> to vector<64x128xf32>
    %171 = arith.addf %168, %170 : vector<64x128xf32>
    %cst_59 = arith.constant 5.000000e-01 : f32
    %172 = vector.broadcast %cst_59 : f32 to vector<64x128xf32>
    %173 = arith.mulf %172, %171 : vector<64x128xf32>
    %174 = arith.mulf %171, %171 : vector<64x128xf32>
    %175 = arith.mulf %171, %174 : vector<64x128xf32>
    %cst_60 = arith.constant 4.471500e-02 : f32
    %176 = vector.broadcast %cst_60 : f32 to vector<64x128xf32>
    %177 = arith.mulf %176, %175 : vector<64x128xf32>
    %178 = arith.addf %171, %177 : vector<64x128xf32>
    %cst_61 = arith.constant 0.797884583 : f32
    %179 = vector.broadcast %cst_61 : f32 to vector<64x128xf32>
    %180 = arith.mulf %179, %178 : vector<64x128xf32>
    %181 = math.tanh %180 : vector<64x128xf32>
    %cst_62 = arith.constant 1.000000e+00 : f32
    %182 = vector.broadcast %cst_62 : f32 to vector<64x128xf32>
    %183 = arith.addf %182, %181 : vector<64x128xf32>
    %184 = arith.mulf %173, %183 : vector<64x128xf32>
    %c0_63 = arith.constant 0 : index
    %c0_64 = arith.constant 0 : index
    %185 = vector.load %arg12[%c0_63, %c0_64] : memref<128x32xf32, #tpu.memory_space<vmem>>, vector<128x32xf32>
    %cst_65 = arith.constant dense<0.000000e+00> : vector<64x32xf32>
    %186 = tpu.matmul %184, %185, %cst_65 {dimension_numbers = #tpu.dot_dimension_numbers<[1], [0], [0], [1], [0, 0, 1, 1], [], []>} : vector<64x128xf32>, vector<128x32xf32>, vector<64x32xf32> -> vector<64x32xf32>
    %c0_66 = arith.constant 0 : index
    %c0_67 = arith.constant 0 : index
    %187 = vector.load %arg13[%c0_66, %c0_67] : memref<1x32xf32, #tpu.memory_space<vmem>>, vector<1x32xf32>
    %188 = vector.broadcast %187 : vector<1x32xf32> to vector<64x32xf32>
    %189 = arith.addf %186, %188 : vector<64x32xf32>
    %190 = arith.addf %142, %189 : vector<64x32xf32>
    %191 = vector.shape_cast %190 : vector<64x32xf32> to vector<8x8x32xf32>
    %c0_68 = arith.constant 0 : index
    %c0_69 = arith.constant 0 : index
    %c0_70 = arith.constant 0 : index
    %192 = vector.load %arg14[%c0_68, %c0_69, %c0_70] : memref<8x8x32xf32, #tpu.memory_space<vmem>>, vector<8x8x32xf32>
    tpu.vector_store %arg14[%c0_68, %c0_69, %c0_70], %191 {strides = array<i32>} : memref<8x8x32xf32, #tpu.memory_space<vmem>>, vector<8x8x32xf32>,
    return
  }
  func.func @transform_0(%arg0: i32) -> (i32, i32, i32) {
    %c0_i32 = arith.constant 0 : i32
    %c0_i32_0 = arith.constant 0 : i32
    %c0_i32_1 = arith.constant 0 : i32
    return %arg0, %c0_i32, %c0_i32_0 : i32, i32, i32
  }
  func.func @transform_1(%arg0: i32) -> (i32, i32) {
    %c0_i32 = arith.constant 0 : i32
    %c0_i32_0 = arith.constant 0 : i32
    %c0_i32_1 = arith.constant 0 : i32
    return %c0_i32, %c0_i32_0 : i32, i32
  }
  func.func @transform_2(%arg0: i32) -> (i32, i32) {
    %c0_i32 = arith.constant 0 : i32
    %c0_i32_0 = arith.constant 0 : i32
    %c0_i32_1 = arith.constant 0 : i32
    return %c0_i32, %c0_i32_0 : i32, i32
  }
  func.func @transform_3(%arg0: i32) -> (i32, i32) {
    %c0_i32 = arith.constant 0 : i32
    %c0_i32_0 = arith.constant 0 : i32
    %c0_i32_1 = arith.constant 0 : i32
    return %c0_i32, %c0_i32_0 : i32, i32
  }
  func.func @transform_4(%arg0: i32) -> (i32, i32) {
    %c0_i32 = arith.constant 0 : i32
    %c0_i32_0 = arith.constant 0 : i32
    %c0_i32_1 = arith.constant 0 : i32
    return %c0_i32, %c0_i32_0 : i32, i32
  }
  func.func @transform_5(%arg0: i32) -> (i32, i32) {
    %c0_i32 = arith.constant 0 : i32
    %c0_i32_0 = arith.constant 0 : i32
    %c0_i32_1 = arith.constant 0 : i32
    return %c0_i32, %c0_i32_0 : i32, i32
  }
  func.func @transform_6(%arg0: i32) -> (i32, i32) {
    %c0_i32 = arith.constant 0 : i32
    %c0_i32_0 = arith.constant 0 : i32
    %c0_i32_1 = arith.constant 0 : i32
    return %c0_i32, %c0_i32_0 : i32, i32
  }
  func.func @transform_7(%arg0: i32) -> (i32, i32) {
    %c0_i32 = arith.constant 0 : i32
    %c0_i32_0 = arith.constant 0 : i32
    %c0_i32_1 = arith.constant 0 : i32
    return %c0_i32, %c0_i32_0 : i32, i32
  }
  func.func @transform_8(%arg0: i32) -> (i32, i32) {
    %c0_i32 = arith.constant 0 : i32
    %c0_i32_0 = arith.constant 0 : i32
    %c0_i32_1 = arith.constant 0 : i32
    return %c0_i32, %c0_i32_0 : i32, i32
  }
  func.func @transform_9(%arg0: i32) -> (i32, i32) {
    %c0_i32 = arith.constant 0 : i32
    %c0_i32_0 = arith.constant 0 : i32
    %c0_i32_1 = arith.constant 0 : i32
    return %c0_i32, %c0_i32_0 : i32, i32
  }
  func.func @transform_10(%arg0: i32) -> (i32, i32) {
    %c0_i32 = arith.constant 0 : i32
    %c0_i32_0 = arith.constant 0 : i32
    %c0_i32_1 = arith.constant 0 : i32
    return %c0_i32, %c0_i32_0 : i32, i32
  }
  func.func @transform_11(%arg0: i32) -> (i32, i32) {
    %c0_i32 = arith.constant 0 : i32
    %c0_i32_0 = arith.constant 0 : i32
    %c0_i32_1 = arith.constant 0 : i32
    return %c0_i32, %c0_i32_0 : i32, i32
  }
  func.func @transform_12(%arg0: i32) -> (i32, i32) {
    %c0_i32 = arith.constant 0 : i32
    %c0_i32_0 = arith.constant 0 : i32
    %c0_i32_1 = arith.constant 0 : i32
    return %c0_i32, %c0_i32_0 : i32, i32
  }
  func.func @transform_13(%arg0: i32) -> (i32, i32, i32) {
    %c0_i32 = arith.constant 0 : i32
    %c0_i32_0 = arith.constant 0 : i32
    %c0_i32_1 = arith.constant 0 : i32
    return %arg0, %c0_i32, %c0_i32_0 : i32, i32, i32
  }
}

</mosaic_0001>

<llo_original>
// kernel: tpu_custom_call.1
$region0: #{tpu_custom_call.1}
  #allocation0 [shape = 'u32[]', space=smem, size = 0x4, offset = 0x4, fixed_abs, tag = 'smem constant byte address 0x4 - core index']
  #allocation1 [shape = 'u32[72,128]{1,0:T(1,128)}', space=vmem, size = 0x9000, scoped, tag = 'internal scratch']
  %s0 = inlined_call_operand.vmem [shape: f32[16,8,32], index: 0, kind: input, shape index: {}]
  %s1 = inlined_call_operand.hbm [shape: f32[1,32], index: 1, kind: input, shape index: {}]
  %s2 = inlined_call_operand.vmem [shape: f32[1,32], index: 2, kind: input, shape index: {}]
  %s3 = inlined_call_operand.vmem [shape: f32[32,64], index: 3, kind: input, shape index: {}]
  %s4 = inlined_call_operand.vmem [shape: f32[1,64], index: 4, kind: input, shape index: {}]
  %s5 = inlined_call_operand.hbm [shape: f32[32,32], index: 5, kind: input, shape index: {}]
  %s6 = inlined_call_operand.vmem [shape: f32[1,32], index: 6, kind: input, shape index: {}]
  %s7 = inlined_call_operand.vmem [shape: f32[1,32], index: 7, kind: input, shape index: {}]
  %s8 = inlined_call_operand.vmem [shape: f32[1,32], index: 8, kind: input, shape index: {}]
  %s9 = inlined_call_operand.hbm [shape: f32[32,128], index: 9, kind: input, shape index: {}]
  %s10 = inlined_call_operand.vmem [shape: f32[1,128], index: 10, kind: input, shape index: {}]
  %s11 = inlined_call_operand.vmem [shape: f32[128,32], index: 11, kind: input, shape index: {}]
  %s12 = inlined_call_operand.vmem [shape: f32[1,32], index: 12, kind: input, shape index: {}]
  %s13 = inlined_call_operand.hbm [shape: f32[16,8,32], index: 13, kind: output, shape index: {}]
  %s14 = sld [smem:[#allocation0]]
  $region97: #{tpu_custom_call.1} parent=0
    _
  %s16 = ssub.s32 1, %s14
  %s17 = scalar_select 0, %s16, %s14
  $region1: #{tpu_custom_call.1} parent=0
    #allocation2 [shape = 'u8[512]{0}', space=vmem, size = 0x400, scoped, tag = 'input window, operand 1, single buffered']
    #allocation3 [shape = 's32[2]{0}', space=sflag, size = 0x8, scoped, tag = 'scoped memory for tpu_custom_call.1']
    #allocation4 [shape = 's32[2]{0}', space=sflag, size = 0x8, scoped, tag = 'scoped memory for tpu_custom_call.1']
    #allocation5 [shape = 'u8[16384]{0}', space=vmem, size = 0x4000, scoped, tag = 'input window, operand 5, single buffered']
    #allocation6 [shape = 's32[1]{0}', space=sflag, size = 0x4, scoped, tag = 'scoped memory for tpu_custom_call.1']
    #allocation7 [shape = 'u8[16384]{0}', space=vmem, size = 0x4000, scoped, tag = 'input window, operand 9, single buffered']
    #allocation8 [shape = 'u8[65536]{0}', space=vmem, size = 0x10000, scoped, tag = 'output window, operand 0']
    %18 = vsyncpa [#allocation3], 0
    %19 = vsyncpa [#allocation6], 0
    %20 = vsyncpa [#allocation4], 0
    %s21 = scalar_lea.sflag [#allocation4], 1
    %22 = vsyncpa %s21, 0
    loop: start=0, step=1, limit=4
    $region2: #{tpu_custom_call.1} parent=1 // loop_pre_header
      _
    $region3: #{tpu_custom_call.1} parent=1 // loop_header
      %s24 = sphi 0, %s28
      %p25 = scmp.ge.s32.totalorder %s24, 4
      %s34 = sphi 0, %s36
      %s37 = sphi 0, %s34
      %s38 = sphi 0, %s37
      %s54 = sphi 0, %s38
      %s58 = sphi 0, %s58
      %s60 = sphi 0, %s58
      %s61 = sphi 0, %s60
      %s75 = sphi 0, %s61
      %s79 = sphi 0, %s79
      %s81 = sphi 0, %s79
      %s82 = sphi 0, %s81
      %s96 = sphi 0, %s82
      %s100 = sphi 0, %s100
      %s102 = sphi 0, %s100
      %s103 = sphi 0, %s102
      %s117 = sphi 0, %s103
      %s121 = sphi 0, %s121
      %s123 = sphi 0, %s121
      %s124 = sphi 0, %s123
      %s138 = sphi 0, %s124
      %s142 = sphi 0, %s142
      %s144 = sphi 0, %s142
      %s145 = sphi 0, %s144
      %s159 = sphi 0, %s145
      %s163 = sphi 0, %s163
      %s165 = sphi 0, %s163
      %s166 = sphi 0, %s165
      %s180 = sphi 0, %s166
      %s184 = sphi 0, %s184
      %s186 = sphi 0, %s184
      %s187 = sphi 0, %s186
      %s201 = sphi 0, %s187
      %s205 = sphi 0, %s205
      %s207 = sphi 0, %s205
      %s208 = sphi 0, %s207
      %s222 = sphi 0, %s208
      %s226 = sphi 0, %s226
      %s228 = sphi 0, %s226
      %s229 = sphi 0, %s228
      %s243 = sphi 0, %s229
      %s247 = sphi 0, %s247
      %s249 = sphi 0, %s247
      %s250 = sphi 0, %s249
      %s264 = sphi 0, %s250
      %s268 = sphi 0, %s268
      %s270 = sphi 0, %s268
      %s271 = sphi 0, %s270
      %s285 = sphi 0, %s271
      %s289 = sphi 0, %s289
      %s291 = sphi 0, %s289
      %s292 = sphi 0, %s291
      %s306 = sphi 0, %s292
      %s312 = sphi 0, %s314
      %s315 = sphi 0, %s312
      %s316 = sphi 0, %s315
      %s332 = sphi 0, %s316
    $region4: #{tpu_custom_call.1} parent=1 // loop_header_branch
      %27 = sbr.rel (%p25) target = $region8
    $region5: #{tpu_custom_call.1} parent=1 // loop_body
      %s29 = ssub.s32 %s24, 1
      %s30 = ssub.s32 %s24, 2
      %s31 = sadd.s32 %s24, 1
      %s32 = ssub.s32 %s24, %s31
      %p33 = scmp.eq.s32.totalorder %s32, 0
      %s35 = sadd.s32 %s34, 1
      %s36 = scalar_select %p33, %s34, %s35
      %p39 = pneg %p33
      %p40 = scmp.eq.s32.totalorder %s24, 1
      %p41 = por %p39, %p40
      %p42 = scmp.ne.s32.totalorder %s34, %s37
      %p43 = scmp.eq.s32.totalorder %s24, 0
      %p44 = por %p42, %p43
      %p45 = scmp.ne.s32.totalorder %s34, %s37
      %p46 = scmp.eq.s32.totalorder %s29, 1
      %p47 = por %p45, %p46
      %p48 = scmp.ne.s32.totalorder %s37, %s38
      %p49 = scmp.eq.s32.totalorder %s29, 0
      %p50 = por %p48, %p49
      %p51 = scmp.ne.s32.totalorder %s37, %s38
      %p52 = scmp.eq.s32.totalorder %s30, 1
      %p53 = por %p51, %p52
      %p55 = scmp.ne.s32.totalorder %s38, %s54
      %p56 = scmp.eq.s32.totalorder %s30, 0
      %p57 = por %p55, %p56
      %s59 = sadd.s32 %s58, 1
      %p62 = scmp.eq.s32.totalorder %s24, 1
      %p63 = scmp.ne.s32.totalorder %s58, %s60
      %p64 = scmp.eq.s32.totalorder %s24, 0
      %p65 = por %p63, %p64
      %p66 = scmp.ne.s32.totalorder %s58, %s60
      %p67 = scmp.eq.s32.totalorder %s29, 1
      %p68 = por %p66, %p67
      %p69 = scmp.ne.s32.totalorder %s60, %s61
      %p70 = scmp.eq.s32.totalorder %s29, 0
      %p71 = por %p69, %p70
      %p72 = scmp.ne.s32.totalorder %s60, %s61
      %p73 = scmp.eq.s32.totalorder %s30, 1
      %p74 = por %p72, %p73
      %p76 = scmp.ne.s32.totalorder %s61, %s75
      %p77 = scmp.eq.s32.totalorder %s30, 0
      %p78 = por %p76, %p77
      %s80 = sadd.s32 %s79, 1
      %p83 = scmp.eq.s32.totalorder %s24, 1
      %p84 = scmp.ne.s32.totalorder %s79, %s81
      %p85 = scmp.eq.s32.totalorder %s24, 0
      %p86 = por %p84, %p85
      %p87 = scmp.ne.s32.totalorder %s79, %s81
      %p88 = scmp.eq.s32.totalorder %s29, 1
      %p89 = por %p87, %p88
      %p90 = scmp.ne.s32.totalorder %s81, %s82
      %p91 = scmp.eq.s32.totalorder %s29, 0
      %p92 = por %p90, %p91
      %p93 = scmp.ne.s32.totalorder %s81, %s82
      %p94 = scmp.eq.s32.totalorder %s30, 1
      %p95 = por %p93, %p94
      %p97 = scmp.ne.s32.totalorder %s82, %s96
      %p98 = scmp.eq.s32.totalorder %s30, 0
      %p99 = por %p97, %p98
      %s101 = sadd.s32 %s100, 1
      %p104 = scmp.eq.s32.totalorder %s24, 1
      %p105 = scmp.ne.s32.totalorder %s100, %s102
      %p106 = scmp.eq.s32.totalorder %s24, 0
      %p107 = por %p105, %p106
      %p108 = scmp.ne.s32.totalorder %s100, %s102
      %p109 = scmp.eq.s32.totalorder %s29, 1
      %p110 = por %p108, %p109
      %p111 = scmp.ne.s32.totalorder %s102, %s103
      %p112 = scmp.eq.s32.totalorder %s29, 0
      %p113 = por %p111, %p112
      %p114 = scmp.ne.s32.totalorder %s102, %s103
      %p115 = scmp.eq.s32.totalorder %s30, 1
      %p116 = por %p114, %p115
      %p118 = scmp.ne.s32.totalorder %s103, %s117
      %p119 = scmp.eq.s32.totalorder %s30, 0
      %p120 = por %p118, %p119
      %s122 = sadd.s32 %s121, 1
      %p125 = scmp.eq.s32.totalorder %s24, 1
      %p126 = scmp.ne.s32.totalorder %s121, %s123
      %p127 = scmp.eq.s32.totalorder %s24, 0
      %p128 = por %p126, %p127
      %p129 = scmp.ne.s32.totalorder %s121, %s123
      %p130 = scmp.eq.s32.totalorder %s29, 1
      %p131 = por %p129, %p130
      %p132 = scmp.ne.s32.totalorder %s123, %s124
      %p133 = scmp.eq.s32.totalorder %s29, 0
      %p134 = por %p132, %p133
      %p135 = scmp.ne.s32.totalorder %s123, %s124
      %p136 = scmp.eq.s32.totalorder %s30, 1
      %p137 = por %p135, %p136
      %p139 = scmp.ne.s32.totalorder %s124, %s138
      %p140 = scmp.eq.s32.totalorder %s30, 0
      %p141 = por %p139, %p140
      %s143 = sadd.s32 %s142, 1
      %p146 = scmp.eq.s32.totalorder %s24, 1
      %p147 = scmp.ne.s32.totalorder %s142, %s144
      %p148 = scmp.eq.s32.totalorder %s24, 0
      %p149 = por %p147, %p148
      %p150 = scmp.ne.s32.totalorder %s142, %s144
      %p151 = scmp.eq.s32.totalorder %s29, 1
      %p152 = por %p150, %p151
      %p153 = scmp.ne.s32.totalorder %s144, %s145
      %p154 = scmp.eq.s32.totalorder %s29, 0
      %p155 = por %p153, %p154
      %p156 = scmp.ne.s32.totalorder %s144, %s145
      %p157 = scmp.eq.s32.totalorder %s30, 1
      %p158 = por %p156, %p157
      %p160 = scmp.ne.s32.totalorder %s145, %s159
      %p161 = scmp.eq.s32.totalorder %s30, 0
      %p162 = por %p160, %p161
      %s164 = sadd.s32 %s163, 1
      %p167 = scmp.eq.s32.totalorder %s24, 1
      %p168 = scmp.ne.s32.totalorder %s163, %s165
      %p169 = scmp.eq.s32.totalorder %s24, 0
      %p170 = por %p168, %p169
      %p171 = scmp.ne.s32.totalorder %s163, %s165
      %p172 = scmp.eq.s32.totalorder %s29, 1
      %p173 = por %p171, %p172
      %p174 = scmp.ne.s32.totalorder %s165, %s166
      %p175 = scmp.eq.s32.totalorder %s29, 0
      %p176 = por %p174, %p175
      %p177 = scmp.ne.s32.totalorder %s165, %s166
      %p178 = scmp.eq.s32.totalorder %s30, 1
      %p179 = por %p177, %p178
      %p181 = scmp.ne.s32.totalorder %s166, %s180
      %p182 = scmp.eq.s32.totalorder %s30, 0
      %p183 = por %p181, %p182
      %s185 = sadd.s32 %s184, 1
      %p188 = scmp.eq.s32.totalorder %s24, 1
      %p189 = scmp.ne.s32.totalorder %s184, %s186
      %p190 = scmp.eq.s32.totalorder %s24, 0
      %p191 = por %p189, %p190
      %p192 = scmp.ne.s32.totalorder %s184, %s186
      %p193 = scmp.eq.s32.totalorder %s29, 1
      %p194 = por %p192, %p193
      %p195 = scmp.ne.s32.totalorder %s186, %s187
      %p196 = scmp.eq.s32.totalorder %s29, 0
      %p197 = por %p195, %p196
      %p198 = scmp.ne.s32.totalorder %s186, %s187
      %p199 = scmp.eq.s32.totalorder %s30, 1
      %p200 = por %p198, %p199
      %p202 = scmp.ne.s32.totalorder %s187, %s201
      %p203 = scmp.eq.s32.totalorder %s30, 0
      %p204 = por %p202, %p203
      %s206 = sadd.s32 %s205, 1
      %p209 = scmp.eq.s32.totalorder %s24, 1
      %p210 = scmp.ne.s32.totalorder %s205, %s207
      %p211 = scmp.eq.s32.totalorder %s24, 0
      %p212 = por %p210, %p211
      %p213 = scmp.ne.s32.totalorder %s205, %s207
      %p214 = scmp.eq.s32.totalorder %s29, 1
      %p215 = por %p213, %p214
      %p216 = scmp.ne.s32.totalorder %s207, %s208
      %p217 = scmp.eq.s32.totalorder %s29, 0
      %p218 = por %p216, %p217
      %p219 = scmp.ne.s32.totalorder %s207, %s208
      %p220 = scmp.eq.s32.totalorder %s30, 1
      %p221 = por %p219, %p220
      %p223 = scmp.ne.s32.totalorder %s208, %s222
      %p224 = scmp.eq.s32.totalorder %s30, 0
      %p225 = por %p223, %p224
      %s227 = sadd.s32 %s226, 1
      %p230 = scmp.eq.s32.totalorder %s24, 1
      %p231 = scmp.ne.s32.totalorder %s226, %s228
      %p232 = scmp.eq.s32.totalorder %s24, 0
      %p233 = por %p231, %p232
      %p234 = scmp.ne.s32.totalorder %s226, %s228
      %p235 = scmp.eq.s32.totalorder %s29, 1
      %p236 = por %p234, %p235
      %p237 = scmp.ne.s32.totalorder %s228, %s229
      %p238 = scmp.eq.s32.totalorder %s29, 0
      %p239 = por %p237, %p238
      %p240 = scmp.ne.s32.totalorder %s228, %s229
      %p241 = scmp.eq.s32.totalorder %s30, 1
      %p242 = por %p240, %p241
      %p244 = scmp.ne.s32.totalorder %s229, %s243
      %p245 = scmp.eq.s32.totalorder %s30, 0
      %p246 = por %p244, %p245
      %s248 = sadd.s32 %s247, 1
      %p251 = scmp.eq.s32.totalorder %s24, 1
      %p252 = scmp.ne.s32.totalorder %s247, %s249
      %p253 = scmp.eq.s32.totalorder %s24, 0
      %p254 = por %p252, %p253
      %p255 = scmp.ne.s32.totalorder %s247, %s249
      %p256 = scmp.eq.s32.totalorder %s29, 1
      %p257 = por %p255, %p256
      %p258 = scmp.ne.s32.totalorder %s249, %s250
      %p259 = scmp.eq.s32.totalorder %s29, 0
      %p260 = por %p258, %p259
      %p261 = scmp.ne.s32.totalorder %s249, %s250
      %p262 = scmp.eq.s32.totalorder %s30, 1
      %p263 = por %p261, %p262
      %p265 = scmp.ne.s32.totalorder %s250, %s264
      %p266 = scmp.eq.s32.totalorder %s30, 0
      %p267 = por %p265, %p266
      %s269 = sadd.s32 %s268, 1
      %p272 = scmp.eq.s32.totalorder %s24, 1
      %p273 = scmp.ne.s32.totalorder %s268, %s270
      %p274 = scmp.eq.s32.totalorder %s24, 0
      %p275 = por %p273, %p274
      %p276 = scmp.ne.s32.totalorder %s268, %s270
      %p277 = scmp.eq.s32.totalorder %s29, 1
      %p278 = por %p276, %p277
      %p279 = scmp.ne.s32.totalorder %s270, %s271
      %p280 = scmp.eq.s32.totalorder %s29, 0
      %p281 = por %p279, %p280
      %p282 = scmp.ne.s32.totalorder %s270, %s271
      %p283 = scmp.eq.s32.totalorder %s30, 1
      %p284 = por %p282, %p283
      %p286 = scmp.ne.s32.totalorder %s271, %s285
      %p287 = scmp.eq.s32.totalorder %s30, 0
      %p288 = por %p286, %p287
      %s290 = sadd.s32 %s289, 1
      %p293 = scmp.eq.s32.totalorder %s24, 1
      %p294 = scmp.ne.s32.totalorder %s289, %s291
      %p295 = scmp.eq.s32.totalorder %s24, 0
      %p296 = por %p294, %p295
      %p297 = scmp.ne.s32.totalorder %s289, %s291
      %p298 = scmp.eq.s32.totalorder %s29, 1
      %p299 = por %p297, %p298
      %p300 = scmp.ne.s32.totalorder %s291, %s292
      %p301 = scmp.eq.s32.totalorder %s29, 0
      %p302 = por %p300, %p301
      %p303 = scmp.ne.s32.totalorder %s291, %s292
      %p304 = scmp.eq.s32.totalorder %s30, 1
      %p305 = por %p303, %p304
      %p307 = scmp.ne.s32.totalorder %s292, %s306
      %p308 = scmp.eq.s32.totalorder %s30, 0
      %p309 = por %p307, %p308
      %s310 = ssub.s32 %s24, %s31
      %p311 = scmp.eq.s32.totalorder %s310, 0
      %s313 = sadd.s32 %s312, 1
      %s314 = scalar_select %p311, %s312, %s313
      %p317 = pneg %p311
      %p318 = scmp.eq.s32.totalorder %s24, 1
      %p319 = por %p317, %p318
      %p320 = scmp.ne.s32.totalorder %s312, %s315
      %p321 = scmp.eq.s32.totalorder %s24, 0
      %p322 = por %p320, %p321
      %p323 = scmp.ne.s32.totalorder %s312, %s315
      %p324 = scmp.eq.s32.totalorder %s29, 1
      %p325 = por %p323, %p324
      %p326 = scmp.ne.s32.totalorder %s315, %s316
      %p327 = scmp.eq.s32.totalorder %s29, 0
      %p328 = por %p326, %p327
      %p329 = scmp.ne.s32.totalorder %s315, %s316
      %p330 = scmp.eq.s32.totalorder %s30, 1
      %p331 = por %p329, %p330
      %p333 = scmp.ne.s32.totalorder %s316, %s332
      %p334 = scmp.eq.s32.totalorder %s30, 0
      %p335 = por %p333, %p334
      %p336 = scmp.le.s32.totalorder 1, %s24
      %p337 = scmp.lt.s32.totalorder %s24, 3
      %p338 = pnand %p336, %p337
      %p339 = pneg %p338
      // Predicated region
      $region9: #{tpu_custom_call.1} parent=5 // pred_check
        _
      $region10: #{tpu_custom_call.1} parent=5 // pred_check_branch
        %341 = sbr.rel (%p338) target = $region12
      $region11: #{tpu_custom_call.1} parent=5 // pred_region
        %s342 = ssub.s32 %s24, 1
        // Predicated region
        $region13: #{tpu_custom_call.1} parent=11 // pred_check
          %p343 = pneg %p71
        $region14: #{tpu_custom_call.1} parent=11 // pred_check_branch
          %345 = sbr.rel (%p343) target = $region16
        $region15: #{tpu_custom_call.1} parent=11 // pred_region
          %347 = vsyncadd [#allocation3], 0
          %s349 = sshll.u32 %s1, 4
          %s350 = int_to_ptr.hbm [resolvable:$true] %s349
          %s351 = sshll.u32 [#allocation2], 4
          %s352 = int_to_ptr.vmem [resolvable:$true] %s351
          %354 = dma.hbm_to_vmem [thread:$0]  %s350, 16, %s352, [#allocation3]
        $region16: #{tpu_custom_call.1} parent=11 // pred_fallthru
          _
        // Predicated region
        $region17: #{tpu_custom_call.1} parent=11 // pred_check
          %p355 = pneg %p92
        $region18: #{tpu_custom_call.1} parent=11 // pred_check_branch
          %357 = sbr.rel (%p355) target = $region20
        $region19: #{tpu_custom_call.1} parent=11 // pred_region
          _
        $region20: #{tpu_custom_call.1} parent=11 // pred_fallthru
          _
        // Predicated region
        $region21: #{tpu_custom_call.1} parent=11 // pred_check
          %p358 = pneg %p113
        $region22: #{tpu_custom_call.1} parent=11 // pred_check_branch
          %360 = sbr.rel (%p358) target = $region24
        $region23: #{tpu_custom_call.1} parent=11 // pred_region
          _
        $region24: #{tpu_custom_call.1} parent=11 // pred_fallthru
          _
        // Predicated region
        $region25: #{tpu_custom_call.1} parent=11 // pred_check
          %p361 = pneg %p134
        $region26: #{tpu_custom_call.1} parent=11 // pred_check_branch
          %363 = sbr.rel (%p361) target = $region28
        $region27: #{tpu_custom_call.1} parent=11 // pred_region
          _
        $region28: #{tpu_custom_call.1} parent=11 // pred_fallthru
          _
        // Predicated region
        $region29: #{tpu_custom_call.1} parent=11 // pred_check
          %p364 = pneg %p155
        $region30: #{tpu_custom_call.1} parent=11 // pred_check_branch
          %366 = sbr.rel (%p364) target = $region32
        $region31: #{tpu_custom_call.1} parent=11 // pred_region
          %368 = vsyncadd [#allocation6], 0
          %s369 = sshll.u32 %s5, 4
          %s370 = int_to_ptr.hbm [resolvable:$true] %s369
          %s371 = sshll.u32 [#allocation5], 4
          %s372 = int_to_ptr.vmem [resolvable:$true] %s371
          %377 = dma.hbm_to_vmem [thread:$0]  %s370, 512, %s372, [#allocation6], 128, 128, 8
        $region32: #{tpu_custom_call.1} parent=11 // pred_fallthru
          _
        // Predicated region
        $region33: #{tpu_custom_call.1} parent=11 // pred_check
          %p378 = pneg %p176
        $region34: #{tpu_custom_call.1} parent=11 // pred_check_branch
          %380 = sbr.rel (%p378) target = $region36
        $region35: #{tpu_custom_call.1} parent=11 // pred_region
          _
        $region36: #{tpu_custom_call.1} parent=11 // pred_fallthru
          _
        // Predicated region
        $region37: #{tpu_custom_call.1} parent=11 // pred_check
          %p381 = pneg %p197
        $region38: #{tpu_custom_call.1} parent=11 // pred_check_branch
          %383 = sbr.rel (%p381) target = $region40
        $region39: #{tpu_custom_call.1} parent=11 // pred_region
          _
        $region40: #{tpu_custom_call.1} parent=11 // pred_fallthru
          _
        // Predicated region
        $region41: #{tpu_custom_call.1} parent=11 // pred_check
          %p384 = pneg %p218
        $region42: #{tpu_custom_call.1} parent=11 // pred_check_branch
          %386 = sbr.rel (%p384) target = $region44
        $region43: #{tpu_custom_call.1} parent=11 // pred_region
          _
        $region44: #{tpu_custom_call.1} parent=11 // pred_fallthru
          _
        // Predicated region
        $region45: #{tpu_custom_call.1} parent=11 // pred_check
          %p387 = pneg %p239
        $region46: #{tpu_custom_call.1} parent=11 // pred_check_branch
          %389 = sbr.rel (%p387) target = $region48
        $region47: #{tpu_custom_call.1} parent=11 // pred_region
          %391 = vsyncadd [#allocation6], 0
          %s392 = sshll.u32 %s9, 4
          %s393 = int_to_ptr.hbm [resolvable:$true] %s392
          %s394 = sshll.u32 [#allocation7], 4
          %s395 = int_to_ptr.vmem [resolvable:$true] %s394
          %400 = dma.hbm_to_vmem [thread:$0]  %s393, 512, %s395, [#allocation6], 128, 128, 8
        $region48: #{tpu_custom_call.1} parent=11 // pred_fallthru
          _
        // Predicated region
        $region49: #{tpu_custom_call.1} parent=11 // pred_check
          %p401 = pneg %p260
        $region50: #{tpu_custom_call.1} parent=11 // pred_check_branch
          %403 = sbr.rel (%p401) target = $region52
        $region51: #{tpu_custom_call.1} parent=11 // pred_region
          _
        $region52: #{tpu_custom_call.1} parent=11 // pred_fallthru
          _
        // Predicated region
        $region53: #{tpu_custom_call.1} parent=11 // pred_check
          %p404 = pneg %p281
        $region54: #{tpu_custom_call.1} parent=11 // pred_check_branch
          %406 = sbr.rel (%p404) target = $region56
        $region55: #{tpu_custom_call.1} parent=11 // pred_region
          _
        $region56: #{tpu_custom_call.1} parent=11 // pred_fallthru
          _
        // Predicated region
        $region57: #{tpu_custom_call.1} parent=11 // pred_check
          %p407 = pneg %p302
        $region58: #{tpu_custom_call.1} parent=11 // pred_check_branch
          %409 = sbr.rel (%p407) target = $region60
        $region59: #{tpu_custom_call.1} parent=11 // pred_region
          _
        $region60: #{tpu_custom_call.1} parent=11 // pred_fallthru
          _
      $region12: #{tpu_custom_call.1} parent=5 // pred_fallthru
        _
      %p410 = scmp.lt.s32.totalorder %s24, 2
      // Predicated region
      $region61: #{tpu_custom_call.1} parent=5 // pred_check
        %p411 = pneg %p410
      $region62: #{tpu_custom_call.1} parent=5 // pred_check_branch
        %413 = sbr.rel (%p411) target = $region64
      $region63: #{tpu_custom_call.1} parent=5 // pred_region
        // Predicated region
        $region65: #{tpu_custom_call.1} parent=63 // pred_check
          %p414 = pneg %p44
        $region66: #{tpu_custom_call.1} parent=63 // pred_check_branch
          %416 = sbr.rel (%p414) target = $region68
        $region67: #{tpu_custom_call.1} parent=63 // pred_region
          %s417 = smul.u32 8, %s24
          %p418 = scmp.lt.s32.totalorder %s417, 15
          %s419 = scalar_select %p418, %s417, 15
          %s420 = smul.addr %s419, 8
          %s421 = scalar_lea.vmem %s0, %s420
          %s422 = smul.u32 8, %s24
        $region68: #{tpu_custom_call.1} parent=63 // pred_fallthru
          _
      $region64: #{tpu_custom_call.1} parent=5 // pred_fallthru
        _
      %p423 = scmp.le.s32.totalorder 1, %s24
      %p424 = scmp.lt.s32.totalorder %s24, 3
      %p425 = pnand %p423, %p424
      %p426 = pneg %p425
      // Predicated region
      $region69: #{tpu_custom_call.1} parent=5 // pred_check
        _
      $region70: #{tpu_custom_call.1} parent=5 // pred_check_branch
        %428 = sbr.rel (%p425) target = $region72
      $region71: #{tpu_custom_call.1} parent=5 // pred_region
        %s429 = ssub.s32 %s24, 1
        // Predicated region
        $region73: #{tpu_custom_call.1} parent=71 // pred_check
          %p430 = pneg %p71
        $region74: #{tpu_custom_call.1} parent=71 // pred_check_branch
          %432 = sbr.rel (%p430) target = $region76
        $region75: #{tpu_custom_call.1} parent=71 // pred_region
          %434 = dma.done [#allocation3], 16
        $region76: #{tpu_custom_call.1} parent=71 // pred_fallthru
          _
        // Predicated region
        $region77: #{tpu_custom_call.1} parent=71 // pred_check
          %p435 = pneg %p155
        $region78: #{tpu_custom_call.1} parent=71 // pred_check_branch
          %437 = sbr.rel (%p435) target = $region80
        $region79: #{tpu_custom_call.1} parent=71 // pred_region
          %439 = dma.done [#allocation6], 512
        $region80: #{tpu_custom_call.1} parent=71 // pred_fallthru
          _
        // Predicated region
        $region81: #{tpu_custom_call.1} parent=71 // pred_check
          %p440 = pneg %p239
        $region82: #{tpu_custom_call.1} parent=71 // pred_check_branch
          %442 = sbr.rel (%p440) target = $region84
        $region83: #{tpu_custom_call.1} parent=71 // pred_region
          %444 = dma.done [#allocation6], 512
        $region84: #{tpu_custom_call.1} parent=71 // pred_fallthru
          _
        %s445 = smul.u32 8, %s29
        %p446 = scmp.lt.s32.totalorder %s445, 15
        %s447 = scalar_select %p446, %s445, 15
        %s448 = smul.addr %s447, 8
        %s449 = scalar_lea.vmem %s0, %s448
        %p450 = pneg %p50
        %p451 = pneg %p47
        %p452 = pneg %p71
        %p453 = pneg %p68
        %p454 = pneg %p92
        %p455 = pneg %p89
        %p456 = pneg %p113
        %p457 = pneg %p110
        %p458 = pneg %p134
        %p459 = pneg %p131
        %p460 = pneg %p155
        %p461 = pneg %p152
        %p462 = pneg %p176
        %p463 = pneg %p173
        %p464 = pneg %p197
        %p465 = pneg %p194
        %p466 = pneg %p218
        %p467 = pneg %p215
        %p468 = pneg %p239
        %p469 = pneg %p236
        %p470 = pneg %p260
        %p471 = pneg %p257
        %p472 = pneg %p281
        %p473 = pneg %p278
        %p474 = pneg %p302
        %p475 = pneg %p299
        %p476 = pneg %p328
        %p477 = pneg %p325
        %s478 = sand.u32 %s315, 1
        %s479 = scalar_lea.sflag [#allocation4], %s478
        %s480 = sand.u32 %s315, 1
        %s481 = smul.addr %s480, 64
        %s482 = scalar_lea.vmem [#allocation8], %s481
        %s483 = smul.u32 8, %s29
        %p484 = scmp.lt.s32.totalorder %s483, 15
        %s485 = scalar_select %p484, %s483, 15
        %s486 = smul.addr %s485, 8
        %s487 = scalar_lea.vmem %s0, %s486
        %s488 = smul.u32 8, %s29
        %s489 = smul.u32 8, %s29
        %v490 = vld [vmem:[%s487] sm:$0xff]
        %v491 = vld [vmem:[%s487 + $0x8] sm:$0xff]
        %v492 = vld [vmem:[%s487 + $0x10] sm:$0xff]
        %v493 = vld [vmem:[%s487 + $0x18] sm:$0xff]
        %v494 = vld [vmem:[%s487 + $0x20] sm:$0xff]
        %v495 = vld [vmem:[%s487 + $0x28] sm:$0xff]
        %v496 = vld [vmem:[%s487 + $0x30] sm:$0xff]
        %v497 = vld [vmem:[%s487 + $0x38] sm:$0xff]
        %v498 = vld [vmem:[#allocation2] sm:$0x1]
        %v499 = vld [vmem:[%s2] sm:$0x1]
        %vm500 = vcmask 261120
        %v501 = vsel %vm500, %v490, 0.0
        %502 = vadd.xlane.f32.xlu0 %v501
        %v503 = vpop.xlane.xlu0 %502
        %v504 = vsel %vm500, %v491, 0.0
        %505 = vadd.xlane.f32.xlu0 %v504
        %v506 = vpop.xlane.xlu0 %505
        %v507 = vsel %vm500, %v492, 0.0
        %508 = vadd.xlane.f32.xlu0 %v507
        %v509 = vpop.xlane.xlu0 %508
        %v510 = vsel %vm500, %v493, 0.0
        %511 = vadd.xlane.f32.xlu0 %v510
        %v512 = vpop.xlane.xlu0 %511
        %v513 = vsel %vm500, %v494, 0.0
        %514 = vadd.xlane.f32.xlu0 %v513
        %v515 = vpop.xlane.xlu0 %514
        %v516 = vsel %vm500, %v495, 0.0
        %517 = vadd.xlane.f32.xlu0 %v516
        %v518 = vpop.xlane.xlu0 %517
        %v519 = vsel %vm500, %v496, 0.0
        %520 = vadd.xlane.f32.xlu0 %v519
        %v521 = vpop.xlane.xlu0 %520
        %v522 = vsel %vm500, %v497, 0.0
        %523 = vadd.xlane.f32.xlu0 %v522
        %v524 = vpop.xlane.xlu0 %523
        %v525 = vrcp.pop 32.0
        %v526 = vmul.f32 32.0, %v525
        %v527 = vsub.f32 1.0, %v526
        %v528 = vmul.f32 %v525, %v527
        %v529 = vadd.f32 %v525, %v528
        %vm530 = vweird.f32 %v525
        %v531 = vsel %vm530, %v525, %v529
        %v532 = vmul.f32 %v503, %v531
        %v533 = vmul.f32 %v506, %v531
        %v534 = vmul.f32 %v509, %v531
        %v535 = vmul.f32 %v512, %v531
        %v536 = vmul.f32 %v515, %v531
        %v537 = vmul.f32 %v518, %v531
        %v538 = vmul.f32 %v521, %v531
        %v539 = vmul.f32 %v524, %v531
        %v540 = vsub.f32 %v490, %v532
        %v541 = vsub.f32 %v491, %v533
        %v542 = vsub.f32 %v492, %v534
        %v543 = vsub.f32 %v493, %v535
        %v544 = vsub.f32 %v494, %v536
        %v545 = vsub.f32 %v495, %v537
        %v546 = vsub.f32 %v496, %v538
        %v547 = vsub.f32 %v497, %v539
        %v548 = vmul.f32 %v540, %v540
        %v549 = vmul.f32 %v541, %v541
        %v550 = vmul.f32 %v542, %v542
        %v551 = vmul.f32 %v543, %v543
        %v552 = vmul.f32 %v544, %v544
        %v553 = vmul.f32 %v545, %v545
        %v554 = vmul.f32 %v546, %v546
        %v555 = vmul.f32 %v547, %v547
        %v556 = vsel %vm500, %v548, 0.0
        %557 = vadd.xlane.f32.xlu0 %v556
        %v558 = vpop.xlane.xlu0 %557
        %v559 = vsel %vm500, %v549, 0.0
        %560 = vadd.xlane.f32.xlu0 %v559
        %v561 = vpop.xlane.xlu0 %560
        %v562 = vsel %vm500, %v550, 0.0
        %563 = vadd.xlane.f32.xlu0 %v562
        %v564 = vpop.xlane.xlu0 %563
        %v565 = vsel %vm500, %v551, 0.0
        %566 = vadd.xlane.f32.xlu0 %v565
        %v567 = vpop.xlane.xlu0 %566
        %v568 = vsel %vm500, %v552, 0.0
        %569 = vadd.xlane.f32.xlu0 %v568
        %v570 = vpop.xlane.xlu0 %569
        %v571 = vsel %vm500, %v553, 0.0
        %572 = vadd.xlane.f32.xlu0 %v571
        %v573 = vpop.xlane.xlu0 %572
        %v574 = vsel %vm500, %v554, 0.0
        %575 = vadd.xlane.f32.xlu0 %v574
        %v576 = vpop.xlane.xlu0 %575
        %v577 = vsel %vm500, %v555, 0.0
        %578 = vadd.xlane.f32.xlu0 %v577
        %v579 = vpop.xlane.xlu0 %578
        %v580 = vmul.f32 %v558, %v531
        %v581 = vmul.f32 %v561, %v531
        %v582 = vmul.f32 %v564, %v531
        %v583 = vmul.f32 %v567, %v531
        %v584 = vmul.f32 %v570, %v531
        %v585 = vmul.f32 %v573, %v531
        %v586 = vmul.f32 %v576, %v531
        %v587 = vmul.f32 %v579, %v531
        %v588 = vadd.f32 %v580, 1e-05
        %v589 = vadd.f32 %v581, 1e-05
        %v590 = vadd.f32 %v582, 1e-05
        %v591 = vadd.f32 %v583, 1e-05
        %v592 = vadd.f32 %v584, 1e-05
        %v593 = vadd.f32 %v585, 1e-05
        %v594 = vadd.f32 %v586, 1e-05
        %v595 = vadd.f32 %v587, 1e-05
        %v596 = vrsqrt.pop %v588
        %v597 = vmul.f32 %v596, %v588
        %v598 = vmul.f32 %v597, %v596
        %v599 = vmul.f32 0.5, %v598
        %v600 = vsub.f32 1.5, %v599
        %v601 = vmul.f32 %v596, %v600
        %vm602 = vweird.f32 %v588
        %vm603 = vweird.f32 %v596
        %vm604 = vmor %vm602, %vm603
        %v605 = vsel %vm604, %v596, %v601
        %v606 = vrsqrt.pop %v589
        %v607 = vmul.f32 %v606, %v589
        %v608 = vmul.f32 %v607, %v606
        %v609 = vmul.f32 0.5, %v608
        %v610 = vsub.f32 1.5, %v609
        %v611 = vmul.f32 %v606, %v610
        %vm612 = vweird.f32 %v589
        %vm613 = vweird.f32 %v606
        %vm614 = vmor %vm612, %vm613
        %v615 = vsel %vm614, %v606, %v611
        %v616 = vrsqrt.pop %v590
        %v617 = vmul.f32 %v616, %v590
        %v618 = vmul.f32 %v617, %v616
        %v619 = vmul.f32 0.5, %v618
        %v620 = vsub.f32 1.5, %v619
        %v621 = vmul.f32 %v616, %v620
        %vm622 = vweird.f32 %v590
        %vm623 = vweird.f32 %v616
        %vm624 = vmor %vm622, %vm623
        %v625 = vsel %vm624, %v616, %v621
        %v626 = vrsqrt.pop %v591
        %v627 = vmul.f32 %v626, %v591
        %v628 = vmul.f32 %v627, %v626
        %v629 = vmul.f32 0.5, %v628
        %v630 = vsub.f32 1.5, %v629
        %v631 = vmul.f32 %v626, %v630
        %vm632 = vweird.f32 %v591
        %vm633 = vweird.f32 %v626
        %vm634 = vmor %vm632, %vm633
        %v635 = vsel %vm634, %v626, %v631
        %v636 = vrsqrt.pop %v592
        %v637 = vmul.f32 %v636, %v592
        %v638 = vmul.f32 %v637, %v636
        %v639 = vmul.f32 0.5, %v638
        %v640 = vsub.f32 1.5, %v639
        %v641 = vmul.f32 %v636, %v640
        %vm642 = vweird.f32 %v592
        %vm643 = vweird.f32 %v636
        %vm644 = vmor %vm642, %vm643
        %v645 = vsel %vm644, %v636, %v641
        %v646 = vrsqrt.pop %v593
        %v647 = vmul.f32 %v646, %v593
        %v648 = vmul.f32 %v647, %v646
        %v649 = vmul.f32 0.5, %v648
        %v650 = vsub.f32 1.5, %v649
        %v651 = vmul.f32 %v646, %v650
        %vm652 = vweird.f32 %v593
        %vm653 = vweird.f32 %v646
        %vm654 = vmor %vm652, %vm653
        %v655 = vsel %vm654, %v646, %v651
        %v656 = vrsqrt.pop %v594
        %v657 = vmul.f32 %v656, %v594
        %v658 = vmul.f32 %v657, %v656
        %v659 = vmul.f32 0.5, %v658
        %v660 = vsub.f32 1.5, %v659
        %v661 = vmul.f32 %v656, %v660
        %vm662 = vweird.f32 %v594
        %vm663 = vweird.f32 %v656
        %vm664 = vmor %vm662, %vm663
        %v665 = vsel %vm664, %v656, %v661
        %v666 = vrsqrt.pop %v595
        %v667 = vmul.f32 %v666, %v595
        %v668 = vmul.f32 %v667, %v666
        %v669 = vmul.f32 0.5, %v668
        %v670 = vsub.f32 1.5, %v669
        %v671 = vmul.f32 %v666, %v670
        %vm672 = vweird.f32 %v595
        %vm673 = vweird.f32 %v666
        %vm674 = vmor %vm672, %vm673
        %v675 = vsel %vm674, %v666, %v671
        %v676 = vmul.f32 %v540, %v605
        %v677 = vmul.f32 %v541, %v615
        %v678 = vmul.f32 %v542, %v625
        %v679 = vmul.f32 %v543, %v635
        %v680 = vmul.f32 %v544, %v645
        %v681 = vmul.f32 %v545, %v655
        %v682 = vmul.f32 %v546, %v665
        %v683 = vmul.f32 %v547, %v675
        %v685 = vperm.slane %v498, 0
        %v687 = vmul.f32 %v676, %v685
        %v688 = vmul.f32 %v677, %v685
        %v689 = vmul.f32 %v678, %v685
        %v690 = vmul.f32 %v679, %v685
        %v691 = vmul.f32 %v680, %v685
        %v692 = vmul.f32 %v681, %v685
        %v693 = vmul.f32 %v682, %v685
        %v694 = vmul.f32 %v683, %v685
        %v696 = vperm.slane %v499, 0
        %v698 = vadd.f32 %v687, %v696
        %v699 = vadd.f32 %v688, %v696
        %v700 = vadd.f32 %v689, %v696
        %v701 = vadd.f32 %v690, %v696
        %v702 = vadd.f32 %v691, %v696
        %v703 = vadd.f32 %v692, %v696
        %v704 = vadd.f32 %v693, %v696
        %v705 = vadd.f32 %v694, %v696
        %v706 = vld [vmem:[%s3] sm:$0xff]
        %v707 = vld [vmem:[%s3 + $0x8] sm:$0xff]
        %v708 = vld [vmem:[%s3 + $0x10] sm:$0xff]
        %v709 = vld [vmem:[%s3 + $0x18] sm:$0xff]
        %v710 = vld [vmem:[%s4] sm:$0x1]
        %v712 = vperm.slane %v710, 0
        %v715 = vsel %vm500, %v698, 0
        %v718 = vsel %vm500, %v699, 0
        %v721 = vsel %vm500, %v700, 0
        %v724 = vsel %vm500, %v701, 0
        %v727 = vsel %vm500, %v702, 0
        %v730 = vsel %vm500, %v703, 0
        %v733 = vsel %vm500, %v704, 0
        %v736 = vsel %vm500, %v705, 0
        %738 = vmatpush.msra.mxu0 0.0
        %739 = vmatpush.msra.mxu0 0.0
        %740 = vmatpush.msra.mxu0 0.0
        %741 = vmatpush.msra.mxu0 0.0
        %742 = vmatpush.msra.mxu0 0.0
        %743 = vmatpush.msra.mxu0 0.0
        %744 = vmatpush.msra.mxu0 0.0
        %745 = vmatpush.msra.mxu0 0.0
        %746 = vmatpush.msra.mxu0 0.0
        %747 = vmatpush.msra.mxu0 0.0
        %748 = vmatpush.msra.mxu0 0.0
        %749 = vmatpush.msra.mxu0 0.0
        %750 = vmatpush.msra.mxu0 %v709
        %751 = vmatpush.msra.mxu0 %v708
        %752 = vmatpush.msra.mxu0 %v707
        %753 = vmatpush.msra.mxu0 %v706
        %754 = vmatmul.f32.gmra.mxu0 %v715
        %v755 = vpop.f32.mrf.mxu0
        %v756 = vadd.f32 %v712, %v755
        %757 = vmatmul.f32.gmra.mxu0 %v718
        %v758 = vpop.f32.mrf.mxu0
        %v759 = vadd.f32 %v712, %v758
        %760 = vmatmul.f32.gmra.mxu0 %v721
        %v761 = vpop.f32.mrf.mxu0
        %v762 = vadd.f32 %v712, %v761
        %763 = vmatmul.f32.gmra.mxu0 %v724
        %v764 = vpop.f32.mrf.mxu0
        %v765 = vadd.f32 %v712, %v764
        %766 = vmatmul.f32.gmra.mxu0 %v727
        %v767 = vpop.f32.mrf.mxu0
        %v768 = vadd.f32 %v712, %v767
        %769 = vmatmul.f32.gmra.mxu0 %v730
        %v770 = vpop.f32.mrf.mxu0
        %v771 = vadd.f32 %v712, %v770
        %772 = vmatmul.f32.gmra.mxu0 %v733
        %v773 = vpop.f32.mrf.mxu0
        %v774 = vadd.f32 %v712, %v773
        %775 = vmatmul.f32.gmra.mxu0 %v736
        %v776 = vpop.f32.mrf.mxu0
        %v777 = vadd.f32 %v712, %v776
        %778 = vdwg.mxu0
        %v779 = vlaneseq
        %v780 = vshrl.u32 %v779, 7
        %v781 = vlaneseq
        %v782 = vand.u32 %v781, 127
        %vm783 = vcmp.le.s32.totalorder %v782, %v780
        %v784 = vsel %vm783, 0.0, -1e+30
        %v785 = vld [vmem:[#allocation5] sm:$0xff]
        %v786 = vld [vmem:[#allocation5 + $0x8] sm:$0xff]
        %v787 = vld [vmem:[#allocation5 + $0x10] sm:$0xff]
        %v788 = vld [vmem:[#allocation5 + $0x18] sm:$0xff]
        %790 = vrot.lane.b32.xlu0 %v756, 96
        %v791 = vpop.permute.xlu0 %790
        %vm792 = vcmask 64512
        %v793 = vsel %vm792, %v756, 0
        %v795 = vsel %vm792, %v791, 0
        %797 = vmatpush.xpose.msra.mxu0 0.0
        %798 = vmatpush.xpose.msra.mxu0 0.0
        %799 = vmatpush.xpose.msra.mxu0 0.0
        %800 = vmatpush.xpose.msra.mxu0 0.0
        %801 = vmatpush.xpose.msra.mxu0 0.0
        %802 = vmatpush.xpose.msra.mxu0 0.0
        %803 = vmatpush.xpose.msra.mxu0 0.0
        %804 = vmatpush.xpose.msra.mxu0 0.0
        %805 = vmatpush.xpose.msra.mxu0 0.0
        %806 = vmatpush.xpose.msra.mxu0 0.0
        %807 = vmatpush.xpose.msra.mxu0 0.0
        %808 = vmatpush.xpose.msra.mxu0 0.0
        %809 = vmatpush.xpose.msra.mxu0 0.0
        %810 = vmatpush.xpose.msra.mxu0 0.0
        %811 = vmatpush.xpose.msra.mxu0 0.0
        %812 = vmatpush.xpose.msra.mxu0 %v795
        %813 = vmatmul.f32.gmra.mxu0 %v793
        %v814 = vpop.f32.mrf.mxu0
        %v815 = vadd.f32 0.0, %v814
        %816 = vdwg.mxu0
        %818 = vrot.lane.b32.xlu0 %v759, 96
        %v819 = vpop.permute.xlu0 %818
        %v820 = vsel %vm792, %v759, 0
        %v822 = vsel %vm792, %v819, 0
        %824 = vmatpush.xpose.msra.mxu0 0.0
        %825 = vmatpush.xpose.msra.mxu0 0.0
        %826 = vmatpush.xpose.msra.mxu0 0.0
        %827 = vmatpush.xpose.msra.mxu0 0.0
        %828 = vmatpush.xpose.msra.mxu0 0.0
        %829 = vmatpush.xpose.msra.mxu0 0.0
        %830 = vmatpush.xpose.msra.mxu0 0.0
        %831 = vmatpush.xpose.msra.mxu0 0.0
        %832 = vmatpush.xpose.msra.mxu0 0.0
        %833 = vmatpush.xpose.msra.mxu0 0.0
        %834 = vmatpush.xpose.msra.mxu0 0.0
        %835 = vmatpush.xpose.msra.mxu0 0.0
        %836 = vmatpush.xpose.msra.mxu0 0.0
        %837 = vmatpush.xpose.msra.mxu0 0.0
        %838 = vmatpush.xpose.msra.mxu0 0.0
        %839 = vmatpush.xpose.msra.mxu0 %v822
        %840 = vmatmul.f32.gmra.mxu0 %v820
        %v841 = vpop.f32.mrf.mxu0
        %v842 = vadd.f32 0.0, %v841
        %843 = vdwg.mxu0
        %845 = vrot.lane.b32.xlu0 %v762, 96
        %v846 = vpop.permute.xlu0 %845
        %v847 = vsel %vm792, %v762, 0
        %v849 = vsel %vm792, %v846, 0
        %851 = vmatpush.xpose.msra.mxu0 0.0
        %852 = vmatpush.xpose.msra.mxu0 0.0
        %853 = vmatpush.xpose.msra.mxu0 0.0
        %854 = vmatpush.xpose.msra.mxu0 0.0
        %855 = vmatpush.xpose.msra.mxu0 0.0
        %856 = vmatpush.xpose.msra.mxu0 0.0
        %857 = vmatpush.xpose.msra.mxu0 0.0
        %858 = vmatpush.xpose.msra.mxu0 0.0
        %859 = vmatpush.xpose.msra.mxu0 0.0
        %860 = vmatpush.xpose.msra.mxu0 0.0
        %861 = vmatpush.xpose.msra.mxu0 0.0
        %862 = vmatpush.xpose.msra.mxu0 0.0
        %863 = vmatpush.xpose.msra.mxu0 0.0
        %864 = vmatpush.xpose.msra.mxu0 0.0
        %865 = vmatpush.xpose.msra.mxu0 0.0
        %866 = vmatpush.xpose.msra.mxu0 %v849
        %867 = vmatmul.f32.gmra.mxu0 %v847
        %v868 = vpop.f32.mrf.mxu0
        %v869 = vadd.f32 0.0, %v868
        %870 = vdwg.mxu0
        %872 = vrot.lane.b32.xlu0 %v765, 96
        %v873 = vpop.permute.xlu0 %872
        %v874 = vsel %vm792, %v765, 0
        %v876 = vsel %vm792, %v873, 0
        %878 = vmatpush.xpose.msra.mxu0 0.0
        %879 = vmatpush.xpose.msra.mxu0 0.0
        %880 = vmatpush.xpose.msra.mxu0 0.0
        %881 = vmatpush.xpose.msra.mxu0 0.0
        %882 = vmatpush.xpose.msra.mxu0 0.0
        %883 = vmatpush.xpose.msra.mxu0 0.0
        %884 = vmatpush.xpose.msra.mxu0 0.0
        %885 = vmatpush.xpose.msra.mxu0 0.0
        %886 = vmatpush.xpose.msra.mxu0 0.0
        %887 = vmatpush.xpose.msra.mxu0 0.0
        %888 = vmatpush.xpose.msra.mxu0 0.0
        %889 = vmatpush.xpose.msra.mxu0 0.0
        %890 = vmatpush.xpose.msra.mxu0 0.0
        %891 = vmatpush.xpose.msra.mxu0 0.0
        %892 = vmatpush.xpose.msra.mxu0 0.0
        %893 = vmatpush.xpose.msra.mxu0 %v876
        %894 = vmatmul.f32.gmra.mxu0 %v874
        %v895 = vpop.f32.mrf.mxu0
        %v896 = vadd.f32 0.0, %v895
        %897 = vdwg.mxu0
        %899 = vrot.lane.b32.xlu0 %v768, 96
        %v900 = vpop.permute.xlu0 %899
        %v901 = vsel %vm792, %v768, 0
        %v903 = vsel %vm792, %v900, 0
        %905 = vmatpush.xpose.msra.mxu0 0.0
        %906 = vmatpush.xpose.msra.mxu0 0.0
        %907 = vmatpush.xpose.msra.mxu0 0.0
        %908 = vmatpush.xpose.msra.mxu0 0.0
        %909 = vmatpush.xpose.msra.mxu0 0.0
        %910 = vmatpush.xpose.msra.mxu0 0.0
        %911 = vmatpush.xpose.msra.mxu0 0.0
        %912 = vmatpush.xpose.msra.mxu0 0.0
        %913 = vmatpush.xpose.msra.mxu0 0.0
        %914 = vmatpush.xpose.msra.mxu0 0.0
        %915 = vmatpush.xpose.msra.mxu0 0.0
        %916 = vmatpush.xpose.msra.mxu0 0.0
        %917 = vmatpush.xpose.msra.mxu0 0.0
        %918 = vmatpush.xpose.msra.mxu0 0.0
        %919 = vmatpush.xpose.msra.mxu0 0.0
        %920 = vmatpush.xpose.msra.mxu0 %v903
        %921 = vmatmul.f32.gmra.mxu0 %v901
        %v922 = vpop.f32.mrf.mxu0
        %v923 = vadd.f32 0.0, %v922
        %924 = vdwg.mxu0
        %926 = vrot.lane.b32.xlu0 %v771, 96
        %v927 = vpop.permute.xlu0 %926
        %v928 = vsel %vm792, %v771, 0
        %v930 = vsel %vm792, %v927, 0
        %932 = vmatpush.xpose.msra.mxu0 0.0
        %933 = vmatpush.xpose.msra.mxu0 0.0
        %934 = vmatpush.xpose.msra.mxu0 0.0
        %935 = vmatpush.xpose.msra.mxu0 0.0
        %936 = vmatpush.xpose.msra.mxu0 0.0
        %937 = vmatpush.xpose.msra.mxu0 0.0
        %938 = vmatpush.xpose.msra.mxu0 0.0
        %939 = vmatpush.xpose.msra.mxu0 0.0
        %940 = vmatpush.xpose.msra.mxu0 0.0
        %941 = vmatpush.xpose.msra.mxu0 0.0
        %942 = vmatpush.xpose.msra.mxu0 0.0
        %943 = vmatpush.xpose.msra.mxu0 0.0
        %944 = vmatpush.xpose.msra.mxu0 0.0
        %945 = vmatpush.xpose.msra.mxu0 0.0
        %946 = vmatpush.xpose.msra.mxu0 0.0
        %947 = vmatpush.xpose.msra.mxu0 %v930
        %948 = vmatmul.f32.gmra.mxu0 %v928
        %v949 = vpop.f32.mrf.mxu0
        %v950 = vadd.f32 0.0, %v949
        %951 = vdwg.mxu0
        %953 = vrot.lane.b32.xlu0 %v774, 96
        %v954 = vpop.permute.xlu0 %953
        %v955 = vsel %vm792, %v774, 0
        %v957 = vsel %vm792, %v954, 0
        %959 = vmatpush.xpose.msra.mxu0 0.0
        %960 = vmatpush.xpose.msra.mxu0 0.0
        %961 = vmatpush.xpose.msra.mxu0 0.0
        %962 = vmatpush.xpose.msra.mxu0 0.0
        %963 = vmatpush.xpose.msra.mxu0 0.0
        %964 = vmatpush.xpose.msra.mxu0 0.0
        %965 = vmatpush.xpose.msra.mxu0 0.0
        %966 = vmatpush.xpose.msra.mxu0 0.0
        %967 = vmatpush.xpose.msra.mxu0 0.0
        %968 = vmatpush.xpose.msra.mxu0 0.0
        %969 = vmatpush.xpose.msra.mxu0 0.0
        %970 = vmatpush.xpose.msra.mxu0 0.0
        %971 = vmatpush.xpose.msra.mxu0 0.0
        %972 = vmatpush.xpose.msra.mxu0 0.0
        %973 = vmatpush.xpose.msra.mxu0 0.0
        %974 = vmatpush.xpose.msra.mxu0 %v957
        %975 = vmatmul.f32.gmra.mxu0 %v955
        %v976 = vpop.f32.mrf.mxu0
        %v977 = vadd.f32 0.0, %v976
        %978 = vdwg.mxu0
        %980 = vrot.lane.b32.xlu0 %v777, 96
        %v981 = vpop.permute.xlu0 %980
        %v982 = vsel %vm792, %v777, 0
        %v984 = vsel %vm792, %v981, 0
        %986 = vmatpush.xpose.msra.mxu0 0.0
        %987 = vmatpush.xpose.msra.mxu0 0.0
        %988 = vmatpush.xpose.msra.mxu0 0.0
        %989 = vmatpush.xpose.msra.mxu0 0.0
        %990 = vmatpush.xpose.msra.mxu0 0.0
        %991 = vmatpush.xpose.msra.mxu0 0.0
        %992 = vmatpush.xpose.msra.mxu0 0.0
        %993 = vmatpush.xpose.msra.mxu0 0.0
        %994 = vmatpush.xpose.msra.mxu0 0.0
        %995 = vmatpush.xpose.msra.mxu0 0.0
        %996 = vmatpush.xpose.msra.mxu0 0.0
        %997 = vmatpush.xpose.msra.mxu0 0.0
        %998 = vmatpush.xpose.msra.mxu0 0.0
        %999 = vmatpush.xpose.msra.mxu0 0.0
        %1000 = vmatpush.xpose.msra.mxu0 0.0
        %1001 = vmatpush.xpose.msra.mxu0 %v984
        %1002 = vmatmul.f32.gmra.mxu0 %v982
        %v1003 = vpop.f32.mrf.mxu0
        %v1004 = vadd.f32 0.0, %v1003
        %1005 = vdwg.mxu0
        %v1006 = vmul.f32 %v815, 0.35355338
        %v1007 = vmul.f32 %v842, 0.35355338
        %v1008 = vmul.f32 %v869, 0.35355338
        %v1009 = vmul.f32 %v896, 0.35355338
        %v1010 = vmul.f32 %v923, 0.35355338
        %v1011 = vmul.f32 %v950, 0.35355338
        %v1012 = vmul.f32 %v977, 0.35355338
        %v1013 = vmul.f32 %v1004, 0.35355338
        %v1014 = vadd.f32 %v1006, %v784
        %v1015 = vadd.f32 %v1007, %v784
        %v1016 = vadd.f32 %v1008, %v784
        %v1017 = vadd.f32 %v1009, %v784
        %v1018 = vadd.f32 %v1010, %v784
        %v1019 = vadd.f32 %v1011, %v784
        %v1020 = vadd.f32 %v1012, %v784
        %v1021 = vadd.f32 %v1013, %v784
        %v1022 = vsel %vm792, %v1014, -inf
        %1023 = vmax.xlane.f32.xlu0 %v1022
        %v1024 = vpop.xlane.xlu0 %1023
        %v1025 = vsel %vm792, %v1015, -inf
        %1026 = vmax.xlane.f32.xlu0 %v1025
        %v1027 = vpop.xlane.xlu0 %1026
        %v1028 = vsel %vm792, %v1016, -inf
        %1029 = vmax.xlane.f32.xlu0 %v1028
        %v1030 = vpop.xlane.xlu0 %1029
        %v1031 = vsel %vm792, %v1017, -inf
        %1032 = vmax.xlane.f32.xlu0 %v1031
        %v1033 = vpop.xlane.xlu0 %1032
        %v1034 = vsel %vm792, %v1018, -inf
        %1035 = vmax.xlane.f32.xlu0 %v1034
        %v1036 = vpop.xlane.xlu0 %1035
        %v1037 = vsel %vm792, %v1019, -inf
        %1038 = vmax.xlane.f32.xlu0 %v1037
        %v1039 = vpop.xlane.xlu0 %1038
        %v1040 = vsel %vm792, %v1020, -inf
        %1041 = vmax.xlane.f32.xlu0 %v1040
        %v1042 = vpop.xlane.xlu0 %1041
        %v1043 = vsel %vm792, %v1021, -inf
        %1044 = vmax.xlane.f32.xlu0 %v1043
        %v1045 = vpop.xlane.xlu0 %1044
        %v1046 = vsub.f32 %v1014, %v1024
        %v1047 = vsub.f32 %v1015, %v1027
        %v1048 = vsub.f32 %v1016, %v1030
        %v1049 = vsub.f32 %v1017, %v1033
        %v1050 = vsub.f32 %v1018, %v1036
        %v1051 = vsub.f32 %v1019, %v1039
        %v1052 = vsub.f32 %v1020, %v1042
        %v1053 = vsub.f32 %v1021, %v1045
        %v1054 = vmul.f32 %v1046, 1.442695
        %v1055 = vpow.pop %v1054
        %v1056 = vmul.f32 %v1047, 1.442695
        %v1057 = vpow.pop %v1056
        %v1058 = vmul.f32 %v1048, 1.442695
        %v1059 = vpow.pop %v1058
        %v1060 = vmul.f32 %v1049, 1.442695
        %v1061 = vpow.pop %v1060
        %v1062 = vmul.f32 %v1050, 1.442695
        %v1063 = vpow.pop %v1062
        %v1064 = vmul.f32 %v1051, 1.442695
        %v1065 = vpow.pop %v1064
        %v1066 = vmul.f32 %v1052, 1.442695
        %v1067 = vpow.pop %v1066
        %v1068 = vmul.f32 %v1053, 1.442695
        %v1069 = vpow.pop %v1068
        %v1070 = vsel %vm792, %v1055, 0.0
        %1071 = vadd.xlane.f32.xlu0 %v1070
        %v1072 = vpop.xlane.xlu0 %1071
        %v1073 = vsel %vm792, %v1057, 0.0
        %1074 = vadd.xlane.f32.xlu0 %v1073
        %v1075 = vpop.xlane.xlu0 %1074
        %v1076 = vsel %vm792, %v1059, 0.0
        %1077 = vadd.xlane.f32.xlu0 %v1076
        %v1078 = vpop.xlane.xlu0 %1077
        %v1079 = vsel %vm792, %v1061, 0.0
        %1080 = vadd.xlane.f32.xlu0 %v1079
        %v1081 = vpop.xlane.xlu0 %1080
        %v1082 = vsel %vm792, %v1063, 0.0
        %1083 = vadd.xlane.f32.xlu0 %v1082
        %v1084 = vpop.xlane.xlu0 %1083
        %v1085 = vsel %vm792, %v1065, 0.0
        %1086 = vadd.xlane.f32.xlu0 %v1085
        %v1087 = vpop.xlane.xlu0 %1086
        %v1088 = vsel %vm792, %v1067, 0.0
        %1089 = vadd.xlane.f32.xlu0 %v1088
        %v1090 = vpop.xlane.xlu0 %1089
        %v1091 = vsel %vm792, %v1069, 0.0
        %1092 = vadd.xlane.f32.xlu0 %v1091
        %v1093 = vpop.xlane.xlu0 %1092
        %v1094 = vrcp.pop %v1072
        %v1095 = vrcp.pop %v1075
        %v1096 = vrcp.pop %v1078
        %v1097 = vrcp.pop %v1081
        %v1098 = vrcp.pop %v1084
        %v1099 = vrcp.pop %v1087
        %v1100 = vrcp.pop %v1090
        %v1101 = vrcp.pop %v1093
        %v1102 = vmul.f32 %v1055, %v1094
        %v1103 = vmul.f32 %v1057, %v1095
        %v1104 = vmul.f32 %v1059, %v1096
        %v1105 = vmul.f32 %v1061, %v1097
        %v1106 = vmul.f32 %v1063, %v1098
        %v1107 = vmul.f32 %v1065, %v1099
        %v1108 = vmul.f32 %v1067, %v1100
        %v1109 = vmul.f32 %v1069, %v1101
        %v1111 = vsel %vm792, %v1102, 0
        %1113 = vmatpush.msra.mxu0 0.0
        %1114 = vmatpush.msra.mxu0 0.0
        %1115 = vmatpush.msra.mxu0 0.0
        %1116 = vmatpush.msra.mxu0 0.0
        %1117 = vmatpush.msra.mxu0 0.0
        %1118 = vmatpush.msra.mxu0 0.0
        %1119 = vmatpush.msra.mxu0 0.0
        %1120 = vmatpush.msra.mxu0 0.0
        %1121 = vmatpush.msra.mxu0 0.0
        %1122 = vmatpush.msra.mxu0 0.0
        %1123 = vmatpush.msra.mxu0 0.0
        %1124 = vmatpush.msra.mxu0 0.0
        %1125 = vmatpush.msra.mxu0 0.0
        %1126 = vmatpush.msra.mxu0 0.0
        %1127 = vmatpush.msra.mxu0 0.0
        %1128 = vmatpush.msra.mxu0 %v756
        %1129 = vmatmul.f32.gmra.mxu0 %v1111
        %v1130 = vpop.f32.mrf.mxu0
        %v1131 = vadd.f32 0.0, %v1130
        %1132 = vdwg.mxu0
        %v1134 = vsel %vm792, %v1103, 0
        %1136 = vmatpush.msra.mxu0 0.0
        %1137 = vmatpush.msra.mxu0 0.0
        %1138 = vmatpush.msra.mxu0 0.0
        %1139 = vmatpush.msra.mxu0 0.0
        %1140 = vmatpush.msra.mxu0 0.0
        %1141 = vmatpush.msra.mxu0 0.0
        %1142 = vmatpush.msra.mxu0 0.0
        %1143 = vmatpush.msra.mxu0 0.0
        %1144 = vmatpush.msra.mxu0 0.0
        %1145 = vmatpush.msra.mxu0 0.0
        %1146 = vmatpush.msra.mxu0 0.0
        %1147 = vmatpush.msra.mxu0 0.0
        %1148 = vmatpush.msra.mxu0 0.0
        %1149 = vmatpush.msra.mxu0 0.0
        %1150 = vmatpush.msra.mxu0 0.0
        %1151 = vmatpush.msra.mxu0 %v759
        %1152 = vmatmul.f32.gmra.mxu0 %v1134
        %v1153 = vpop.f32.mrf.mxu0
        %v1154 = vadd.f32 0.0, %v1153
        %1155 = vdwg.mxu0
        %v1157 = vsel %vm792, %v1104, 0
        %1159 = vmatpush.msra.mxu0 0.0
        %1160 = vmatpush.msra.mxu0 0.0
        %1161 = vmatpush.msra.mxu0 0.0
        %1162 = vmatpush.msra.mxu0 0.0
        %1163 = vmatpush.msra.mxu0 0.0
        %1164 = vmatpush.msra.mxu0 0.0
        %1165 = vmatpush.msra.mxu0 0.0
        %1166 = vmatpush.msra.mxu0 0.0
        %1167 = vmatpush.msra.mxu0 0.0
        %1168 = vmatpush.msra.mxu0 0.0
        %1169 = vmatpush.msra.mxu0 0.0
        %1170 = vmatpush.msra.mxu0 0.0
        %1171 = vmatpush.msra.mxu0 0.0
        %1172 = vmatpush.msra.mxu0 0.0
        %1173 = vmatpush.msra.mxu0 0.0
        %1174 = vmatpush.msra.mxu0 %v762
        %1175 = vmatmul.f32.gmra.mxu0 %v1157
        %v1176 = vpop.f32.mrf.mxu0
        %v1177 = vadd.f32 0.0, %v1176
        %1178 = vdwg.mxu0
        %v1180 = vsel %vm792, %v1105, 0
        %1182 = vmatpush.msra.mxu0 0.0
        %1183 = vmatpush.msra.mxu0 0.0
        %1184 = vmatpush.msra.mxu0 0.0
        %1185 = vmatpush.msra.mxu0 0.0
        %1186 = vmatpush.msra.mxu0 0.0
        %1187 = vmatpush.msra.mxu0 0.0
        %1188 = vmatpush.msra.mxu0 0.0
        %1189 = vmatpush.msra.mxu0 0.0
        %1190 = vmatpush.msra.mxu0 0.0
        %1191 = vmatpush.msra.mxu0 0.0
        %1192 = vmatpush.msra.mxu0 0.0
        %1193 = vmatpush.msra.mxu0 0.0
        %1194 = vmatpush.msra.mxu0 0.0
        %1195 = vmatpush.msra.mxu0 0.0
        %1196 = vmatpush.msra.mxu0 0.0
        %1197 = vmatpush.msra.mxu0 %v765
        %1198 = vmatmul.f32.gmra.mxu0 %v1180
        %v1199 = vpop.f32.mrf.mxu0
        %v1200 = vadd.f32 0.0, %v1199
        %1201 = vdwg.mxu0
        %v1203 = vsel %vm792, %v1106, 0
        %1205 = vmatpush.msra.mxu0 0.0
        %1206 = vmatpush.msra.mxu0 0.0
        %1207 = vmatpush.msra.mxu0 0.0
        %1208 = vmatpush.msra.mxu0 0.0
        %1209 = vmatpush.msra.mxu0 0.0
        %1210 = vmatpush.msra.mxu0 0.0
        %1211 = vmatpush.msra.mxu0 0.0
        %1212 = vmatpush.msra.mxu0 0.0
        %1213 = vmatpush.msra.mxu0 0.0
        %1214 = vmatpush.msra.mxu0 0.0
        %1215 = vmatpush.msra.mxu0 0.0
        %1216 = vmatpush.msra.mxu0 0.0
        %1217 = vmatpush.msra.mxu0 0.0
        %1218 = vmatpush.msra.mxu0 0.0
        %1219 = vmatpush.msra.mxu0 0.0
        %1220 = vmatpush.msra.mxu0 %v768
        %1221 = vmatmul.f32.gmra.mxu0 %v1203
        %v1222 = vpop.f32.mrf.mxu0
        %v1223 = vadd.f32 0.0, %v1222
        %1224 = vdwg.mxu0
        %v1226 = vsel %vm792, %v1107, 0
        %1228 = vmatpush.msra.mxu0 0.0
        %1229 = vmatpush.msra.mxu0 0.0
        %1230 = vmatpush.msra.mxu0 0.0
        %1231 = vmatpush.msra.mxu0 0.0
        %1232 = vmatpush.msra.mxu0 0.0
        %1233 = vmatpush.msra.mxu0 0.0
        %1234 = vmatpush.msra.mxu0 0.0
        %1235 = vmatpush.msra.mxu0 0.0
        %1236 = vmatpush.msra.mxu0 0.0
        %1237 = vmatpush.msra.mxu0 0.0
        %1238 = vmatpush.msra.mxu0 0.0
        %1239 = vmatpush.msra.mxu0 0.0
        %1240 = vmatpush.msra.mxu0 0.0
        %1241 = vmatpush.msra.mxu0 0.0
        %1242 = vmatpush.msra.mxu0 0.0
        %1243 = vmatpush.msra.mxu0 %v771
        %1244 = vmatmul.f32.gmra.mxu0 %v1226
        %v1245 = vpop.f32.mrf.mxu0
        %v1246 = vadd.f32 0.0, %v1245
        %1247 = vdwg.mxu0
        %v1249 = vsel %vm792, %v1108, 0
        %1251 = vmatpush.msra.mxu0 0.0
        %1252 = vmatpush.msra.mxu0 0.0
        %1253 = vmatpush.msra.mxu0 0.0
        %1254 = vmatpush.msra.mxu0 0.0
        %1255 = vmatpush.msra.mxu0 0.0
        %1256 = vmatpush.msra.mxu0 0.0
        %1257 = vmatpush.msra.mxu0 0.0
        %1258 = vmatpush.msra.mxu0 0.0
        %1259 = vmatpush.msra.mxu0 0.0
        %1260 = vmatpush.msra.mxu0 0.0
        %1261 = vmatpush.msra.mxu0 0.0
        %1262 = vmatpush.msra.mxu0 0.0
        %1263 = vmatpush.msra.mxu0 0.0
        %1264 = vmatpush.msra.mxu0 0.0
        %1265 = vmatpush.msra.mxu0 0.0
        %1266 = vmatpush.msra.mxu0 %v774
        %1267 = vmatmul.f32.gmra.mxu0 %v1249
        %v1268 = vpop.f32.mrf.mxu0
        %v1269 = vadd.f32 0.0, %v1268
        %1270 = vdwg.mxu0
        %v1272 = vsel %vm792, %v1109, 0
        %1274 = vmatpush.msra.mxu0 0.0
        %1275 = vmatpush.msra.mxu0 0.0
        %1276 = vmatpush.msra.mxu0 0.0
        %1277 = vmatpush.msra.mxu0 0.0
        %1278 = vmatpush.msra.mxu0 0.0
        %1279 = vmatpush.msra.mxu0 0.0
        %1280 = vmatpush.msra.mxu0 0.0
        %1281 = vmatpush.msra.mxu0 0.0
        %1282 = vmatpush.msra.mxu0 0.0
        %1283 = vmatpush.msra.mxu0 0.0
        %1284 = vmatpush.msra.mxu0 0.0
        %1285 = vmatpush.msra.mxu0 0.0
        %1286 = vmatpush.msra.mxu0 0.0
        %1287 = vmatpush.msra.mxu0 0.0
        %1288 = vmatpush.msra.mxu0 0.0
        %1289 = vmatpush.msra.mxu0 %v777
        %1290 = vmatmul.f32.gmra.mxu0 %v1272
        %v1291 = vpop.f32.mrf.mxu0
        %v1292 = vadd.f32 0.0, %v1291
        %1293 = vdwg.mxu0
        %1294 = vrot.lane.b32.xlu0 %v756, 120
        %v1295 = vpop.permute.xlu0 %1294
        %1296 = vrot.lane.b32.xlu0 %v756, 88
        %v1297 = vpop.permute.xlu0 %1296
        %v1298 = vsel %vm792, %v1295, 0
        %v1300 = vsel %vm792, %v1297, 0
        %1302 = vmatpush.xpose.msra.mxu0 0.0
        %1303 = vmatpush.xpose.msra.mxu0 0.0
        %1304 = vmatpush.xpose.msra.mxu0 0.0
        %1305 = vmatpush.xpose.msra.mxu0 0.0
        %1306 = vmatpush.xpose.msra.mxu0 0.0
        %1307 = vmatpush.xpose.msra.mxu0 0.0
        %1308 = vmatpush.xpose.msra.mxu0 0.0
        %1309 = vmatpush.xpose.msra.mxu0 0.0
        %1310 = vmatpush.xpose.msra.mxu0 0.0
        %1311 = vmatpush.xpose.msra.mxu0 0.0
        %1312 = vmatpush.xpose.msra.mxu0 0.0
        %1313 = vmatpush.xpose.msra.mxu0 0.0
        %1314 = vmatpush.xpose.msra.mxu0 0.0
        %1315 = vmatpush.xpose.msra.mxu0 0.0
        %1316 = vmatpush.xpose.msra.mxu0 0.0
        %1317 = vmatpush.xpose.msra.mxu0 %v1300
        %1318 = vmatmul.f32.gmra.mxu0 %v1298
        %v1319 = vpop.f32.mrf.mxu0
        %v1320 = vadd.f32 0.0, %v1319
        %1321 = vdwg.mxu0
        %1322 = vrot.lane.b32.xlu0 %v759, 120
        %v1323 = vpop.permute.xlu0 %1322
        %1324 = vrot.lane.b32.xlu0 %v759, 88
        %v1325 = vpop.permute.xlu0 %1324
        %v1326 = vsel %vm792, %v1323, 0
        %v1328 = vsel %vm792, %v1325, 0
        %1330 = vmatpush.xpose.msra.mxu0 0.0
        %1331 = vmatpush.xpose.msra.mxu0 0.0
        %1332 = vmatpush.xpose.msra.mxu0 0.0
        %1333 = vmatpush.xpose.msra.mxu0 0.0
        %1334 = vmatpush.xpose.msra.mxu0 0.0
        %1335 = vmatpush.xpose.msra.mxu0 0.0
        %1336 = vmatpush.xpose.msra.mxu0 0.0
        %1337 = vmatpush.xpose.msra.mxu0 0.0
        %1338 = vmatpush.xpose.msra.mxu0 0.0
        %1339 = vmatpush.xpose.msra.mxu0 0.0
        %1340 = vmatpush.xpose.msra.mxu0 0.0
        %1341 = vmatpush.xpose.msra.mxu0 0.0
        %1342 = vmatpush.xpose.msra.mxu0 0.0
        %1343 = vmatpush.xpose.msra.mxu0 0.0
        %1344 = vmatpush.xpose.msra.mxu0 0.0
        %1345 = vmatpush.xpose.msra.mxu0 %v1328
        %1346 = vmatmul.f32.gmra.mxu0 %v1326
        %v1347 = vpop.f32.mrf.mxu0
        %v1348 = vadd.f32 0.0, %v1347
        %1349 = vdwg.mxu0
        %1350 = vrot.lane.b32.xlu0 %v762, 120
        %v1351 = vpop.permute.xlu0 %1350
        %1352 = vrot.lane.b32.xlu0 %v762, 88
        %v1353 = vpop.permute.xlu0 %1352
        %v1354 = vsel %vm792, %v1351, 0
        %v1356 = vsel %vm792, %v1353, 0
        %1358 = vmatpush.xpose.msra.mxu0 0.0
        %1359 = vmatpush.xpose.msra.mxu0 0.0
        %1360 = vmatpush.xpose.msra.mxu0 0.0
        %1361 = vmatpush.xpose.msra.mxu0 0.0
        %1362 = vmatpush.xpose.msra.mxu0 0.0
        %1363 = vmatpush.xpose.msra.mxu0 0.0
        %1364 = vmatpush.xpose.msra.mxu0 0.0
        %1365 = vmatpush.xpose.msra.mxu0 0.0
        %1366 = vmatpush.xpose.msra.mxu0 0.0
        %1367 = vmatpush.xpose.msra.mxu0 0.0
        %1368 = vmatpush.xpose.msra.mxu0 0.0
        %1369 = vmatpush.xpose.msra.mxu0 0.0
        %1370 = vmatpush.xpose.msra.mxu0 0.0
        %1371 = vmatpush.xpose.msra.mxu0 0.0
        %1372 = vmatpush.xpose.msra.mxu0 0.0
        %1373 = vmatpush.xpose.msra.mxu0 %v1356
        %1374 = vmatmul.f32.gmra.mxu0 %v1354
        %v1375 = vpop.f32.mrf.mxu0
        %v1376 = vadd.f32 0.0, %v1375
        %1377 = vdwg.mxu0
        %1378 = vrot.lane.b32.xlu0 %v765, 120
        %v1379 = vpop.permute.xlu0 %1378
        %1380 = vrot.lane.b32.xlu0 %v765, 88
        %v1381 = vpop.permute.xlu0 %1380
        %v1382 = vsel %vm792, %v1379, 0
        %v1384 = vsel %vm792, %v1381, 0
        %1386 = vmatpush.xpose.msra.mxu0 0.0
        %1387 = vmatpush.xpose.msra.mxu0 0.0
        %1388 = vmatpush.xpose.msra.mxu0 0.0
        %1389 = vmatpush.xpose.msra.mxu0 0.0
        %1390 = vmatpush.xpose.msra.mxu0 0.0
        %1391 = vmatpush.xpose.msra.mxu0 0.0
        %1392 = vmatpush.xpose.msra.mxu0 0.0
        %1393 = vmatpush.xpose.msra.mxu0 0.0
        %1394 = vmatpush.xpose.msra.mxu0 0.0
        %1395 = vmatpush.xpose.msra.mxu0 0.0
        %1396 = vmatpush.xpose.msra.mxu0 0.0
        %1397 = vmatpush.xpose.msra.mxu0 0.0
        %1398 = vmatpush.xpose.msra.mxu0 0.0
        %1399 = vmatpush.xpose.msra.mxu0 0.0
        %1400 = vmatpush.xpose.msra.mxu0 0.0
        %1401 = vmatpush.xpose.msra.mxu0 %v1384
        %1402 = vmatmul.f32.gmra.mxu0 %v1382
        %v1403 = vpop.f32.mrf.mxu0
        %v1404 = vadd.f32 0.0, %v1403
        %1405 = vdwg.mxu0
        %1406 = vrot.lane.b32.xlu0 %v768, 120
        %v1407 = vpop.permute.xlu0 %1406
        %1408 = vrot.lane.b32.xlu0 %v768, 88
        %v1409 = vpop.permute.xlu0 %1408
        %v1410 = vsel %vm792, %v1407, 0
        %v1412 = vsel %vm792, %v1409, 0
        %1414 = vmatpush.xpose.msra.mxu0 0.0
        %1415 = vmatpush.xpose.msra.mxu0 0.0
        %1416 = vmatpush.xpose.msra.mxu0 0.0
        %1417 = vmatpush.xpose.msra.mxu0 0.0
        %1418 = vmatpush.xpose.msra.mxu0 0.0
        %1419 = vmatpush.xpose.msra.mxu0 0.0
        %1420 = vmatpush.xpose.msra.mxu0 0.0
        %1421 = vmatpush.xpose.msra.mxu0 0.0
        %1422 = vmatpush.xpose.msra.mxu0 0.0
        %1423 = vmatpush.xpose.msra.mxu0 0.0
        %1424 = vmatpush.xpose.msra.mxu0 0.0
        %1425 = vmatpush.xpose.msra.mxu0 0.0
        %1426 = vmatpush.xpose.msra.mxu0 0.0
        %1427 = vmatpush.xpose.msra.mxu0 0.0
        %1428 = vmatpush.xpose.msra.mxu0 0.0
        %1429 = vmatpush.xpose.msra.mxu0 %v1412
        %1430 = vmatmul.f32.gmra.mxu0 %v1410
        %v1431 = vpop.f32.mrf.mxu0
        %v1432 = vadd.f32 0.0, %v1431
        %1433 = vdwg.mxu0
        %1434 = vrot.lane.b32.xlu0 %v771, 120
        %v1435 = vpop.permute.xlu0 %1434
        %1436 = vrot.lane.b32.xlu0 %v771, 88
        %v1437 = vpop.permute.xlu0 %1436
        %v1438 = vsel %vm792, %v1435, 0
        %v1440 = vsel %vm792, %v1437, 0
        %1442 = vmatpush.xpose.msra.mxu0 0.0
        %1443 = vmatpush.xpose.msra.mxu0 0.0
        %1444 = vmatpush.xpose.msra.mxu0 0.0
        %1445 = vmatpush.xpose.msra.mxu0 0.0
        %1446 = vmatpush.xpose.msra.mxu0 0.0
        %1447 = vmatpush.xpose.msra.mxu0 0.0
        %1448 = vmatpush.xpose.msra.mxu0 0.0
        %1449 = vmatpush.xpose.msra.mxu0 0.0
        %1450 = vmatpush.xpose.msra.mxu0 0.0
        %1451 = vmatpush.xpose.msra.mxu0 0.0
        %1452 = vmatpush.xpose.msra.mxu0 0.0
        %1453 = vmatpush.xpose.msra.mxu0 0.0
        %1454 = vmatpush.xpose.msra.mxu0 0.0
        %1455 = vmatpush.xpose.msra.mxu0 0.0
        %1456 = vmatpush.xpose.msra.mxu0 0.0
        %1457 = vmatpush.xpose.msra.mxu0 %v1440
        %1458 = vmatmul.f32.gmra.mxu0 %v1438
        %v1459 = vpop.f32.mrf.mxu0
        %v1460 = vadd.f32 0.0, %v1459
        %1461 = vdwg.mxu0
        %1462 = vrot.lane.b32.xlu0 %v774, 120
        %v1463 = vpop.permute.xlu0 %1462
        %1464 = vrot.lane.b32.xlu0 %v774, 88
        %v1465 = vpop.permute.xlu0 %1464
        %v1466 = vsel %vm792, %v1463, 0
        %v1468 = vsel %vm792, %v1465, 0
        %1470 = vmatpush.xpose.msra.mxu0 0.0
        %1471 = vmatpush.xpose.msra.mxu0 0.0
        %1472 = vmatpush.xpose.msra.mxu0 0.0
        %1473 = vmatpush.xpose.msra.mxu0 0.0
        %1474 = vmatpush.xpose.msra.mxu0 0.0
        %1475 = vmatpush.xpose.msra.mxu0 0.0
        %1476 = vmatpush.xpose.msra.mxu0 0.0
        %1477 = vmatpush.xpose.msra.mxu0 0.0
        %1478 = vmatpush.xpose.msra.mxu0 0.0
        %1479 = vmatpush.xpose.msra.mxu0 0.0
        %1480 = vmatpush.xpose.msra.mxu0 0.0
        %1481 = vmatpush.xpose.msra.mxu0 0.0
        %1482 = vmatpush.xpose.msra.mxu0 0.0
        %1483 = vmatpush.xpose.msra.mxu0 0.0
        %1484 = vmatpush.xpose.msra.mxu0 0.0
        %1485 = vmatpush.xpose.msra.mxu0 %v1468
        %1486 = vmatmul.f32.gmra.mxu0 %v1466
        %v1487 = vpop.f32.mrf.mxu0
        %v1488 = vadd.f32 0.0, %v1487
        %1489 = vdwg.mxu0
        %1490 = vrot.lane.b32.xlu0 %v777, 120
        %v1491 = vpop.permute.xlu0 %1490
        %1492 = vrot.lane.b32.xlu0 %v777, 88
        %v1493 = vpop.permute.xlu0 %1492
        %v1494 = vsel %vm792, %v1491, 0
        %v1496 = vsel %vm792, %v1493, 0
        %1498 = vmatpush.xpose.msra.mxu0 0.0
        %1499 = vmatpush.xpose.msra.mxu0 0.0
        %1500 = vmatpush.xpose.msra.mxu0 0.0
        %1501 = vmatpush.xpose.msra.mxu0 0.0
        %1502 = vmatpush.xpose.msra.mxu0 0.0
        %1503 = vmatpush.xpose.msra.mxu0 0.0
        %1504 = vmatpush.xpose.msra.mxu0 0.0
        %1505 = vmatpush.xpose.msra.mxu0 0.0
        %1506 = vmatpush.xpose.msra.mxu0 0.0
        %1507 = vmatpush.xpose.msra.mxu0 0.0
        %1508 = vmatpush.xpose.msra.mxu0 0.0
        %1509 = vmatpush.xpose.msra.mxu0 0.0
        %1510 = vmatpush.xpose.msra.mxu0 0.0
        %1511 = vmatpush.xpose.msra.mxu0 0.0
        %1512 = vmatpush.xpose.msra.mxu0 0.0
        %1513 = vmatpush.xpose.msra.mxu0 %v1496
        %1514 = vmatmul.f32.gmra.mxu0 %v1494
        %v1515 = vpop.f32.mrf.mxu0
        %v1516 = vadd.f32 0.0, %v1515
        %1517 = vdwg.mxu0
        %v1518 = vmul.f32 %v1320, 0.35355338
        %v1519 = vmul.f32 %v1348, 0.35355338
        %v1520 = vmul.f32 %v1376, 0.35355338
        %v1521 = vmul.f32 %v1404, 0.35355338
        %v1522 = vmul.f32 %v1432, 0.35355338
        %v1523 = vmul.f32 %v1460, 0.35355338
        %v1524 = vmul.f32 %v1488, 0.35355338
        %v1525 = vmul.f32 %v1516, 0.35355338
        %v1526 = vadd.f32 %v1518, %v784
        %v1527 = vadd.f32 %v1519, %v784
        %v1528 = vadd.f32 %v1520, %v784
        %v1529 = vadd.f32 %v1521, %v784
        %v1530 = vadd.f32 %v1522, %v784
        %v1531 = vadd.f32 %v1523, %v784
        %v1532 = vadd.f32 %v1524, %v784
        %v1533 = vadd.f32 %v1525, %v784
        %v1534 = vsel %vm792, %v1526, -inf
        %1535 = vmax.xlane.f32.xlu0 %v1534
        %v1536 = vpop.xlane.xlu0 %1535
        %v1537 = vsel %vm792, %v1527, -inf
        %1538 = vmax.xlane.f32.xlu0 %v1537
        %v1539 = vpop.xlane.xlu0 %1538
        %v1540 = vsel %vm792, %v1528, -inf
        %1541 = vmax.xlane.f32.xlu0 %v1540
        %v1542 = vpop.xlane.xlu0 %1541
        %v1543 = vsel %vm792, %v1529, -inf
        %1544 = vmax.xlane.f32.xlu0 %v1543
        %v1545 = vpop.xlane.xlu0 %1544
        %v1546 = vsel %vm792, %v1530, -inf
        %1547 = vmax.xlane.f32.xlu0 %v1546
        %v1548 = vpop.xlane.xlu0 %1547
        %v1549 = vsel %vm792, %v1531, -inf
        %1550 = vmax.xlane.f32.xlu0 %v1549
        %v1551 = vpop.xlane.xlu0 %1550
        %v1552 = vsel %vm792, %v1532, -inf
        %1553 = vmax.xlane.f32.xlu0 %v1552
        %v1554 = vpop.xlane.xlu0 %1553
        %v1555 = vsel %vm792, %v1533, -inf
        %1556 = vmax.xlane.f32.xlu0 %v1555
        %v1557 = vpop.xlane.xlu0 %1556
        %v1558 = vsub.f32 %v1526, %v1536
        %v1559 = vsub.f32 %v1527, %v1539
        %v1560 = vsub.f32 %v1528, %v1542
        %v1561 = vsub.f32 %v1529, %v1545
        %v1562 = vsub.f32 %v1530, %v1548
        %v1563 = vsub.f32 %v1531, %v1551
        %v1564 = vsub.f32 %v1532, %v1554
        %v1565 = vsub.f32 %v1533, %v1557
        %v1566 = vmul.f32 %v1558, 1.442695
        %v1567 = vpow.pop %v1566
        %v1568 = vmul.f32 %v1559, 1.442695
        %v1569 = vpow.pop %v1568
        %v1570 = vmul.f32 %v1560, 1.442695
        %v1571 = vpow.pop %v1570
        %v1572 = vmul.f32 %v1561, 1.442695
        %v1573 = vpow.pop %v1572
        %v1574 = vmul.f32 %v1562, 1.442695
        %v1575 = vpow.pop %v1574
        %v1576 = vmul.f32 %v1563, 1.442695
        %v1577 = vpow.pop %v1576
        %v1578 = vmul.f32 %v1564, 1.442695
        %v1579 = vpow.pop %v1578
        %v1580 = vmul.f32 %v1565, 1.442695
        %v1581 = vpow.pop %v1580
        %v1582 = vsel %vm792, %v1567, 0.0
        %1583 = vadd.xlane.f32.xlu0 %v1582
        %v1584 = vpop.xlane.xlu0 %1583
        %v1585 = vsel %vm792, %v1569, 0.0
        %1586 = vadd.xlane.f32.xlu0 %v1585
        %v1587 = vpop.xlane.xlu0 %1586
        %v1588 = vsel %vm792, %v1571, 0.0
        %1589 = vadd.xlane.f32.xlu0 %v1588
        %v1590 = vpop.xlane.xlu0 %1589
        %v1591 = vsel %vm792, %v1573, 0.0
        %1592 = vadd.xlane.f32.xlu0 %v1591
        %v1593 = vpop.xlane.xlu0 %1592
        %v1594 = vsel %vm792, %v1575, 0.0
        %1595 = vadd.xlane.f32.xlu0 %v1594
        %v1596 = vpop.xlane.xlu0 %1595
        %v1597 = vsel %vm792, %v1577, 0.0
        %1598 = vadd.xlane.f32.xlu0 %v1597
        %v1599 = vpop.xlane.xlu0 %1598
        %v1600 = vsel %vm792, %v1579, 0.0
        %1601 = vadd.xlane.f32.xlu0 %v1600
        %v1602 = vpop.xlane.xlu0 %1601
        %v1603 = vsel %vm792, %v1581, 0.0
        %1604 = vadd.xlane.f32.xlu0 %v1603
        %v1605 = vpop.xlane.xlu0 %1604
        %v1606 = vrcp.pop %v1584
        %v1607 = vrcp.pop %v1587
        %v1608 = vrcp.pop %v1590
        %v1609 = vrcp.pop %v1593
        %v1610 = vrcp.pop %v1596
        %v1611 = vrcp.pop %v1599
        %v1612 = vrcp.pop %v1602
        %v1613 = vrcp.pop %v1605
        %v1614 = vmul.f32 %v1567, %v1606
        %v1615 = vmul.f32 %v1569, %v1607
        %v1616 = vmul.f32 %v1571, %v1608
        %v1617 = vmul.f32 %v1573, %v1609
        %v1618 = vmul.f32 %v1575, %v1610
        %v1619 = vmul.f32 %v1577, %v1611
        %v1620 = vmul.f32 %v1579, %v1612
        %v1621 = vmul.f32 %v1581, %v1613
        %v1624 = vsel %vm792, %v1614, 0
        %1626 = vmatpush.msra.mxu0 0.0
        %1627 = vmatpush.msra.mxu0 0.0
        %1628 = vmatpush.msra.mxu0 0.0
        %1629 = vmatpush.msra.mxu0 0.0
        %1630 = vmatpush.msra.mxu0 0.0
        %1631 = vmatpush.msra.mxu0 0.0
        %1632 = vmatpush.msra.mxu0 0.0
        %1633 = vmatpush.msra.mxu0 0.0
        %1634 = vmatpush.msra.mxu0 0.0
        %1635 = vmatpush.msra.mxu0 0.0
        %1636 = vmatpush.msra.mxu0 0.0
        %1637 = vmatpush.msra.mxu0 0.0
        %1638 = vmatpush.msra.mxu0 0.0
        %1639 = vmatpush.msra.mxu0 0.0
        %1640 = vmatpush.msra.mxu0 0.0
        %1641 = vmatpush.msra.mxu0 %v1295
        %1642 = vmatmul.f32.gmra.mxu0 %v1624
        %v1643 = vpop.f32.mrf.mxu0
        %v1644 = vadd.f32 0.0, %v1643
        %1645 = vdwg.mxu0
        %v1648 = vsel %vm792, %v1615, 0
        %1650 = vmatpush.msra.mxu0 0.0
        %1651 = vmatpush.msra.mxu0 0.0
        %1652 = vmatpush.msra.mxu0 0.0
        %1653 = vmatpush.msra.mxu0 0.0
        %1654 = vmatpush.msra.mxu0 0.0
        %1655 = vmatpush.msra.mxu0 0.0
        %1656 = vmatpush.msra.mxu0 0.0
        %1657 = vmatpush.msra.mxu0 0.0
        %1658 = vmatpush.msra.mxu0 0.0
        %1659 = vmatpush.msra.mxu0 0.0
        %1660 = vmatpush.msra.mxu0 0.0
        %1661 = vmatpush.msra.mxu0 0.0
        %1662 = vmatpush.msra.mxu0 0.0
        %1663 = vmatpush.msra.mxu0 0.0
        %1664 = vmatpush.msra.mxu0 0.0
        %1665 = vmatpush.msra.mxu0 %v1323
        %1666 = vmatmul.f32.gmra.mxu0 %v1648
        %v1667 = vpop.f32.mrf.mxu0
        %v1668 = vadd.f32 0.0, %v1667
        %1669 = vdwg.mxu0
        %v1672 = vsel %vm792, %v1616, 0
        %1674 = vmatpush.msra.mxu0 0.0
        %1675 = vmatpush.msra.mxu0 0.0
        %1676 = vmatpush.msra.mxu0 0.0
        %1677 = vmatpush.msra.mxu0 0.0
        %1678 = vmatpush.msra.mxu0 0.0
        %1679 = vmatpush.msra.mxu0 0.0
        %1680 = vmatpush.msra.mxu0 0.0
        %1681 = vmatpush.msra.mxu0 0.0
        %1682 = vmatpush.msra.mxu0 0.0
        %1683 = vmatpush.msra.mxu0 0.0
        %1684 = vmatpush.msra.mxu0 0.0
        %1685 = vmatpush.msra.mxu0 0.0
        %1686 = vmatpush.msra.mxu0 0.0
        %1687 = vmatpush.msra.mxu0 0.0
        %1688 = vmatpush.msra.mxu0 0.0
        %1689 = vmatpush.msra.mxu0 %v1351
        %1690 = vmatmul.f32.gmra.mxu0 %v1672
        %v1691 = vpop.f32.mrf.mxu0
        %v1692 = vadd.f32 0.0, %v1691
        %1693 = vdwg.mxu0
        %v1696 = vsel %vm792, %v1617, 0
        %1698 = vmatpush.msra.mxu0 0.0
        %1699 = vmatpush.msra.mxu0 0.0
        %1700 = vmatpush.msra.mxu0 0.0
        %1701 = vmatpush.msra.mxu0 0.0
        %1702 = vmatpush.msra.mxu0 0.0
        %1703 = vmatpush.msra.mxu0 0.0
        %1704 = vmatpush.msra.mxu0 0.0
        %1705 = vmatpush.msra.mxu0 0.0
        %1706 = vmatpush.msra.mxu0 0.0
        %1707 = vmatpush.msra.mxu0 0.0
        %1708 = vmatpush.msra.mxu0 0.0
        %1709 = vmatpush.msra.mxu0 0.0
        %1710 = vmatpush.msra.mxu0 0.0
        %1711 = vmatpush.msra.mxu0 0.0
        %1712 = vmatpush.msra.mxu0 0.0
        %1713 = vmatpush.msra.mxu0 %v1379
        %1714 = vmatmul.f32.gmra.mxu0 %v1696
        %v1715 = vpop.f32.mrf.mxu0
        %v1716 = vadd.f32 0.0, %v1715
        %1717 = vdwg.mxu0
        %v1720 = vsel %vm792, %v1618, 0
        %1722 = vmatpush.msra.mxu0 0.0
        %1723 = vmatpush.msra.mxu0 0.0
        %1724 = vmatpush.msra.mxu0 0.0
        %1725 = vmatpush.msra.mxu0 0.0
        %1726 = vmatpush.msra.mxu0 0.0
        %1727 = vmatpush.msra.mxu0 0.0
        %1728 = vmatpush.msra.mxu0 0.0
        %1729 = vmatpush.msra.mxu0 0.0
        %1730 = vmatpush.msra.mxu0 0.0
        %1731 = vmatpush.msra.mxu0 0.0
        %1732 = vmatpush.msra.mxu0 0.0
        %1733 = vmatpush.msra.mxu0 0.0
        %1734 = vmatpush.msra.mxu0 0.0
        %1735 = vmatpush.msra.mxu0 0.0
        %1736 = vmatpush.msra.mxu0 0.0
        %1737 = vmatpush.msra.mxu0 %v1407
        %1738 = vmatmul.f32.gmra.mxu0 %v1720
        %v1739 = vpop.f32.mrf.mxu0
        %v1740 = vadd.f32 0.0, %v1739
        %1741 = vdwg.mxu0
        %v1744 = vsel %vm792, %v1619, 0
        %1746 = vmatpush.msra.mxu0 0.0
        %1747 = vmatpush.msra.mxu0 0.0
        %1748 = vmatpush.msra.mxu0 0.0
        %1749 = vmatpush.msra.mxu0 0.0
        %1750 = vmatpush.msra.mxu0 0.0
        %1751 = vmatpush.msra.mxu0 0.0
        %1752 = vmatpush.msra.mxu0 0.0
        %1753 = vmatpush.msra.mxu0 0.0
        %1754 = vmatpush.msra.mxu0 0.0
        %1755 = vmatpush.msra.mxu0 0.0
        %1756 = vmatpush.msra.mxu0 0.0
        %1757 = vmatpush.msra.mxu0 0.0
        %1758 = vmatpush.msra.mxu0 0.0
        %1759 = vmatpush.msra.mxu0 0.0
        %1760 = vmatpush.msra.mxu0 0.0
        %1761 = vmatpush.msra.mxu0 %v1435
        %1762 = vmatmul.f32.gmra.mxu0 %v1744
        %v1763 = vpop.f32.mrf.mxu0
        %v1764 = vadd.f32 0.0, %v1763
        %1765 = vdwg.mxu0
        %v1768 = vsel %vm792, %v1620, 0
        %1770 = vmatpush.msra.mxu0 0.0
        %1771 = vmatpush.msra.mxu0 0.0
        %1772 = vmatpush.msra.mxu0 0.0
        %1773 = vmatpush.msra.mxu0 0.0
        %1774 = vmatpush.msra.mxu0 0.0
        %1775 = vmatpush.msra.mxu0 0.0
        %1776 = vmatpush.msra.mxu0 0.0
        %1777 = vmatpush.msra.mxu0 0.0
        %1778 = vmatpush.msra.mxu0 0.0
        %1779 = vmatpush.msra.mxu0 0.0
        %1780 = vmatpush.msra.mxu0 0.0
        %1781 = vmatpush.msra.mxu0 0.0
        %1782 = vmatpush.msra.mxu0 0.0
        %1783 = vmatpush.msra.mxu0 0.0
        %1784 = vmatpush.msra.mxu0 0.0
        %1785 = vmatpush.msra.mxu0 %v1463
        %1786 = vmatmul.f32.gmra.mxu0 %v1768
        %v1787 = vpop.f32.mrf.mxu0
        %v1788 = vadd.f32 0.0, %v1787
        %1789 = vdwg.mxu0
        %v1792 = vsel %vm792, %v1621, 0
        %1794 = vmatpush.msra.mxu0 0.0
        %1795 = vmatpush.msra.mxu0 0.0
        %1796 = vmatpush.msra.mxu0 0.0
        %1797 = vmatpush.msra.mxu0 0.0
        %1798 = vmatpush.msra.mxu0 0.0
        %1799 = vmatpush.msra.mxu0 0.0
        %1800 = vmatpush.msra.mxu0 0.0
        %1801 = vmatpush.msra.mxu0 0.0
        %1802 = vmatpush.msra.mxu0 0.0
        %1803 = vmatpush.msra.mxu0 0.0
        %1804 = vmatpush.msra.mxu0 0.0
        %1805 = vmatpush.msra.mxu0 0.0
        %1806 = vmatpush.msra.mxu0 0.0
        %1807 = vmatpush.msra.mxu0 0.0
        %1808 = vmatpush.msra.mxu0 0.0
        %1809 = vmatpush.msra.mxu0 %v1491
        %1810 = vmatmul.f32.gmra.mxu0 %v1792
        %v1811 = vpop.f32.mrf.mxu0
        %v1812 = vadd.f32 0.0, %v1811
        %1813 = vdwg.mxu0
        %v1815 = vsel %vm792, %v1644, 0
        %v1818 = vsel %vm792, %v1668, 0
        %v1821 = vsel %vm792, %v1692, 0
        %v1824 = vsel %vm792, %v1716, 0
        %v1827 = vsel %vm792, %v1740, 0
        %v1830 = vsel %vm792, %v1764, 0
        %v1833 = vsel %vm792, %v1788, 0
        %v1836 = vsel %vm792, %v1812, 0
        %1838 = vmatpush.msra.mxu0 0.0
        %1839 = vmatpush.msra.mxu0 0.0
        %1840 = vmatpush.msra.mxu0 0.0
        %1841 = vmatpush.msra.mxu0 0.0
        %1842 = vmatpush.msra.mxu0 0.0
        %1843 = vmatpush.msra.mxu0 0.0
        %1844 = vmatpush.msra.mxu0 0.0
        %1845 = vmatpush.msra.mxu0 0.0
        %1846 = vmatpush.msra.mxu0 0.0
        %1847 = vmatpush.msra.mxu0 0.0
        %1848 = vmatpush.msra.mxu0 0.0
        %1849 = vmatpush.msra.mxu0 0.0
        %1850 = vmatpush.msra.mxu0 0.0
        %1851 = vmatpush.msra.mxu0 0.0
        %1852 = vmatpush.msra.mxu0 0.0
        %1853 = vmatpush.msra.mxu0 %v786
        %1854 = vmatmul.f32.gmra.mxu0 %v1815
        %v1855 = vpop.f32.mrf.mxu0
        %v1856 = vadd.f32 0.0, %v1855
        %1857 = vmatmul.f32.gmra.mxu0 %v1818
        %v1858 = vpop.f32.mrf.mxu0
        %v1859 = vadd.f32 0.0, %v1858
        %1860 = vmatmul.f32.gmra.mxu0 %v1821
        %v1861 = vpop.f32.mrf.mxu0
        %v1862 = vadd.f32 0.0, %v1861
        %1863 = vmatmul.f32.gmra.mxu0 %v1824
        %v1864 = vpop.f32.mrf.mxu0
        %v1865 = vadd.f32 0.0, %v1864
        %1866 = vmatmul.f32.gmra.mxu0 %v1827
        %v1867 = vpop.f32.mrf.mxu0
        %v1868 = vadd.f32 0.0, %v1867
        %1869 = vmatmul.f32.gmra.mxu0 %v1830
        %v1870 = vpop.f32.mrf.mxu0
        %v1871 = vadd.f32 0.0, %v1870
        %1872 = vmatmul.f32.gmra.mxu0 %v1833
        %v1873 = vpop.f32.mrf.mxu0
        %v1874 = vadd.f32 0.0, %v1873
        %1875 = vmatmul.f32.gmra.mxu0 %v1836
        %v1876 = vpop.f32.mrf.mxu0
        %v1877 = vadd.f32 0.0, %v1876
        %1878 = vdwg.mxu0
        %v1880 = vsel %vm792, %v1131, 0
        %v1883 = vsel %vm792, %v1154, 0
        %v1886 = vsel %vm792, %v1177, 0
        %v1889 = vsel %vm792, %v1200, 0
        %v1892 = vsel %vm792, %v1223, 0
        %v1895 = vsel %vm792, %v1246, 0
        %v1898 = vsel %vm792, %v1269, 0
        %v1901 = vsel %vm792, %v1292, 0
        %1903 = vmatpush.msra.mxu0 0.0
        %1904 = vmatpush.msra.mxu0 0.0
        %1905 = vmatpush.msra.mxu0 0.0
        %1906 = vmatpush.msra.mxu0 0.0
        %1907 = vmatpush.msra.mxu0 0.0
        %1908 = vmatpush.msra.mxu0 0.0
        %1909 = vmatpush.msra.mxu0 0.0
        %1910 = vmatpush.msra.mxu0 0.0
        %1911 = vmatpush.msra.mxu0 0.0
        %1912 = vmatpush.msra.mxu0 0.0
        %1913 = vmatpush.msra.mxu0 0.0
        %1914 = vmatpush.msra.mxu0 0.0
        %1915 = vmatpush.msra.mxu0 0.0
        %1916 = vmatpush.msra.mxu0 0.0
        %1917 = vmatpush.msra.mxu0 0.0
        %1918 = vmatpush.msra.mxu0 %v785
        %1919 = vmatmul.f32.gmra.mxu0 %v1880
        %v1920 = vpop.f32.mrf.mxu0
        %v1921 = vadd.f32 %v1856, %v1920
        %1922 = vmatmul.f32.gmra.mxu0 %v1883
        %v1923 = vpop.f32.mrf.mxu0
        %v1924 = vadd.f32 %v1859, %v1923
        %1925 = vmatmul.f32.gmra.mxu0 %v1886
        %v1926 = vpop.f32.mrf.mxu0
        %v1927 = vadd.f32 %v1862, %v1926
        %1928 = vmatmul.f32.gmra.mxu0 %v1889
        %v1929 = vpop.f32.mrf.mxu0
        %v1930 = vadd.f32 %v1865, %v1929
        %1931 = vmatmul.f32.gmra.mxu0 %v1892
        %v1932 = vpop.f32.mrf.mxu0
        %v1933 = vadd.f32 %v1868, %v1932
        %1934 = vmatmul.f32.gmra.mxu0 %v1895
        %v1935 = vpop.f32.mrf.mxu0
        %v1936 = vadd.f32 %v1871, %v1935
        %1937 = vmatmul.f32.gmra.mxu0 %v1898
        %v1938 = vpop.f32.mrf.mxu0
        %v1939 = vadd.f32 %v1874, %v1938
        %1940 = vmatmul.f32.gmra.mxu0 %v1901
        %v1941 = vpop.f32.mrf.mxu0
        %v1942 = vadd.f32 %v1877, %v1941
        %1943 = vdwg.mxu0
        %1944 = vrot.lane.b32.xlu0 %v756, 112
        %v1945 = vpop.permute.xlu0 %1944
        %1946 = vrot.lane.b32.xlu0 %v756, 80
        %v1947 = vpop.permute.xlu0 %1946
        %v1948 = vsel %vm792, %v1945, 0
        %v1950 = vsel %vm792, %v1947, 0
        %1952 = vmatpush.xpose.msra.mxu0 0.0
        %1953 = vmatpush.xpose.msra.mxu0 0.0
        %1954 = vmatpush.xpose.msra.mxu0 0.0
        %1955 = vmatpush.xpose.msra.mxu0 0.0
        %1956 = vmatpush.xpose.msra.mxu0 0.0
        %1957 = vmatpush.xpose.msra.mxu0 0.0
        %1958 = vmatpush.xpose.msra.mxu0 0.0
        %1959 = vmatpush.xpose.msra.mxu0 0.0
        %1960 = vmatpush.xpose.msra.mxu0 0.0
        %1961 = vmatpush.xpose.msra.mxu0 0.0
        %1962 = vmatpush.xpose.msra.mxu0 0.0
        %1963 = vmatpush.xpose.msra.mxu0 0.0
        %1964 = vmatpush.xpose.msra.mxu0 0.0
        %1965 = vmatpush.xpose.msra.mxu0 0.0
        %1966 = vmatpush.xpose.msra.mxu0 0.0
        %1967 = vmatpush.xpose.msra.mxu0 %v1950
        %1968 = vmatmul.f32.gmra.mxu0 %v1948
        %v1969 = vpop.f32.mrf.mxu0
        %v1970 = vadd.f32 0.0, %v1969
        %1971 = vdwg.mxu0
        %1972 = vrot.lane.b32.xlu0 %v759, 112
        %v1973 = vpop.permute.xlu0 %1972
        %1974 = vrot.lane.b32.xlu0 %v759, 80
        %v1975 = vpop.permute.xlu0 %1974
        %v1976 = vsel %vm792, %v1973, 0
        %v1978 = vsel %vm792, %v1975, 0
        %1980 = vmatpush.xpose.msra.mxu0 0.0
        %1981 = vmatpush.xpose.msra.mxu0 0.0
        %1982 = vmatpush.xpose.msra.mxu0 0.0
        %1983 = vmatpush.xpose.msra.mxu0 0.0
        %1984 = vmatpush.xpose.msra.mxu0 0.0
        %1985 = vmatpush.xpose.msra.mxu0 0.0
        %1986 = vmatpush.xpose.msra.mxu0 0.0
        %1987 = vmatpush.xpose.msra.mxu0 0.0
        %1988 = vmatpush.xpose.msra.mxu0 0.0
        %1989 = vmatpush.xpose.msra.mxu0 0.0
        %1990 = vmatpush.xpose.msra.mxu0 0.0
        %1991 = vmatpush.xpose.msra.mxu0 0.0
        %1992 = vmatpush.xpose.msra.mxu0 0.0
        %1993 = vmatpush.xpose.msra.mxu0 0.0
        %1994 = vmatpush.xpose.msra.mxu0 0.0
        %1995 = vmatpush.xpose.msra.mxu0 %v1978
        %1996 = vmatmul.f32.gmra.mxu0 %v1976
        %v1997 = vpop.f32.mrf.mxu0
        %v1998 = vadd.f32 0.0, %v1997
        %1999 = vdwg.mxu0
        %2000 = vrot.lane.b32.xlu0 %v762, 112
        %v2001 = vpop.permute.xlu0 %2000
        %2002 = vrot.lane.b32.xlu0 %v762, 80
        %v2003 = vpop.permute.xlu0 %2002
        %v2004 = vsel %vm792, %v2001, 0
        %v2006 = vsel %vm792, %v2003, 0
        %2008 = vmatpush.xpose.msra.mxu0 0.0
        %2009 = vmatpush.xpose.msra.mxu0 0.0
        %2010 = vmatpush.xpose.msra.mxu0 0.0
        %2011 = vmatpush.xpose.msra.mxu0 0.0
        %2012 = vmatpush.xpose.msra.mxu0 0.0
        %2013 = vmatpush.xpose.msra.mxu0 0.0
        %2014 = vmatpush.xpose.msra.mxu0 0.0
        %2015 = vmatpush.xpose.msra.mxu0 0.0
        %2016 = vmatpush.xpose.msra.mxu0 0.0
        %2017 = vmatpush.xpose.msra.mxu0 0.0
        %2018 = vmatpush.xpose.msra.mxu0 0.0
        %2019 = vmatpush.xpose.msra.mxu0 0.0
        %2020 = vmatpush.xpose.msra.mxu0 0.0
        %2021 = vmatpush.xpose.msra.mxu0 0.0
        %2022 = vmatpush.xpose.msra.mxu0 0.0
        %2023 = vmatpush.xpose.msra.mxu0 %v2006
        %2024 = vmatmul.f32.gmra.mxu0 %v2004
        %v2025 = vpop.f32.mrf.mxu0
        %v2026 = vadd.f32 0.0, %v2025
        %2027 = vdwg.mxu0
        %2028 = vrot.lane.b32.xlu0 %v765, 112
        %v2029 = vpop.permute.xlu0 %2028
        %2030 = vrot.lane.b32.xlu0 %v765, 80
        %v2031 = vpop.permute.xlu0 %2030
        %v2032 = vsel %vm792, %v2029, 0
        %v2034 = vsel %vm792, %v2031, 0
        %2036 = vmatpush.xpose.msra.mxu0 0.0
        %2037 = vmatpush.xpose.msra.mxu0 0.0
        %2038 = vmatpush.xpose.msra.mxu0 0.0
        %2039 = vmatpush.xpose.msra.mxu0 0.0
        %2040 = vmatpush.xpose.msra.mxu0 0.0
        %2041 = vmatpush.xpose.msra.mxu0 0.0
        %2042 = vmatpush.xpose.msra.mxu0 0.0
        %2043 = vmatpush.xpose.msra.mxu0 0.0
        %2044 = vmatpush.xpose.msra.mxu0 0.0
        %2045 = vmatpush.xpose.msra.mxu0 0.0
        %2046 = vmatpush.xpose.msra.mxu0 0.0
        %2047 = vmatpush.xpose.msra.mxu0 0.0
        %2048 = vmatpush.xpose.msra.mxu0 0.0
        %2049 = vmatpush.xpose.msra.mxu0 0.0
        %2050 = vmatpush.xpose.msra.mxu0 0.0
        %2051 = vmatpush.xpose.msra.mxu0 %v2034
        %2052 = vmatmul.f32.gmra.mxu0 %v2032
        %v2053 = vpop.f32.mrf.mxu0
        %v2054 = vadd.f32 0.0, %v2053
        %2055 = vdwg.mxu0
        %2056 = vrot.lane.b32.xlu0 %v768, 112
        %v2057 = vpop.permute.xlu0 %2056
        %2058 = vrot.lane.b32.xlu0 %v768, 80
        %v2059 = vpop.permute.xlu0 %2058
        %v2060 = vsel %vm792, %v2057, 0
        %v2062 = vsel %vm792, %v2059, 0
        %2064 = vmatpush.xpose.msra.mxu0 0.0
        %2065 = vmatpush.xpose.msra.mxu0 0.0
        %2066 = vmatpush.xpose.msra.mxu0 0.0
        %2067 = vmatpush.xpose.msra.mxu0 0.0
        %2068 = vmatpush.xpose.msra.mxu0 0.0
        %2069 = vmatpush.xpose.msra.mxu0 0.0
        %2070 = vmatpush.xpose.msra.mxu0 0.0
        %2071 = vmatpush.xpose.msra.mxu0 0.0
        %2072 = vmatpush.xpose.msra.mxu0 0.0
        %2073 = vmatpush.xpose.msra.mxu0 0.0
        %2074 = vmatpush.xpose.msra.mxu0 0.0
        %2075 = vmatpush.xpose.msra.mxu0 0.0
        %2076 = vmatpush.xpose.msra.mxu0 0.0
        %2077 = vmatpush.xpose.msra.mxu0 0.0
        %2078 = vmatpush.xpose.msra.mxu0 0.0
        %2079 = vmatpush.xpose.msra.mxu0 %v2062
        %2080 = vmatmul.f32.gmra.mxu0 %v2060
        %v2081 = vpop.f32.mrf.mxu0
        %v2082 = vadd.f32 0.0, %v2081
        %2083 = vdwg.mxu0
        %2084 = vrot.lane.b32.xlu0 %v771, 112
        %v2085 = vpop.permute.xlu0 %2084
        %2086 = vrot.lane.b32.xlu0 %v771, 80
        %v2087 = vpop.permute.xlu0 %2086
        %v2088 = vsel %vm792, %v2085, 0
        %v2090 = vsel %vm792, %v2087, 0
        %2092 = vmatpush.xpose.msra.mxu0 0.0
        %2093 = vmatpush.xpose.msra.mxu0 0.0
        %2094 = vmatpush.xpose.msra.mxu0 0.0
        %2095 = vmatpush.xpose.msra.mxu0 0.0
        %2096 = vmatpush.xpose.msra.mxu0 0.0
        %2097 = vmatpush.xpose.msra.mxu0 0.0
        %2098 = vmatpush.xpose.msra.mxu0 0.0
        %2099 = vmatpush.xpose.msra.mxu0 0.0
        %2100 = vmatpush.xpose.msra.mxu0 0.0
        %2101 = vmatpush.xpose.msra.mxu0 0.0
        %2102 = vmatpush.xpose.msra.mxu0 0.0
        %2103 = vmatpush.xpose.msra.mxu0 0.0
        %2104 = vmatpush.xpose.msra.mxu0 0.0
        %2105 = vmatpush.xpose.msra.mxu0 0.0
        %2106 = vmatpush.xpose.msra.mxu0 0.0
        %2107 = vmatpush.xpose.msra.mxu0 %v2090
        %2108 = vmatmul.f32.gmra.mxu0 %v2088
        %v2109 = vpop.f32.mrf.mxu0
        %v2110 = vadd.f32 0.0, %v2109
        %2111 = vdwg.mxu0
        %2112 = vrot.lane.b32.xlu0 %v774, 112
        %v2113 = vpop.permute.xlu0 %2112
        %2114 = vrot.lane.b32.xlu0 %v774, 80
        %v2115 = vpop.permute.xlu0 %2114
        %v2116 = vsel %vm792, %v2113, 0
        %v2118 = vsel %vm792, %v2115, 0
        %2120 = vmatpush.xpose.msra.mxu0 0.0
        %2121 = vmatpush.xpose.msra.mxu0 0.0
        %2122 = vmatpush.xpose.msra.mxu0 0.0
        %2123 = vmatpush.xpose.msra.mxu0 0.0
        %2124 = vmatpush.xpose.msra.mxu0 0.0
        %2125 = vmatpush.xpose.msra.mxu0 0.0
        %2126 = vmatpush.xpose.msra.mxu0 0.0
        %2127 = vmatpush.xpose.msra.mxu0 0.0
        %2128 = vmatpush.xpose.msra.mxu0 0.0
        %2129 = vmatpush.xpose.msra.mxu0 0.0
        %2130 = vmatpush.xpose.msra.mxu0 0.0
        %2131 = vmatpush.xpose.msra.mxu0 0.0
        %2132 = vmatpush.xpose.msra.mxu0 0.0
        %2133 = vmatpush.xpose.msra.mxu0 0.0
        %2134 = vmatpush.xpose.msra.mxu0 0.0
        %2135 = vmatpush.xpose.msra.mxu0 %v2118
        %2136 = vmatmul.f32.gmra.mxu0 %v2116
        %v2137 = vpop.f32.mrf.mxu0
        %v2138 = vadd.f32 0.0, %v2137
        %2139 = vdwg.mxu0
        %2140 = vrot.lane.b32.xlu0 %v777, 112
        %v2141 = vpop.permute.xlu0 %2140
        %2142 = vrot.lane.b32.xlu0 %v777, 80
        %v2143 = vpop.permute.xlu0 %2142
        %v2144 = vsel %vm792, %v2141, 0
        %v2146 = vsel %vm792, %v2143, 0
        %2148 = vmatpush.xpose.msra.mxu0 0.0
        %2149 = vmatpush.xpose.msra.mxu0 0.0
        %2150 = vmatpush.xpose.msra.mxu0 0.0
        %2151 = vmatpush.xpose.msra.mxu0 0.0
        %2152 = vmatpush.xpose.msra.mxu0 0.0
        %2153 = vmatpush.xpose.msra.mxu0 0.0
        %2154 = vmatpush.xpose.msra.mxu0 0.0
        %2155 = vmatpush.xpose.msra.mxu0 0.0
        %2156 = vmatpush.xpose.msra.mxu0 0.0
        %2157 = vmatpush.xpose.msra.mxu0 0.0
        %2158 = vmatpush.xpose.msra.mxu0 0.0
        %2159 = vmatpush.xpose.msra.mxu0 0.0
        %2160 = vmatpush.xpose.msra.mxu0 0.0
        %2161 = vmatpush.xpose.msra.mxu0 0.0
        %2162 = vmatpush.xpose.msra.mxu0 0.0
        %2163 = vmatpush.xpose.msra.mxu0 %v2146
        %2164 = vmatmul.f32.gmra.mxu0 %v2144
        %v2165 = vpop.f32.mrf.mxu0
        %v2166 = vadd.f32 0.0, %v2165
        %2167 = vdwg.mxu0
        %v2168 = vmul.f32 %v1970, 0.35355338
        %v2169 = vmul.f32 %v1998, 0.35355338
        %v2170 = vmul.f32 %v2026, 0.35355338
        %v2171 = vmul.f32 %v2054, 0.35355338
        %v2172 = vmul.f32 %v2082, 0.35355338
        %v2173 = vmul.f32 %v2110, 0.35355338
        %v2174 = vmul.f32 %v2138, 0.35355338
        %v2175 = vmul.f32 %v2166, 0.35355338
        %v2176 = vadd.f32 %v2168, %v784
        %v2177 = vadd.f32 %v2169, %v784
        %v2178 = vadd.f32 %v2170, %v784
        %v2179 = vadd.f32 %v2171, %v784
        %v2180 = vadd.f32 %v2172, %v784
        %v2181 = vadd.f32 %v2173, %v784
        %v2182 = vadd.f32 %v2174, %v784
        %v2183 = vadd.f32 %v2175, %v784
        %v2184 = vsel %vm792, %v2176, -inf
        %2185 = vmax.xlane.f32.xlu0 %v2184
        %v2186 = vpop.xlane.xlu0 %2185
        %v2187 = vsel %vm792, %v2177, -inf
        %2188 = vmax.xlane.f32.xlu0 %v2187
        %v2189 = vpop.xlane.xlu0 %2188
        %v2190 = vsel %vm792, %v2178, -inf
        %2191 = vmax.xlane.f32.xlu0 %v2190
        %v2192 = vpop.xlane.xlu0 %2191
        %v2193 = vsel %vm792, %v2179, -inf
        %2194 = vmax.xlane.f32.xlu0 %v2193
        %v2195 = vpop.xlane.xlu0 %2194
        %v2196 = vsel %vm792, %v2180, -inf
        %2197 = vmax.xlane.f32.xlu0 %v2196
        %v2198 = vpop.xlane.xlu0 %2197
        %v2199 = vsel %vm792, %v2181, -inf
        %2200 = vmax.xlane.f32.xlu0 %v2199
        %v2201 = vpop.xlane.xlu0 %2200
        %v2202 = vsel %vm792, %v2182, -inf
        %2203 = vmax.xlane.f32.xlu0 %v2202
        %v2204 = vpop.xlane.xlu0 %2203
        %v2205 = vsel %vm792, %v2183, -inf
        %2206 = vmax.xlane.f32.xlu0 %v2205
        %v2207 = vpop.xlane.xlu0 %2206
        %v2208 = vsub.f32 %v2176, %v2186
        %v2209 = vsub.f32 %v2177, %v2189
        %v2210 = vsub.f32 %v2178, %v2192
        %v2211 = vsub.f32 %v2179, %v2195
        %v2212 = vsub.f32 %v2180, %v2198
        %v2213 = vsub.f32 %v2181, %v2201
        %v2214 = vsub.f32 %v2182, %v2204
        %v2215 = vsub.f32 %v2183, %v2207
        %v2216 = vmul.f32 %v2208, 1.442695
        %v2217 = vpow.pop %v2216
        %v2218 = vmul.f32 %v2209, 1.442695
        %v2219 = vpow.pop %v2218
        %v2220 = vmul.f32 %v2210, 1.442695
        %v2221 = vpow.pop %v2220
        %v2222 = vmul.f32 %v2211, 1.442695
        %v2223 = vpow.pop %v2222
        %v2224 = vmul.f32 %v2212, 1.442695
        %v2225 = vpow.pop %v2224
        %v2226 = vmul.f32 %v2213, 1.442695
        %v2227 = vpow.pop %v2226
        %v2228 = vmul.f32 %v2214, 1.442695
        %v2229 = vpow.pop %v2228
        %v2230 = vmul.f32 %v2215, 1.442695
        %v2231 = vpow.pop %v2230
        %v2232 = vsel %vm792, %v2217, 0.0
        %2233 = vadd.xlane.f32.xlu0 %v2232
        %v2234 = vpop.xlane.xlu0 %2233
        %v2235 = vsel %vm792, %v2219, 0.0
        %2236 = vadd.xlane.f32.xlu0 %v2235
        %v2237 = vpop.xlane.xlu0 %2236
        %v2238 = vsel %vm792, %v2221, 0.0
        %2239 = vadd.xlane.f32.xlu0 %v2238
        %v2240 = vpop.xlane.xlu0 %2239
        %v2241 = vsel %vm792, %v2223, 0.0
        %2242 = vadd.xlane.f32.xlu0 %v2241
        %v2243 = vpop.xlane.xlu0 %2242
        %v2244 = vsel %vm792, %v2225, 0.0
        %2245 = vadd.xlane.f32.xlu0 %v2244
        %v2246 = vpop.xlane.xlu0 %2245
        %v2247 = vsel %vm792, %v2227, 0.0
        %2248 = vadd.xlane.f32.xlu0 %v2247
        %v2249 = vpop.xlane.xlu0 %2248
        %v2250 = vsel %vm792, %v2229, 0.0
        %2251 = vadd.xlane.f32.xlu0 %v2250
        %v2252 = vpop.xlane.xlu0 %2251
        %v2253 = vsel %vm792, %v2231, 0.0
        %2254 = vadd.xlane.f32.xlu0 %v2253
        %v2255 = vpop.xlane.xlu0 %2254
        %v2256 = vrcp.pop %v2234
        %v2257 = vrcp.pop %v2237
        %v2258 = vrcp.pop %v2240
        %v2259 = vrcp.pop %v2243
        %v2260 = vrcp.pop %v2246
        %v2261 = vrcp.pop %v2249
        %v2262 = vrcp.pop %v2252
        %v2263 = vrcp.pop %v2255
        %v2264 = vmul.f32 %v2217, %v2256
        %v2265 = vmul.f32 %v2219, %v2257
        %v2266 = vmul.f32 %v2221, %v2258
        %v2267 = vmul.f32 %v2223, %v2259
        %v2268 = vmul.f32 %v2225, %v2260
        %v2269 = vmul.f32 %v2227, %v2261
        %v2270 = vmul.f32 %v2229, %v2262
        %v2271 = vmul.f32 %v2231, %v2263
        %v2274 = vsel %vm792, %v2264, 0
        %2276 = vmatpush.msra.mxu0 0.0
        %2277 = vmatpush.msra.mxu0 0.0
        %2278 = vmatpush.msra.mxu0 0.0
        %2279 = vmatpush.msra.mxu0 0.0
        %2280 = vmatpush.msra.mxu0 0.0
        %2281 = vmatpush.msra.mxu0 0.0
        %2282 = vmatpush.msra.mxu0 0.0
        %2283 = vmatpush.msra.mxu0 0.0
        %2284 = vmatpush.msra.mxu0 0.0
        %2285 = vmatpush.msra.mxu0 0.0
        %2286 = vmatpush.msra.mxu0 0.0
        %2287 = vmatpush.msra.mxu0 0.0
        %2288 = vmatpush.msra.mxu0 0.0
        %2289 = vmatpush.msra.mxu0 0.0
        %2290 = vmatpush.msra.mxu0 0.0
        %2291 = vmatpush.msra.mxu0 %v1945
        %2292 = vmatmul.f32.gmra.mxu0 %v2274
        %v2293 = vpop.f32.mrf.mxu0
        %v2294 = vadd.f32 0.0, %v2293
        %2295 = vdwg.mxu0
        %v2298 = vsel %vm792, %v2265, 0
        %2300 = vmatpush.msra.mxu0 0.0
        %2301 = vmatpush.msra.mxu0 0.0
        %2302 = vmatpush.msra.mxu0 0.0
        %2303 = vmatpush.msra.mxu0 0.0
        %2304 = vmatpush.msra.mxu0 0.0
        %2305 = vmatpush.msra.mxu0 0.0
        %2306 = vmatpush.msra.mxu0 0.0
        %2307 = vmatpush.msra.mxu0 0.0
        %2308 = vmatpush.msra.mxu0 0.0
        %2309 = vmatpush.msra.mxu0 0.0
        %2310 = vmatpush.msra.mxu0 0.0
        %2311 = vmatpush.msra.mxu0 0.0
        %2312 = vmatpush.msra.mxu0 0.0
        %2313 = vmatpush.msra.mxu0 0.0
        %2314 = vmatpush.msra.mxu0 0.0
        %2315 = vmatpush.msra.mxu0 %v1973
        %2316 = vmatmul.f32.gmra.mxu0 %v2298
        %v2317 = vpop.f32.mrf.mxu0
        %v2318 = vadd.f32 0.0, %v2317
        %2319 = vdwg.mxu0
        %v2322 = vsel %vm792, %v2266, 0
        %2324 = vmatpush.msra.mxu0 0.0
        %2325 = vmatpush.msra.mxu0 0.0
        %2326 = vmatpush.msra.mxu0 0.0
        %2327 = vmatpush.msra.mxu0 0.0
        %2328 = vmatpush.msra.mxu0 0.0
        %2329 = vmatpush.msra.mxu0 0.0
        %2330 = vmatpush.msra.mxu0 0.0
        %2331 = vmatpush.msra.mxu0 0.0
        %2332 = vmatpush.msra.mxu0 0.0
        %2333 = vmatpush.msra.mxu0 0.0
        %2334 = vmatpush.msra.mxu0 0.0
        %2335 = vmatpush.msra.mxu0 0.0
        %2336 = vmatpush.msra.mxu0 0.0
        %2337 = vmatpush.msra.mxu0 0.0
        %2338 = vmatpush.msra.mxu0 0.0
        %2339 = vmatpush.msra.mxu0 %v2001
        %2340 = vmatmul.f32.gmra.mxu0 %v2322
        %v2341 = vpop.f32.mrf.mxu0
        %v2342 = vadd.f32 0.0, %v2341
        %2343 = vdwg.mxu0
        %v2346 = vsel %vm792, %v2267, 0
        %2348 = vmatpush.msra.mxu0 0.0
        %2349 = vmatpush.msra.mxu0 0.0
        %2350 = vmatpush.msra.mxu0 0.0
        %2351 = vmatpush.msra.mxu0 0.0
        %2352 = vmatpush.msra.mxu0 0.0
        %2353 = vmatpush.msra.mxu0 0.0
        %2354 = vmatpush.msra.mxu0 0.0
        %2355 = vmatpush.msra.mxu0 0.0
        %2356 = vmatpush.msra.mxu0 0.0
        %2357 = vmatpush.msra.mxu0 0.0
        %2358 = vmatpush.msra.mxu0 0.0
        %2359 = vmatpush.msra.mxu0 0.0
        %2360 = vmatpush.msra.mxu0 0.0
        %2361 = vmatpush.msra.mxu0 0.0
        %2362 = vmatpush.msra.mxu0 0.0
        %2363 = vmatpush.msra.mxu0 %v2029
        %2364 = vmatmul.f32.gmra.mxu0 %v2346
        %v2365 = vpop.f32.mrf.mxu0
        %v2366 = vadd.f32 0.0, %v2365
        %2367 = vdwg.mxu0
        %v2370 = vsel %vm792, %v2268, 0
        %2372 = vmatpush.msra.mxu0 0.0
        %2373 = vmatpush.msra.mxu0 0.0
        %2374 = vmatpush.msra.mxu0 0.0
        %2375 = vmatpush.msra.mxu0 0.0
        %2376 = vmatpush.msra.mxu0 0.0
        %2377 = vmatpush.msra.mxu0 0.0
        %2378 = vmatpush.msra.mxu0 0.0
        %2379 = vmatpush.msra.mxu0 0.0
        %2380 = vmatpush.msra.mxu0 0.0
        %2381 = vmatpush.msra.mxu0 0.0
        %2382 = vmatpush.msra.mxu0 0.0
        %2383 = vmatpush.msra.mxu0 0.0
        %2384 = vmatpush.msra.mxu0 0.0
        %2385 = vmatpush.msra.mxu0 0.0
        %2386 = vmatpush.msra.mxu0 0.0
        %2387 = vmatpush.msra.mxu0 %v2057
        %2388 = vmatmul.f32.gmra.mxu0 %v2370
        %v2389 = vpop.f32.mrf.mxu0
        %v2390 = vadd.f32 0.0, %v2389
        %2391 = vdwg.mxu0
        %v2394 = vsel %vm792, %v2269, 0
        %2396 = vmatpush.msra.mxu0 0.0
        %2397 = vmatpush.msra.mxu0 0.0
        %2398 = vmatpush.msra.mxu0 0.0
        %2399 = vmatpush.msra.mxu0 0.0
        %2400 = vmatpush.msra.mxu0 0.0
        %2401 = vmatpush.msra.mxu0 0.0
        %2402 = vmatpush.msra.mxu0 0.0
        %2403 = vmatpush.msra.mxu0 0.0
        %2404 = vmatpush.msra.mxu0 0.0
        %2405 = vmatpush.msra.mxu0 0.0
        %2406 = vmatpush.msra.mxu0 0.0
        %2407 = vmatpush.msra.mxu0 0.0
        %2408 = vmatpush.msra.mxu0 0.0
        %2409 = vmatpush.msra.mxu0 0.0
        %2410 = vmatpush.msra.mxu0 0.0
        %2411 = vmatpush.msra.mxu0 %v2085
        %2412 = vmatmul.f32.gmra.mxu0 %v2394
        %v2413 = vpop.f32.mrf.mxu0
        %v2414 = vadd.f32 0.0, %v2413
        %2415 = vdwg.mxu0
        %v2418 = vsel %vm792, %v2270, 0
        %2420 = vmatpush.msra.mxu0 0.0
        %2421 = vmatpush.msra.mxu0 0.0
        %2422 = vmatpush.msra.mxu0 0.0
        %2423 = vmatpush.msra.mxu0 0.0
        %2424 = vmatpush.msra.mxu0 0.0
        %2425 = vmatpush.msra.mxu0 0.0
        %2426 = vmatpush.msra.mxu0 0.0
        %2427 = vmatpush.msra.mxu0 0.0
        %2428 = vmatpush.msra.mxu0 0.0
        %2429 = vmatpush.msra.mxu0 0.0
        %2430 = vmatpush.msra.mxu0 0.0
        %2431 = vmatpush.msra.mxu0 0.0
        %2432 = vmatpush.msra.mxu0 0.0
        %2433 = vmatpush.msra.mxu0 0.0
        %2434 = vmatpush.msra.mxu0 0.0
        %2435 = vmatpush.msra.mxu0 %v2113
        %2436 = vmatmul.f32.gmra.mxu0 %v2418
        %v2437 = vpop.f32.mrf.mxu0
        %v2438 = vadd.f32 0.0, %v2437
        %2439 = vdwg.mxu0
        %v2442 = vsel %vm792, %v2271, 0
        %2444 = vmatpush.msra.mxu0 0.0
        %2445 = vmatpush.msra.mxu0 0.0
        %2446 = vmatpush.msra.mxu0 0.0
        %2447 = vmatpush.msra.mxu0 0.0
        %2448 = vmatpush.msra.mxu0 0.0
        %2449 = vmatpush.msra.mxu0 0.0
        %2450 = vmatpush.msra.mxu0 0.0
        %2451 = vmatpush.msra.mxu0 0.0
        %2452 = vmatpush.msra.mxu0 0.0
        %2453 = vmatpush.msra.mxu0 0.0
        %2454 = vmatpush.msra.mxu0 0.0
        %2455 = vmatpush.msra.mxu0 0.0
        %2456 = vmatpush.msra.mxu0 0.0
        %2457 = vmatpush.msra.mxu0 0.0
        %2458 = vmatpush.msra.mxu0 0.0
        %2459 = vmatpush.msra.mxu0 %v2141
        %2460 = vmatmul.f32.gmra.mxu0 %v2442
        %v2461 = vpop.f32.mrf.mxu0
        %v2462 = vadd.f32 0.0, %v2461
        %2463 = vdwg.mxu0
        %v2465 = vsel %vm792, %v2294, 0
        %v2468 = vsel %vm792, %v2318, 0
        %v2471 = vsel %vm792, %v2342, 0
        %v2474 = vsel %vm792, %v2366, 0
        %v2477 = vsel %vm792, %v2390, 0
        %v2480 = vsel %vm792, %v2414, 0
        %v2483 = vsel %vm792, %v2438, 0
        %v2486 = vsel %vm792, %v2462, 0
        %2488 = vmatpush.msra.mxu0 0.0
        %2489 = vmatpush.msra.mxu0 0.0
        %2490 = vmatpush.msra.mxu0 0.0
        %2491 = vmatpush.msra.mxu0 0.0
        %2492 = vmatpush.msra.mxu0 0.0
        %2493 = vmatpush.msra.mxu0 0.0
        %2494 = vmatpush.msra.mxu0 0.0
        %2495 = vmatpush.msra.mxu0 0.0
        %2496 = vmatpush.msra.mxu0 0.0
        %2497 = vmatpush.msra.mxu0 0.0
        %2498 = vmatpush.msra.mxu0 0.0
        %2499 = vmatpush.msra.mxu0 0.0
        %2500 = vmatpush.msra.mxu0 0.0
        %2501 = vmatpush.msra.mxu0 0.0
        %2502 = vmatpush.msra.mxu0 0.0
        %2503 = vmatpush.msra.mxu0 %v787
        %2504 = vmatmul.f32.gmra.mxu0 %v2465
        %v2505 = vpop.f32.mrf.mxu0
        %v2506 = vadd.f32 0.0, %v2505
        %2507 = vmatmul.f32.gmra.mxu0 %v2468
        %v2508 = vpop.f32.mrf.mxu0
        %v2509 = vadd.f32 0.0, %v2508
        %2510 = vmatmul.f32.gmra.mxu0 %v2471
        %v2511 = vpop.f32.mrf.mxu0
        %v2512 = vadd.f32 0.0, %v2511
        %2513 = vmatmul.f32.gmra.mxu0 %v2474
        %v2514 = vpop.f32.mrf.mxu0
        %v2515 = vadd.f32 0.0, %v2514
        %2516 = vmatmul.f32.gmra.mxu0 %v2477
        %v2517 = vpop.f32.mrf.mxu0
        %v2518 = vadd.f32 0.0, %v2517
        %2519 = vmatmul.f32.gmra.mxu0 %v2480
        %v2520 = vpop.f32.mrf.mxu0
        %v2521 = vadd.f32 0.0, %v2520
        %2522 = vmatmul.f32.gmra.mxu0 %v2483
        %v2523 = vpop.f32.mrf.mxu0
        %v2524 = vadd.f32 0.0, %v2523
        %2525 = vmatmul.f32.gmra.mxu0 %v2486
        %v2526 = vpop.f32.mrf.mxu0
        %v2527 = vadd.f32 0.0, %v2526
        %2528 = vdwg.mxu0
        %v2529 = vadd.f32 %v1921, %v2506
        %v2530 = vadd.f32 %v1924, %v2509
        %v2531 = vadd.f32 %v1927, %v2512
        %v2532 = vadd.f32 %v1930, %v2515
        %v2533 = vadd.f32 %v1933, %v2518
        %v2534 = vadd.f32 %v1936, %v2521
        %v2535 = vadd.f32 %v1939, %v2524
        %v2536 = vadd.f32 %v1942, %v2527
        %2537 = vrot.lane.b32.xlu0 %v756, 104
        %v2538 = vpop.permute.xlu0 %2537
        %2539 = vrot.lane.b32.xlu0 %v756, 72
        %v2540 = vpop.permute.xlu0 %2539
        %v2541 = vsel %vm792, %v2538, 0
        %v2543 = vsel %vm792, %v2540, 0
        %2545 = vmatpush.xpose.msra.mxu0 0.0
        %2546 = vmatpush.xpose.msra.mxu0 0.0
        %2547 = vmatpush.xpose.msra.mxu0 0.0
        %2548 = vmatpush.xpose.msra.mxu0 0.0
        %2549 = vmatpush.xpose.msra.mxu0 0.0
        %2550 = vmatpush.xpose.msra.mxu0 0.0
        %2551 = vmatpush.xpose.msra.mxu0 0.0
        %2552 = vmatpush.xpose.msra.mxu0 0.0
        %2553 = vmatpush.xpose.msra.mxu0 0.0
        %2554 = vmatpush.xpose.msra.mxu0 0.0
        %2555 = vmatpush.xpose.msra.mxu0 0.0
        %2556 = vmatpush.xpose.msra.mxu0 0.0
        %2557 = vmatpush.xpose.msra.mxu0 0.0
        %2558 = vmatpush.xpose.msra.mxu0 0.0
        %2559 = vmatpush.xpose.msra.mxu0 0.0
        %2560 = vmatpush.xpose.msra.mxu0 %v2543
        %2561 = vmatmul.f32.gmra.mxu0 %v2541
        %v2562 = vpop.f32.mrf.mxu0
        %v2563 = vadd.f32 0.0, %v2562
        %2564 = vdwg.mxu0
        %2565 = vrot.lane.b32.xlu0 %v759, 104
        %v2566 = vpop.permute.xlu0 %2565
        %2567 = vrot.lane.b32.xlu0 %v759, 72
        %v2568 = vpop.permute.xlu0 %2567
        %v2569 = vsel %vm792, %v2566, 0
        %v2571 = vsel %vm792, %v2568, 0
        %2573 = vmatpush.xpose.msra.mxu0 0.0
        %2574 = vmatpush.xpose.msra.mxu0 0.0
        %2575 = vmatpush.xpose.msra.mxu0 0.0
        %2576 = vmatpush.xpose.msra.mxu0 0.0
        %2577 = vmatpush.xpose.msra.mxu0 0.0
        %2578 = vmatpush.xpose.msra.mxu0 0.0
        %2579 = vmatpush.xpose.msra.mxu0 0.0
        %2580 = vmatpush.xpose.msra.mxu0 0.0
        %2581 = vmatpush.xpose.msra.mxu0 0.0
        %2582 = vmatpush.xpose.msra.mxu0 0.0
        %2583 = vmatpush.xpose.msra.mxu0 0.0
        %2584 = vmatpush.xpose.msra.mxu0 0.0
        %2585 = vmatpush.xpose.msra.mxu0 0.0
        %2586 = vmatpush.xpose.msra.mxu0 0.0
        %2587 = vmatpush.xpose.msra.mxu0 0.0
        %2588 = vmatpush.xpose.msra.mxu0 %v2571
        %2589 = vmatmul.f32.gmra.mxu0 %v2569
        %v2590 = vpop.f32.mrf.mxu0
        %v2591 = vadd.f32 0.0, %v2590
        %2592 = vdwg.mxu0
        %2593 = vrot.lane.b32.xlu0 %v762, 104
        %v2594 = vpop.permute.xlu0 %2593
        %2595 = vrot.lane.b32.xlu0 %v762, 72
        %v2596 = vpop.permute.xlu0 %2595
        %v2597 = vsel %vm792, %v2594, 0
        %v2599 = vsel %vm792, %v2596, 0
        %2601 = vmatpush.xpose.msra.mxu0 0.0
        %2602 = vmatpush.xpose.msra.mxu0 0.0
        %2603 = vmatpush.xpose.msra.mxu0 0.0
        %2604 = vmatpush.xpose.msra.mxu0 0.0
        %2605 = vmatpush.xpose.msra.mxu0 0.0
        %2606 = vmatpush.xpose.msra.mxu0 0.0
        %2607 = vmatpush.xpose.msra.mxu0 0.0
        %2608 = vmatpush.xpose.msra.mxu0 0.0
        %2609 = vmatpush.xpose.msra.mxu0 0.0
        %2610 = vmatpush.xpose.msra.mxu0 0.0
        %2611 = vmatpush.xpose.msra.mxu0 0.0
        %2612 = vmatpush.xpose.msra.mxu0 0.0
        %2613 = vmatpush.xpose.msra.mxu0 0.0
        %2614 = vmatpush.xpose.msra.mxu0 0.0
        %2615 = vmatpush.xpose.msra.mxu0 0.0
        %2616 = vmatpush.xpose.msra.mxu0 %v2599
        %2617 = vmatmul.f32.gmra.mxu0 %v2597
        %v2618 = vpop.f32.mrf.mxu0
        %v2619 = vadd.f32 0.0, %v2618
        %2620 = vdwg.mxu0
        %2621 = vrot.lane.b32.xlu0 %v765, 104
        %v2622 = vpop.permute.xlu0 %2621
        %2623 = vrot.lane.b32.xlu0 %v765, 72
        %v2624 = vpop.permute.xlu0 %2623
        %v2625 = vsel %vm792, %v2622, 0
        %v2627 = vsel %vm792, %v2624, 0
        %2629 = vmatpush.xpose.msra.mxu0 0.0
        %2630 = vmatpush.xpose.msra.mxu0 0.0
        %2631 = vmatpush.xpose.msra.mxu0 0.0
        %2632 = vmatpush.xpose.msra.mxu0 0.0
        %2633 = vmatpush.xpose.msra.mxu0 0.0
        %2634 = vmatpush.xpose.msra.mxu0 0.0
        %2635 = vmatpush.xpose.msra.mxu0 0.0
        %2636 = vmatpush.xpose.msra.mxu0 0.0
        %2637 = vmatpush.xpose.msra.mxu0 0.0
        %2638 = vmatpush.xpose.msra.mxu0 0.0
        %2639 = vmatpush.xpose.msra.mxu0 0.0
        %2640 = vmatpush.xpose.msra.mxu0 0.0
        %2641 = vmatpush.xpose.msra.mxu0 0.0
        %2642 = vmatpush.xpose.msra.mxu0 0.0
        %2643 = vmatpush.xpose.msra.mxu0 0.0
        %2644 = vmatpush.xpose.msra.mxu0 %v2627
        %2645 = vmatmul.f32.gmra.mxu0 %v2625
        %v2646 = vpop.f32.mrf.mxu0
        %v2647 = vadd.f32 0.0, %v2646
        %2648 = vdwg.mxu0
        %2649 = vrot.lane.b32.xlu0 %v768, 104
        %v2650 = vpop.permute.xlu0 %2649
        %2651 = vrot.lane.b32.xlu0 %v768, 72
        %v2652 = vpop.permute.xlu0 %2651
        %v2653 = vsel %vm792, %v2650, 0
        %v2655 = vsel %vm792, %v2652, 0
        %2657 = vmatpush.xpose.msra.mxu0 0.0
        %2658 = vmatpush.xpose.msra.mxu0 0.0
        %2659 = vmatpush.xpose.msra.mxu0 0.0
        %2660 = vmatpush.xpose.msra.mxu0 0.0
        %2661 = vmatpush.xpose.msra.mxu0 0.0
        %2662 = vmatpush.xpose.msra.mxu0 0.0
        %2663 = vmatpush.xpose.msra.mxu0 0.0
        %2664 = vmatpush.xpose.msra.mxu0 0.0
        %2665 = vmatpush.xpose.msra.mxu0 0.0
        %2666 = vmatpush.xpose.msra.mxu0 0.0
        %2667 = vmatpush.xpose.msra.mxu0 0.0
        %2668 = vmatpush.xpose.msra.mxu0 0.0
        %2669 = vmatpush.xpose.msra.mxu0 0.0
        %2670 = vmatpush.xpose.msra.mxu0 0.0
        %2671 = vmatpush.xpose.msra.mxu0 0.0
        %2672 = vmatpush.xpose.msra.mxu0 %v2655
        %2673 = vmatmul.f32.gmra.mxu0 %v2653
        %v2674 = vpop.f32.mrf.mxu0
        %v2675 = vadd.f32 0.0, %v2674
        %2676 = vdwg.mxu0
        %2677 = vrot.lane.b32.xlu0 %v771, 104
        %v2678 = vpop.permute.xlu0 %2677
        %2679 = vrot.lane.b32.xlu0 %v771, 72
        %v2680 = vpop.permute.xlu0 %2679
        %v2681 = vsel %vm792, %v2678, 0
        %v2683 = vsel %vm792, %v2680, 0
        %2685 = vmatpush.xpose.msra.mxu0 0.0
        %2686 = vmatpush.xpose.msra.mxu0 0.0
        %2687 = vmatpush.xpose.msra.mxu0 0.0
        %2688 = vmatpush.xpose.msra.mxu0 0.0
        %2689 = vmatpush.xpose.msra.mxu0 0.0
        %2690 = vmatpush.xpose.msra.mxu0 0.0
        %2691 = vmatpush.xpose.msra.mxu0 0.0
        %2692 = vmatpush.xpose.msra.mxu0 0.0
        %2693 = vmatpush.xpose.msra.mxu0 0.0
        %2694 = vmatpush.xpose.msra.mxu0 0.0
        %2695 = vmatpush.xpose.msra.mxu0 0.0
        %2696 = vmatpush.xpose.msra.mxu0 0.0
        %2697 = vmatpush.xpose.msra.mxu0 0.0
        %2698 = vmatpush.xpose.msra.mxu0 0.0
        %2699 = vmatpush.xpose.msra.mxu0 0.0
        %2700 = vmatpush.xpose.msra.mxu0 %v2683
        %2701 = vmatmul.f32.gmra.mxu0 %v2681
        %v2702 = vpop.f32.mrf.mxu0
        %v2703 = vadd.f32 0.0, %v2702
        %2704 = vdwg.mxu0
        %2705 = vrot.lane.b32.xlu0 %v774, 104
        %v2706 = vpop.permute.xlu0 %2705
        %2707 = vrot.lane.b32.xlu0 %v774, 72
        %v2708 = vpop.permute.xlu0 %2707
        %v2709 = vsel %vm792, %v2706, 0
        %v2711 = vsel %vm792, %v2708, 0
        %2713 = vmatpush.xpose.msra.mxu0 0.0
        %2714 = vmatpush.xpose.msra.mxu0 0.0
        %2715 = vmatpush.xpose.msra.mxu0 0.0
        %2716 = vmatpush.xpose.msra.mxu0 0.0
        %2717 = vmatpush.xpose.msra.mxu0 0.0
        %2718 = vmatpush.xpose.msra.mxu0 0.0
        %2719 = vmatpush.xpose.msra.mxu0 0.0
        %2720 = vmatpush.xpose.msra.mxu0 0.0
        %2721 = vmatpush.xpose.msra.mxu0 0.0
        %2722 = vmatpush.xpose.msra.mxu0 0.0
        %2723 = vmatpush.xpose.msra.mxu0 0.0
        %2724 = vmatpush.xpose.msra.mxu0 0.0
        %2725 = vmatpush.xpose.msra.mxu0 0.0
        %2726 = vmatpush.xpose.msra.mxu0 0.0
        %2727 = vmatpush.xpose.msra.mxu0 0.0
        %2728 = vmatpush.xpose.msra.mxu0 %v2711
        %2729 = vmatmul.f32.gmra.mxu0 %v2709
        %v2730 = vpop.f32.mrf.mxu0
        %v2731 = vadd.f32 0.0, %v2730
        %2732 = vdwg.mxu0
        %2733 = vrot.lane.b32.xlu0 %v777, 104
        %v2734 = vpop.permute.xlu0 %2733
        %2735 = vrot.lane.b32.xlu0 %v777, 72
        %v2736 = vpop.permute.xlu0 %2735
        %v2737 = vsel %vm792, %v2734, 0
        %v2739 = vsel %vm792, %v2736, 0
        %2741 = vmatpush.xpose.msra.mxu0 0.0
        %2742 = vmatpush.xpose.msra.mxu0 0.0
        %2743 = vmatpush.xpose.msra.mxu0 0.0
        %2744 = vmatpush.xpose.msra.mxu0 0.0
        %2745 = vmatpush.xpose.msra.mxu0 0.0
        %2746 = vmatpush.xpose.msra.mxu0 0.0
        %2747 = vmatpush.xpose.msra.mxu0 0.0
        %2748 = vmatpush.xpose.msra.mxu0 0.0
        %2749 = vmatpush.xpose.msra.mxu0 0.0
        %2750 = vmatpush.xpose.msra.mxu0 0.0
        %2751 = vmatpush.xpose.msra.mxu0 0.0
        %2752 = vmatpush.xpose.msra.mxu0 0.0
        %2753 = vmatpush.xpose.msra.mxu0 0.0
        %2754 = vmatpush.xpose.msra.mxu0 0.0
        %2755 = vmatpush.xpose.msra.mxu0 0.0
        %2756 = vmatpush.xpose.msra.mxu0 %v2739
        %2757 = vmatmul.f32.gmra.mxu0 %v2737
        %v2758 = vpop.f32.mrf.mxu0
        %v2759 = vadd.f32 0.0, %v2758
        %2760 = vdwg.mxu0
        %v2761 = vmul.f32 %v2563, 0.35355338
        %v2762 = vmul.f32 %v2591, 0.35355338
        %v2763 = vmul.f32 %v2619, 0.35355338
        %v2764 = vmul.f32 %v2647, 0.35355338
        %v2765 = vmul.f32 %v2675, 0.35355338
        %v2766 = vmul.f32 %v2703, 0.35355338
        %v2767 = vmul.f32 %v2731, 0.35355338
        %v2768 = vmul.f32 %v2759, 0.35355338
        %v2769 = vadd.f32 %v2761, %v784
        %v2770 = vadd.f32 %v2762, %v784
        %v2771 = vadd.f32 %v2763, %v784
        %v2772 = vadd.f32 %v2764, %v784
        %v2773 = vadd.f32 %v2765, %v784
        %v2774 = vadd.f32 %v2766, %v784
        %v2775 = vadd.f32 %v2767, %v784
        %v2776 = vadd.f32 %v2768, %v784
        %v2777 = vsel %vm792, %v2769, -inf
        %2778 = vmax.xlane.f32.xlu0 %v2777
        %v2779 = vpop.xlane.xlu0 %2778
        %v2780 = vsel %vm792, %v2770, -inf
        %2781 = vmax.xlane.f32.xlu0 %v2780
        %v2782 = vpop.xlane.xlu0 %2781
        %v2783 = vsel %vm792, %v2771, -inf
        %2784 = vmax.xlane.f32.xlu0 %v2783
        %v2785 = vpop.xlane.xlu0 %2784
        %v2786 = vsel %vm792, %v2772, -inf
        %2787 = vmax.xlane.f32.xlu0 %v2786
        %v2788 = vpop.xlane.xlu0 %2787
        %v2789 = vsel %vm792, %v2773, -inf
        %2790 = vmax.xlane.f32.xlu0 %v2789
        %v2791 = vpop.xlane.xlu0 %2790
        %v2792 = vsel %vm792, %v2774, -inf
        %2793 = vmax.xlane.f32.xlu0 %v2792
        %v2794 = vpop.xlane.xlu0 %2793
        %v2795 = vsel %vm792, %v2775, -inf
        %2796 = vmax.xlane.f32.xlu0 %v2795
        %v2797 = vpop.xlane.xlu0 %2796
        %v2798 = vsel %vm792, %v2776, -inf
        %2799 = vmax.xlane.f32.xlu0 %v2798
        %v2800 = vpop.xlane.xlu0 %2799
        %v2801 = vsub.f32 %v2769, %v2779
        %v2802 = vsub.f32 %v2770, %v2782
        %v2803 = vsub.f32 %v2771, %v2785
        %v2804 = vsub.f32 %v2772, %v2788
        %v2805 = vsub.f32 %v2773, %v2791
        %v2806 = vsub.f32 %v2774, %v2794
        %v2807 = vsub.f32 %v2775, %v2797
        %v2808 = vsub.f32 %v2776, %v2800
        %v2809 = vmul.f32 %v2801, 1.442695
        %v2810 = vpow.pop %v2809
        %v2811 = vmul.f32 %v2802, 1.442695
        %v2812 = vpow.pop %v2811
        %v2813 = vmul.f32 %v2803, 1.442695
        %v2814 = vpow.pop %v2813
        %v2815 = vmul.f32 %v2804, 1.442695
        %v2816 = vpow.pop %v2815
        %v2817 = vmul.f32 %v2805, 1.442695
        %v2818 = vpow.pop %v2817
        %v2819 = vmul.f32 %v2806, 1.442695
        %v2820 = vpow.pop %v2819
        %v2821 = vmul.f32 %v2807, 1.442695
        %v2822 = vpow.pop %v2821
        %v2823 = vmul.f32 %v2808, 1.442695
        %v2824 = vpow.pop %v2823
        %v2825 = vsel %vm792, %v2810, 0.0
        %2826 = vadd.xlane.f32.xlu0 %v2825
        %v2827 = vpop.xlane.xlu0 %2826
        %v2828 = vsel %vm792, %v2812, 0.0
        %2829 = vadd.xlane.f32.xlu0 %v2828
        %v2830 = vpop.xlane.xlu0 %2829
        %v2831 = vsel %vm792, %v2814, 0.0
        %2832 = vadd.xlane.f32.xlu0 %v2831
        %v2833 = vpop.xlane.xlu0 %2832
        %v2834 = vsel %vm792, %v2816, 0.0
        %2835 = vadd.xlane.f32.xlu0 %v2834
        %v2836 = vpop.xlane.xlu0 %2835
        %v2837 = vsel %vm792, %v2818, 0.0
        %2838 = vadd.xlane.f32.xlu0 %v2837
        %v2839 = vpop.xlane.xlu0 %2838
        %v2840 = vsel %vm792, %v2820, 0.0
        %2841 = vadd.xlane.f32.xlu0 %v2840
        %v2842 = vpop.xlane.xlu0 %2841
        %v2843 = vsel %vm792, %v2822, 0.0
        %2844 = vadd.xlane.f32.xlu0 %v2843
        %v2845 = vpop.xlane.xlu0 %2844
        %v2846 = vsel %vm792, %v2824, 0.0
        %2847 = vadd.xlane.f32.xlu0 %v2846
        %v2848 = vpop.xlane.xlu0 %2847
        %v2849 = vrcp.pop %v2827
        %v2850 = vrcp.pop %v2830
        %v2851 = vrcp.pop %v2833
        %v2852 = vrcp.pop %v2836
        %v2853 = vrcp.pop %v2839
        %v2854 = vrcp.pop %v2842
        %v2855 = vrcp.pop %v2845
        %v2856 = vrcp.pop %v2848
        %v2857 = vmul.f32 %v2810, %v2849
        %v2858 = vmul.f32 %v2812, %v2850
        %v2859 = vmul.f32 %v2814, %v2851
        %v2860 = vmul.f32 %v2816, %v2852
        %v2861 = vmul.f32 %v2818, %v2853
        %v2862 = vmul.f32 %v2820, %v2854
        %v2863 = vmul.f32 %v2822, %v2855
        %v2864 = vmul.f32 %v2824, %v2856
        %v2867 = vsel %vm792, %v2857, 0
        %2869 = vmatpush.msra.mxu0 0.0
        %2870 = vmatpush.msra.mxu0 0.0
        %2871 = vmatpush.msra.mxu0 0.0
        %2872 = vmatpush.msra.mxu0 0.0
        %2873 = vmatpush.msra.mxu0 0.0
        %2874 = vmatpush.msra.mxu0 0.0
        %2875 = vmatpush.msra.mxu0 0.0
        %2876 = vmatpush.msra.mxu0 0.0
        %2877 = vmatpush.msra.mxu0 0.0
        %2878 = vmatpush.msra.mxu0 0.0
        %2879 = vmatpush.msra.mxu0 0.0
        %2880 = vmatpush.msra.mxu0 0.0
        %2881 = vmatpush.msra.mxu0 0.0
        %2882 = vmatpush.msra.mxu0 0.0
        %2883 = vmatpush.msra.mxu0 0.0
        %2884 = vmatpush.msra.mxu0 %v2538
        %2885 = vmatmul.f32.gmra.mxu0 %v2867
        %v2886 = vpop.f32.mrf.mxu0
        %v2887 = vadd.f32 0.0, %v2886
        %2888 = vdwg.mxu0
        %v2891 = vsel %vm792, %v2858, 0
        %2893 = vmatpush.msra.mxu0 0.0
        %2894 = vmatpush.msra.mxu0 0.0
        %2895 = vmatpush.msra.mxu0 0.0
        %2896 = vmatpush.msra.mxu0 0.0
        %2897 = vmatpush.msra.mxu0 0.0
        %2898 = vmatpush.msra.mxu0 0.0
        %2899 = vmatpush.msra.mxu0 0.0
        %2900 = vmatpush.msra.mxu0 0.0
        %2901 = vmatpush.msra.mxu0 0.0
        %2902 = vmatpush.msra.mxu0 0.0
        %2903 = vmatpush.msra.mxu0 0.0
        %2904 = vmatpush.msra.mxu0 0.0
        %2905 = vmatpush.msra.mxu0 0.0
        %2906 = vmatpush.msra.mxu0 0.0
        %2907 = vmatpush.msra.mxu0 0.0
        %2908 = vmatpush.msra.mxu0 %v2566
        %2909 = vmatmul.f32.gmra.mxu0 %v2891
        %v2910 = vpop.f32.mrf.mxu0
        %v2911 = vadd.f32 0.0, %v2910
        %2912 = vdwg.mxu0
        %v2915 = vsel %vm792, %v2859, 0
        %2917 = vmatpush.msra.mxu0 0.0
        %2918 = vmatpush.msra.mxu0 0.0
        %2919 = vmatpush.msra.mxu0 0.0
        %2920 = vmatpush.msra.mxu0 0.0
        %2921 = vmatpush.msra.mxu0 0.0
        %2922 = vmatpush.msra.mxu0 0.0
        %2923 = vmatpush.msra.mxu0 0.0
        %2924 = vmatpush.msra.mxu0 0.0
        %2925 = vmatpush.msra.mxu0 0.0
        %2926 = vmatpush.msra.mxu0 0.0
        %2927 = vmatpush.msra.mxu0 0.0
        %2928 = vmatpush.msra.mxu0 0.0
        %2929 = vmatpush.msra.mxu0 0.0
        %2930 = vmatpush.msra.mxu0 0.0
        %2931 = vmatpush.msra.mxu0 0.0
        %2932 = vmatpush.msra.mxu0 %v2594
        %2933 = vmatmul.f32.gmra.mxu0 %v2915
        %v2934 = vpop.f32.mrf.mxu0
        %v2935 = vadd.f32 0.0, %v2934
        %2936 = vdwg.mxu0
        %v2939 = vsel %vm792, %v2860, 0
        %2941 = vmatpush.msra.mxu0 0.0
        %2942 = vmatpush.msra.mxu0 0.0
        %2943 = vmatpush.msra.mxu0 0.0
        %2944 = vmatpush.msra.mxu0 0.0
        %2945 = vmatpush.msra.mxu0 0.0
        %2946 = vmatpush.msra.mxu0 0.0
        %2947 = vmatpush.msra.mxu0 0.0
        %2948 = vmatpush.msra.mxu0 0.0
        %2949 = vmatpush.msra.mxu0 0.0
        %2950 = vmatpush.msra.mxu0 0.0
        %2951 = vmatpush.msra.mxu0 0.0
        %2952 = vmatpush.msra.mxu0 0.0
        %2953 = vmatpush.msra.mxu0 0.0
        %2954 = vmatpush.msra.mxu0 0.0
        %2955 = vmatpush.msra.mxu0 0.0
        %2956 = vmatpush.msra.mxu0 %v2622
        %2957 = vmatmul.f32.gmra.mxu0 %v2939
        %v2958 = vpop.f32.mrf.mxu0
        %v2959 = vadd.f32 0.0, %v2958
        %2960 = vdwg.mxu0
        %v2963 = vsel %vm792, %v2861, 0
        %2965 = vmatpush.msra.mxu0 0.0
        %2966 = vmatpush.msra.mxu0 0.0
        %2967 = vmatpush.msra.mxu0 0.0
        %2968 = vmatpush.msra.mxu0 0.0
        %2969 = vmatpush.msra.mxu0 0.0
        %2970 = vmatpush.msra.mxu0 0.0
        %2971 = vmatpush.msra.mxu0 0.0
        %2972 = vmatpush.msra.mxu0 0.0
        %2973 = vmatpush.msra.mxu0 0.0
        %2974 = vmatpush.msra.mxu0 0.0
        %2975 = vmatpush.msra.mxu0 0.0
        %2976 = vmatpush.msra.mxu0 0.0
        %2977 = vmatpush.msra.mxu0 0.0
        %2978 = vmatpush.msra.mxu0 0.0
        %2979 = vmatpush.msra.mxu0 0.0
        %2980 = vmatpush.msra.mxu0 %v2650
        %2981 = vmatmul.f32.gmra.mxu0 %v2963
        %v2982 = vpop.f32.mrf.mxu0
        %v2983 = vadd.f32 0.0, %v2982
        %2984 = vdwg.mxu0
        %v2987 = vsel %vm792, %v2862, 0
        %2989 = vmatpush.msra.mxu0 0.0
        %2990 = vmatpush.msra.mxu0 0.0
        %2991 = vmatpush.msra.mxu0 0.0
        %2992 = vmatpush.msra.mxu0 0.0
        %2993 = vmatpush.msra.mxu0 0.0
        %2994 = vmatpush.msra.mxu0 0.0
        %2995 = vmatpush.msra.mxu0 0.0
        %2996 = vmatpush.msra.mxu0 0.0
        %2997 = vmatpush.msra.mxu0 0.0
        %2998 = vmatpush.msra.mxu0 0.0
        %2999 = vmatpush.msra.mxu0 0.0
        %3000 = vmatpush.msra.mxu0 0.0
        %3001 = vmatpush.msra.mxu0 0.0
        %3002 = vmatpush.msra.mxu0 0.0
        %3003 = vmatpush.msra.mxu0 0.0
        %3004 = vmatpush.msra.mxu0 %v2678
        %3005 = vmatmul.f32.gmra.mxu0 %v2987
        %v3006 = vpop.f32.mrf.mxu0
        %v3007 = vadd.f32 0.0, %v3006
        %3008 = vdwg.mxu0
        %v3011 = vsel %vm792, %v2863, 0
        %3013 = vmatpush.msra.mxu0 0.0
        %3014 = vmatpush.msra.mxu0 0.0
        %3015 = vmatpush.msra.mxu0 0.0
        %3016 = vmatpush.msra.mxu0 0.0
        %3017 = vmatpush.msra.mxu0 0.0
        %3018 = vmatpush.msra.mxu0 0.0
        %3019 = vmatpush.msra.mxu0 0.0
        %3020 = vmatpush.msra.mxu0 0.0
        %3021 = vmatpush.msra.mxu0 0.0
        %3022 = vmatpush.msra.mxu0 0.0
        %3023 = vmatpush.msra.mxu0 0.0
        %3024 = vmatpush.msra.mxu0 0.0
        %3025 = vmatpush.msra.mxu0 0.0
        %3026 = vmatpush.msra.mxu0 0.0
        %3027 = vmatpush.msra.mxu0 0.0
        %3028 = vmatpush.msra.mxu0 %v2706
        %3029 = vmatmul.f32.gmra.mxu0 %v3011
        %v3030 = vpop.f32.mrf.mxu0
        %v3031 = vadd.f32 0.0, %v3030
        %3032 = vdwg.mxu0
        %v3035 = vsel %vm792, %v2864, 0
        %3037 = vmatpush.msra.mxu0 0.0
        %3038 = vmatpush.msra.mxu0 0.0
        %3039 = vmatpush.msra.mxu0 0.0
        %3040 = vmatpush.msra.mxu0 0.0
        %3041 = vmatpush.msra.mxu0 0.0
        %3042 = vmatpush.msra.mxu0 0.0
        %3043 = vmatpush.msra.mxu0 0.0
        %3044 = vmatpush.msra.mxu0 0.0
        %3045 = vmatpush.msra.mxu0 0.0
        %3046 = vmatpush.msra.mxu0 0.0
        %3047 = vmatpush.msra.mxu0 0.0
        %3048 = vmatpush.msra.mxu0 0.0
        %3049 = vmatpush.msra.mxu0 0.0
        %3050 = vmatpush.msra.mxu0 0.0
        %3051 = vmatpush.msra.mxu0 0.0
        %3052 = vmatpush.msra.mxu0 %v2734
        %3053 = vmatmul.f32.gmra.mxu0 %v3035
        %v3054 = vpop.f32.mrf.mxu0
        %v3055 = vadd.f32 0.0, %v3054
        %3056 = vdwg.mxu0
        %v3058 = vsel %vm792, %v2887, 0
        %v3061 = vsel %vm792, %v2911, 0
        %v3064 = vsel %vm792, %v2935, 0
        %v3067 = vsel %vm792, %v2959, 0
        %v3070 = vsel %vm792, %v2983, 0
        %v3073 = vsel %vm792, %v3007, 0
        %v3076 = vsel %vm792, %v3031, 0
        %v3079 = vsel %vm792, %v3055, 0
        %3081 = vmatpush.msra.mxu0 0.0
        %3082 = vmatpush.msra.mxu0 0.0
        %3083 = vmatpush.msra.mxu0 0.0
        %3084 = vmatpush.msra.mxu0 0.0
        %3085 = vmatpush.msra.mxu0 0.0
        %3086 = vmatpush.msra.mxu0 0.0
        %3087 = vmatpush.msra.mxu0 0.0
        %3088 = vmatpush.msra.mxu0 0.0
        %3089 = vmatpush.msra.mxu0 0.0
        %3090 = vmatpush.msra.mxu0 0.0
        %3091 = vmatpush.msra.mxu0 0.0
        %3092 = vmatpush.msra.mxu0 0.0
        %3093 = vmatpush.msra.mxu0 0.0
        %3094 = vmatpush.msra.mxu0 0.0
        %3095 = vmatpush.msra.mxu0 0.0
        %3096 = vmatpush.msra.mxu0 %v788
        %3097 = vmatmul.f32.gmra.mxu0 %v3058
        %v3098 = vpop.f32.mrf.mxu0
        %v3099 = vadd.f32 0.0, %v3098
        %3100 = vmatmul.f32.gmra.mxu0 %v3061
        %v3101 = vpop.f32.mrf.mxu0
        %v3102 = vadd.f32 0.0, %v3101
        %3103 = vmatmul.f32.gmra.mxu0 %v3064
        %v3104 = vpop.f32.mrf.mxu0
        %v3105 = vadd.f32 0.0, %v3104
        %3106 = vmatmul.f32.gmra.mxu0 %v3067
        %v3107 = vpop.f32.mrf.mxu0
        %v3108 = vadd.f32 0.0, %v3107
        %3109 = vmatmul.f32.gmra.mxu0 %v3070
        %v3110 = vpop.f32.mrf.mxu0
        %v3111 = vadd.f32 0.0, %v3110
        %3112 = vmatmul.f32.gmra.mxu0 %v3073
        %v3113 = vpop.f32.mrf.mxu0
        %v3114 = vadd.f32 0.0, %v3113
        %3115 = vmatmul.f32.gmra.mxu0 %v3076
        %v3116 = vpop.f32.mrf.mxu0
        %v3117 = vadd.f32 0.0, %v3116
        %3118 = vmatmul.f32.gmra.mxu0 %v3079
        %v3119 = vpop.f32.mrf.mxu0
        %v3120 = vadd.f32 0.0, %v3119
        %3121 = vdwg.mxu0
        %v3122 = vadd.f32 %v2529, %v3099
        %v3123 = vadd.f32 %v2530, %v3102
        %v3124 = vadd.f32 %v2531, %v3105
        %v3125 = vadd.f32 %v2532, %v3108
        %v3126 = vadd.f32 %v2533, %v3111
        %v3127 = vadd.f32 %v2534, %v3114
        %v3128 = vadd.f32 %v2535, %v3117
        %v3129 = vadd.f32 %v2536, %v3120
        %v3130 = vld [vmem:[%s6] sm:$0x1]
        %v3132 = vperm.slane %v3130, 0
        %v3134 = vadd.f32 %v3122, %v3132
        %v3135 = vadd.f32 %v3123, %v3132
        %v3136 = vadd.f32 %v3124, %v3132
        %v3137 = vadd.f32 %v3125, %v3132
        %v3138 = vadd.f32 %v3126, %v3132
        %v3139 = vadd.f32 %v3127, %v3132
        %v3140 = vadd.f32 %v3128, %v3132
        %v3141 = vadd.f32 %v3129, %v3132
        %v3142 = vadd.f32 %v490, %v3134
        %v3143 = vadd.f32 %v491, %v3135
        %v3144 = vadd.f32 %v492, %v3136
        %v3145 = vadd.f32 %v493, %v3137
        %v3146 = vadd.f32 %v494, %v3138
        %v3147 = vadd.f32 %v495, %v3139
        %v3148 = vadd.f32 %v496, %v3140
        %v3149 = vadd.f32 %v497, %v3141
        %v3150 = vld [vmem:[%s7] sm:$0x1]
        %v3151 = vld [vmem:[%s8] sm:$0x1]
        %v3152 = vsel %vm500, %v3142, 0.0
        %3153 = vadd.xlane.f32.xlu0 %v3152
        %v3154 = vpop.xlane.xlu0 %3153
        %v3155 = vsel %vm500, %v3143, 0.0
        %3156 = vadd.xlane.f32.xlu0 %v3155
        %v3157 = vpop.xlane.xlu0 %3156
        %v3158 = vsel %vm500, %v3144, 0.0
        %3159 = vadd.xlane.f32.xlu0 %v3158
        %v3160 = vpop.xlane.xlu0 %3159
        %v3161 = vsel %vm500, %v3145, 0.0
        %3162 = vadd.xlane.f32.xlu0 %v3161
        %v3163 = vpop.xlane.xlu0 %3162
        %v3164 = vsel %vm500, %v3146, 0.0
        %3165 = vadd.xlane.f32.xlu0 %v3164
        %v3166 = vpop.xlane.xlu0 %3165
        %v3167 = vsel %vm500, %v3147, 0.0
        %3168 = vadd.xlane.f32.xlu0 %v3167
        %v3169 = vpop.xlane.xlu0 %3168
        %v3170 = vsel %vm500, %v3148, 0.0
        %3171 = vadd.xlane.f32.xlu0 %v3170
        %v3172 = vpop.xlane.xlu0 %3171
        %v3173 = vsel %vm500, %v3149, 0.0
        %3174 = vadd.xlane.f32.xlu0 %v3173
        %v3175 = vpop.xlane.xlu0 %3174
        %v3176 = vmul.f32 %v3154, %v531
        %v3177 = vmul.f32 %v3157, %v531
        %v3178 = vmul.f32 %v3160, %v531
        %v3179 = vmul.f32 %v3163, %v531
        %v3180 = vmul.f32 %v3166, %v531
        %v3181 = vmul.f32 %v3169, %v531
        %v3182 = vmul.f32 %v3172, %v531
        %v3183 = vmul.f32 %v3175, %v531
        %v3184 = vsub.f32 %v3142, %v3176
        %v3185 = vsub.f32 %v3143, %v3177
        %v3186 = vsub.f32 %v3144, %v3178
        %v3187 = vsub.f32 %v3145, %v3179
        %v3188 = vsub.f32 %v3146, %v3180
        %v3189 = vsub.f32 %v3147, %v3181
        %v3190 = vsub.f32 %v3148, %v3182
        %v3191 = vsub.f32 %v3149, %v3183
        %v3192 = vmul.f32 %v3184, %v3184
        %v3193 = vmul.f32 %v3185, %v3185
        %v3194 = vmul.f32 %v3186, %v3186
        %v3195 = vmul.f32 %v3187, %v3187
        %v3196 = vmul.f32 %v3188, %v3188
        %v3197 = vmul.f32 %v3189, %v3189
        %v3198 = vmul.f32 %v3190, %v3190
        %v3199 = vmul.f32 %v3191, %v3191
        %v3200 = vsel %vm500, %v3192, 0.0
        %3201 = vadd.xlane.f32.xlu0 %v3200
        %v3202 = vpop.xlane.xlu0 %3201
        %v3203 = vsel %vm500, %v3193, 0.0
        %3204 = vadd.xlane.f32.xlu0 %v3203
        %v3205 = vpop.xlane.xlu0 %3204
        %v3206 = vsel %vm500, %v3194, 0.0
        %3207 = vadd.xlane.f32.xlu0 %v3206
        %v3208 = vpop.xlane.xlu0 %3207
        %v3209 = vsel %vm500, %v3195, 0.0
        %3210 = vadd.xlane.f32.xlu0 %v3209
        %v3211 = vpop.xlane.xlu0 %3210
        %v3212 = vsel %vm500, %v3196, 0.0
        %3213 = vadd.xlane.f32.xlu0 %v3212
        %v3214 = vpop.xlane.xlu0 %3213
        %v3215 = vsel %vm500, %v3197, 0.0
        %3216 = vadd.xlane.f32.xlu0 %v3215
        %v3217 = vpop.xlane.xlu0 %3216
        %v3218 = vsel %vm500, %v3198, 0.0
        %3219 = vadd.xlane.f32.xlu0 %v3218
        %v3220 = vpop.xlane.xlu0 %3219
        %v3221 = vsel %vm500, %v3199, 0.0
        %3222 = vadd.xlane.f32.xlu0 %v3221
        %v3223 = vpop.xlane.xlu0 %3222
        %v3224 = vmul.f32 %v3202, %v531
        %v3225 = vmul.f32 %v3205, %v531
        %v3226 = vmul.f32 %v3208, %v531
        %v3227 = vmul.f32 %v3211, %v531
        %v3228 = vmul.f32 %v3214, %v531
        %v3229 = vmul.f32 %v3217, %v531
        %v3230 = vmul.f32 %v3220, %v531
        %v3231 = vmul.f32 %v3223, %v531
        %v3232 = vadd.f32 %v3224, 1e-05
        %v3233 = vadd.f32 %v3225, 1e-05
        %v3234 = vadd.f32 %v3226, 1e-05
        %v3235 = vadd.f32 %v3227, 1e-05
        %v3236 = vadd.f32 %v3228, 1e-05
        %v3237 = vadd.f32 %v3229, 1e-05
        %v3238 = vadd.f32 %v3230, 1e-05
        %v3239 = vadd.f32 %v3231, 1e-05
        %v3240 = vrsqrt.pop %v3232
        %v3241 = vmul.f32 %v3240, %v3232
        %v3242 = vmul.f32 %v3241, %v3240
        %v3243 = vmul.f32 0.5, %v3242
        %v3244 = vsub.f32 1.5, %v3243
        %v3245 = vmul.f32 %v3240, %v3244
        %vm3246 = vweird.f32 %v3232
        %vm3247 = vweird.f32 %v3240
        %vm3248 = vmor %vm3246, %vm3247
        %v3249 = vsel %vm3248, %v3240, %v3245
        %v3250 = vrsqrt.pop %v3233
        %v3251 = vmul.f32 %v3250, %v3233
        %v3252 = vmul.f32 %v3251, %v3250
        %v3253 = vmul.f32 0.5, %v3252
        %v3254 = vsub.f32 1.5, %v3253
        %v3255 = vmul.f32 %v3250, %v3254
        %vm3256 = vweird.f32 %v3233
        %vm3257 = vweird.f32 %v3250
        %vm3258 = vmor %vm3256, %vm3257
        %v3259 = vsel %vm3258, %v3250, %v3255
        %v3260 = vrsqrt.pop %v3234
        %v3261 = vmul.f32 %v3260, %v3234
        %v3262 = vmul.f32 %v3261, %v3260
        %v3263 = vmul.f32 0.5, %v3262
        %v3264 = vsub.f32 1.5, %v3263
        %v3265 = vmul.f32 %v3260, %v3264
        %vm3266 = vweird.f32 %v3234
        %vm3267 = vweird.f32 %v3260
        %vm3268 = vmor %vm3266, %vm3267
        %v3269 = vsel %vm3268, %v3260, %v3265
        %v3270 = vrsqrt.pop %v3235
        %v3271 = vmul.f32 %v3270, %v3235
        %v3272 = vmul.f32 %v3271, %v3270
        %v3273 = vmul.f32 0.5, %v3272
        %v3274 = vsub.f32 1.5, %v3273
        %v3275 = vmul.f32 %v3270, %v3274
        %vm3276 = vweird.f32 %v3235
        %vm3277 = vweird.f32 %v3270
        %vm3278 = vmor %vm3276, %vm3277
        %v3279 = vsel %vm3278, %v3270, %v3275
        %v3280 = vrsqrt.pop %v3236
        %v3281 = vmul.f32 %v3280, %v3236
        %v3282 = vmul.f32 %v3281, %v3280
        %v3283 = vmul.f32 0.5, %v3282
        %v3284 = vsub.f32 1.5, %v3283
        %v3285 = vmul.f32 %v3280, %v3284
        %vm3286 = vweird.f32 %v3236
        %vm3287 = vweird.f32 %v3280
        %vm3288 = vmor %vm3286, %vm3287
        %v3289 = vsel %vm3288, %v3280, %v3285
        %v3290 = vrsqrt.pop %v3237
        %v3291 = vmul.f32 %v3290, %v3237
        %v3292 = vmul.f32 %v3291, %v3290
        %v3293 = vmul.f32 0.5, %v3292
        %v3294 = vsub.f32 1.5, %v3293
        %v3295 = vmul.f32 %v3290, %v3294
        %vm3296 = vweird.f32 %v3237
        %vm3297 = vweird.f32 %v3290
        %vm3298 = vmor %vm3296, %vm3297
        %v3299 = vsel %vm3298, %v3290, %v3295
        %v3300 = vrsqrt.pop %v3238
        %v3301 = vmul.f32 %v3300, %v3238
        %v3302 = vmul.f32 %v3301, %v3300
        %v3303 = vmul.f32 0.5, %v3302
        %v3304 = vsub.f32 1.5, %v3303
        %v3305 = vmul.f32 %v3300, %v3304
        %vm3306 = vweird.f32 %v3238
        %vm3307 = vweird.f32 %v3300
        %vm3308 = vmor %vm3306, %vm3307
        %v3309 = vsel %vm3308, %v3300, %v3305
        %v3310 = vrsqrt.pop %v3239
        %v3311 = vmul.f32 %v3310, %v3239
        %v3312 = vmul.f32 %v3311, %v3310
        %v3313 = vmul.f32 0.5, %v3312
        %v3314 = vsub.f32 1.5, %v3313
        %v3315 = vmul.f32 %v3310, %v3314
        %vm3316 = vweird.f32 %v3239
        %vm3317 = vweird.f32 %v3310
        %vm3318 = vmor %vm3316, %vm3317
        %v3319 = vsel %vm3318, %v3310, %v3315
        %v3320 = vmul.f32 %v3184, %v3249
        %v3321 = vmul.f32 %v3185, %v3259
        %v3322 = vmul.f32 %v3186, %v3269
        %v3323 = vmul.f32 %v3187, %v3279
        %v3324 = vmul.f32 %v3188, %v3289
        %v3325 = vmul.f32 %v3189, %v3299
        %v3326 = vmul.f32 %v3190, %v3309
        %v3327 = vmul.f32 %v3191, %v3319
        %v3329 = vperm.slane %v3150, 0
        %v3331 = vmul.f32 %v3320, %v3329
        %v3332 = vmul.f32 %v3321, %v3329
        %v3333 = vmul.f32 %v3322, %v3329
        %v3334 = vmul.f32 %v3323, %v3329
        %v3335 = vmul.f32 %v3324, %v3329
        %v3336 = vmul.f32 %v3325, %v3329
        %v3337 = vmul.f32 %v3326, %v3329
        %v3338 = vmul.f32 %v3327, %v3329
        %v3340 = vperm.slane %v3151, 0
        %v3342 = vadd.f32 %v3331, %v3340
        %v3343 = vadd.f32 %v3332, %v3340
        %v3344 = vadd.f32 %v3333, %v3340
        %v3345 = vadd.f32 %v3334, %v3340
        %v3346 = vadd.f32 %v3335, %v3340
        %v3347 = vadd.f32 %v3336, %v3340
        %v3348 = vadd.f32 %v3337, %v3340
        %v3349 = vadd.f32 %v3338, %v3340
        %v3350 = vld [vmem:[#allocation7] sm:$0xff]
        %v3351 = vld [vmem:[#allocation7 + $0x8] sm:$0xff]
        %v3352 = vld [vmem:[#allocation7 + $0x10] sm:$0xff]
        %v3353 = vld [vmem:[#allocation7 + $0x18] sm:$0xff]
        %v3354 = vld [vmem:[%s10] sm:$0x1]
        %v3356 = vperm.slane %v3354, 0
        %v3359 = vsel %vm500, %v3342, 0
        %v3362 = vsel %vm500, %v3343, 0
        %v3365 = vsel %vm500, %v3344, 0
        %v3368 = vsel %vm500, %v3345, 0
        %v3371 = vsel %vm500, %v3346, 0
        %v3374 = vsel %vm500, %v3347, 0
        %v3377 = vsel %vm500, %v3348, 0
        %v3380 = vsel %vm500, %v3349, 0
        %3382 = vmatpush.msra.mxu0 0.0
        %3383 = vmatpush.msra.mxu0 0.0
        %3384 = vmatpush.msra.mxu0 0.0
        %3385 = vmatpush.msra.mxu0 0.0
        %3386 = vmatpush.msra.mxu0 0.0
        %3387 = vmatpush.msra.mxu0 0.0
        %3388 = vmatpush.msra.mxu0 0.0
        %3389 = vmatpush.msra.mxu0 0.0
        %3390 = vmatpush.msra.mxu0 0.0
        %3391 = vmatpush.msra.mxu0 0.0
        %3392 = vmatpush.msra.mxu0 0.0
        %3393 = vmatpush.msra.mxu0 0.0
        %3394 = vmatpush.msra.mxu0 %v3353
        %3395 = vmatpush.msra.mxu0 %v3352
        %3396 = vmatpush.msra.mxu0 %v3351
        %3397 = vmatpush.msra.mxu0 %v3350
        %3398 = vmatmul.f32.gmra.mxu0 %v3359
        %v3399 = vpop.f32.mrf.mxu0
        %v3400 = vadd.f32 %v3356, %v3399
        %3401 = vmatmul.f32.gmra.mxu0 %v3362
        %v3402 = vpop.f32.mrf.mxu0
        %v3403 = vadd.f32 %v3356, %v3402
        %3404 = vmatmul.f32.gmra.mxu0 %v3365
        %v3405 = vpop.f32.mrf.mxu0
        %v3406 = vadd.f32 %v3356, %v3405
        %3407 = vmatmul.f32.gmra.mxu0 %v3368
        %v3408 = vpop.f32.mrf.mxu0
        %v3409 = vadd.f32 %v3356, %v3408
        %3410 = vmatmul.f32.gmra.mxu0 %v3371
        %v3411 = vpop.f32.mrf.mxu0
        %v3412 = vadd.f32 %v3356, %v3411
        %3413 = vmatmul.f32.gmra.mxu0 %v3374
        %v3414 = vpop.f32.mrf.mxu0
        %v3415 = vadd.f32 %v3356, %v3414
        %3416 = vmatmul.f32.gmra.mxu0 %v3377
        %v3417 = vpop.f32.mrf.mxu0
        %v3418 = vadd.f32 %v3356, %v3417
        %3419 = vmatmul.f32.gmra.mxu0 %v3380
        %v3420 = vpop.f32.mrf.mxu0
        %v3421 = vadd.f32 %v3356, %v3420
        %3422 = vdwg.mxu0
        %v3423 = vmul.f32 %v3400, 0.5
        %v3424 = vmul.f32 %v3403, 0.5
        %v3425 = vmul.f32 %v3406, 0.5
        %v3426 = vmul.f32 %v3409, 0.5
        %v3427 = vmul.f32 %v3412, 0.5
        %v3428 = vmul.f32 %v3415, 0.5
        %v3429 = vmul.f32 %v3418, 0.5
        %v3430 = vmul.f32 %v3421, 0.5
        %v3431 = vmul.f32 %v3400, %v3400
        %v3432 = vmul.f32 %v3403, %v3403
        %v3433 = vmul.f32 %v3406, %v3406
        %v3434 = vmul.f32 %v3409, %v3409
        %v3435 = vmul.f32 %v3412, %v3412
        %v3436 = vmul.f32 %v3415, %v3415
        %v3437 = vmul.f32 %v3418, %v3418
        %v3438 = vmul.f32 %v3421, %v3421
        %v3439 = vmul.f32 %v3400, %v3431
        %v3440 = vmul.f32 %v3403, %v3432
        %v3441 = vmul.f32 %v3406, %v3433
        %v3442 = vmul.f32 %v3409, %v3434
        %v3443 = vmul.f32 %v3412, %v3435
        %v3444 = vmul.f32 %v3415, %v3436
        %v3445 = vmul.f32 %v3418, %v3437
        %v3446 = vmul.f32 %v3421, %v3438
        %v3447 = vmul.f32 %v3439, 0.044715
        %v3448 = vmul.f32 %v3440, 0.044715
        %v3449 = vmul.f32 %v3441, 0.044715
        %v3450 = vmul.f32 %v3442, 0.044715
        %v3451 = vmul.f32 %v3443, 0.044715
        %v3452 = vmul.f32 %v3444, 0.044715
        %v3453 = vmul.f32 %v3445, 0.044715
        %v3454 = vmul.f32 %v3446, 0.044715
        %v3455 = vadd.f32 %v3400, %v3447
        %v3456 = vadd.f32 %v3403, %v3448
        %v3457 = vadd.f32 %v3406, %v3449
        %v3458 = vadd.f32 %v3409, %v3450
        %v3459 = vadd.f32 %v3412, %v3451
        %v3460 = vadd.f32 %v3415, %v3452
        %v3461 = vadd.f32 %v3418, %v3453
        %v3462 = vadd.f32 %v3421, %v3454
        %v3463 = vmul.f32 %v3455, 0.7978846
        %v3464 = vmul.f32 %v3456, 0.7978846
        %v3465 = vmul.f32 %v3457, 0.7978846
        %v3466 = vmul.f32 %v3458, 0.7978846
        %v3467 = vmul.f32 %v3459, 0.7978846
        %v3468 = vmul.f32 %v3460, 0.7978846
        %v3469 = vmul.f32 %v3461, 0.7978846
        %v3470 = vmul.f32 %v3462, 0.7978846
        %v3471 = vtanh.pop %v3463
        %v3472 = vtanh.pop %v3464
        %v3473 = vtanh.pop %v3465
        %v3474 = vtanh.pop %v3466
        %v3475 = vtanh.pop %v3467
        %v3476 = vtanh.pop %v3468
        %v3477 = vtanh.pop %v3469
        %v3478 = vtanh.pop %v3470
        %v3479 = vadd.f32 %v3471, 1.0
        %v3480 = vadd.f32 %v3472, 1.0
        %v3481 = vadd.f32 %v3473, 1.0
        %v3482 = vadd.f32 %v3474, 1.0
        %v3483 = vadd.f32 %v3475, 1.0
        %v3484 = vadd.f32 %v3476, 1.0
        %v3485 = vadd.f32 %v3477, 1.0
        %v3486 = vadd.f32 %v3478, 1.0
        %v3487 = vmul.f32 %v3423, %v3479
        %v3488 = vmul.f32 %v3424, %v3480
        %v3489 = vmul.f32 %v3425, %v3481
        %v3490 = vmul.f32 %v3426, %v3482
        %v3491 = vmul.f32 %v3427, %v3483
        %v3492 = vmul.f32 %v3428, %v3484
        %v3493 = vmul.f32 %v3429, %v3485
        %v3494 = vmul.f32 %v3430, %v3486
        %v3495 = vld [vmem:[%s11] sm:$0xff]
        %v3496 = vld [vmem:[%s11 + $0x8] sm:$0xff]
        %v3497 = vld [vmem:[%s11 + $0x10] sm:$0xff]
        %v3498 = vld [vmem:[%s11 + $0x18] sm:$0xff]
        %v3499 = vld [vmem:[%s11 + $0x20] sm:$0xff]
        %v3500 = vld [vmem:[%s11 + $0x28] sm:$0xff]
        %v3501 = vld [vmem:[%s11 + $0x30] sm:$0xff]
        %v3502 = vld [vmem:[%s11 + $0x38] sm:$0xff]
        %v3503 = vld [vmem:[%s11 + $0x40] sm:$0xff]
        %v3504 = vld [vmem:[%s11 + $0x48] sm:$0xff]
        %v3505 = vld [vmem:[%s11 + $0x50] sm:$0xff]
        %v3506 = vld [vmem:[%s11 + $0x58] sm:$0xff]
        %v3507 = vld [vmem:[%s11 + $0x60] sm:$0xff]
        %v3508 = vld [vmem:[%s11 + $0x68] sm:$0xff]
        %v3509 = vld [vmem:[%s11 + $0x70] sm:$0xff]
        %v3510 = vld [vmem:[%s11 + $0x78] sm:$0xff]
        %v3511 = vld [vmem:[%s12] sm:$0x1]
        %v3513 = vperm.slane %v3511, 0
        %3515 = vmatpush.msra.mxu0 %v3510
        %3516 = vmatpush.msra.mxu0 %v3509
        %3517 = vmatpush.msra.mxu0 %v3508
        %3518 = vmatpush.msra.mxu0 %v3507
        %3519 = vmatpush.msra.mxu0 %v3506
        %3520 = vmatpush.msra.mxu0 %v3505
        %3521 = vmatpush.msra.mxu0 %v3504
        %3522 = vmatpush.msra.mxu0 %v3503
        %3523 = vmatpush.msra.mxu0 %v3502
        %3524 = vmatpush.msra.mxu0 %v3501
        %3525 = vmatpush.msra.mxu0 %v3500
        %3526 = vmatpush.msra.mxu0 %v3499
        %3527 = vmatpush.msra.mxu0 %v3498
        %3528 = vmatpush.msra.mxu0 %v3497
        %3529 = vmatpush.msra.mxu0 %v3496
        %3530 = vmatpush.msra.mxu0 %v3495
        %3531 = vmatmul.f32.gmra.mxu0 %v3487
        %v3532 = vpop.f32.mrf.mxu0
        %v3533 = vadd.f32 %v3513, %v3532
        %3534 = vmatmul.f32.gmra.mxu0 %v3488
        %v3535 = vpop.f32.mrf.mxu0
        %v3536 = vadd.f32 %v3513, %v3535
        %3537 = vmatmul.f32.gmra.mxu0 %v3489
        %v3538 = vpop.f32.mrf.mxu0
        %v3539 = vadd.f32 %v3513, %v3538
        %3540 = vmatmul.f32.gmra.mxu0 %v3490
        %v3541 = vpop.f32.mrf.mxu0
        %v3542 = vadd.f32 %v3513, %v3541
        %3543 = vmatmul.f32.gmra.mxu0 %v3491
        %v3544 = vpop.f32.mrf.mxu0
        %v3545 = vadd.f32 %v3513, %v3544
        %3546 = vmatmul.f32.gmra.mxu0 %v3492
        %v3547 = vpop.f32.mrf.mxu0
        %v3548 = vadd.f32 %v3513, %v3547
        %3549 = vmatmul.f32.gmra.mxu0 %v3493
        %v3550 = vpop.f32.mrf.mxu0
        %v3551 = vadd.f32 %v3513, %v3550
        %3552 = vmatmul.f32.gmra.mxu0 %v3494
        %v3553 = vpop.f32.mrf.mxu0
        %v3554 = vadd.f32 %v3513, %v3553
        %3555 = vdwg.mxu0
        %v3556 = vadd.f32 %v3142, %v3533
        %v3557 = vadd.f32 %v3143, %v3536
        %v3558 = vadd.f32 %v3144, %v3539
        %v3559 = vadd.f32 %v3145, %v3542
        %v3560 = vadd.f32 %v3146, %v3545
        %v3561 = vadd.f32 %v3147, %v3548
        %v3562 = vadd.f32 %v3148, %v3551
        %v3563 = vadd.f32 %v3149, %v3554
        %3564 = vst.msk [vmem:[%s482] sm:$0xff] %vm500, %v3556
        %3565 = vst.msk [vmem:[%s482 + $0x8] sm:$0xff] %vm500, %v3557
        %3566 = vst.msk [vmem:[%s482 + $0x10] sm:$0xff] %vm500, %v3558
        %3567 = vst.msk [vmem:[%s482 + $0x18] sm:$0xff] %vm500, %v3559
        %3568 = vst.msk [vmem:[%s482 + $0x20] sm:$0xff] %vm500, %v3560
        %3569 = vst.msk [vmem:[%s482 + $0x28] sm:$0xff] %vm500, %v3561
        %3570 = vst.msk [vmem:[%s482 + $0x30] sm:$0xff] %vm500, %v3562
        %3571 = vst.msk [vmem:[%s482 + $0x38] sm:$0xff] %vm500, %v3563
        %s3572 = sand.u32 %s315, 1
        %s3573 = scalar_lea.sflag [#allocation4], %s3572
        %s3574 = sand.u32 %s315, 1
        %s3575 = smul.addr %s3574, 64
        %s3576 = scalar_lea.vmem [#allocation8], %s3575
        // Predicated region
        $region85: #{tpu_custom_call.1} parent=71 // pred_check
          %p3577 = pneg %p325
        $region86: #{tpu_custom_call.1} parent=71 // pred_check_branch
          %3579 = sbr.rel (%p3577) target = $region88
        $region87: #{tpu_custom_call.1} parent=71 // pred_region
          %s3580 = smul.u32 8, %s29
          %3582 = vsyncadd %s3573, 0
          %s3583 = smul.addr %s3580, 8
          %s3584 = scalar_lea.hbm %s13, %s3583
          %s3585 = sshll.u32 %s3576, 4
          %s3586 = int_to_ptr.vmem [resolvable:$true] %s3585
          %s3587 = sshll.u32 %s3584, 4
          %s3588 = int_to_ptr.hbm [resolvable:$true] %s3587
          %3593 = dma.vmem_to_hbm [thread:$0]  %s3586, 1024, %s3588, %s3573, 128, 128, 8
        $region88: #{tpu_custom_call.1} parent=71 // pred_fallthru
          _
      $region72: #{tpu_custom_call.1} parent=5 // pred_fallthru
        _
      %p3594 = scmp.le.s32.totalorder 2, %s24
      // Predicated region
      $region89: #{tpu_custom_call.1} parent=5 // pred_check
        %p3595 = pneg %p3594
      $region90: #{tpu_custom_call.1} parent=5 // pred_check_branch
        %3597 = sbr.rel (%p3595) target = $region92
      $region91: #{tpu_custom_call.1} parent=5 // pred_region
        %s3598 = ssub.s32 %s24, 2
        // Predicated region
        $region93: #{tpu_custom_call.1} parent=91 // pred_check
          %p3599 = pneg %p331
        $region94: #{tpu_custom_call.1} parent=91 // pred_check_branch
          %3601 = sbr.rel (%p3599) target = $region96
        $region95: #{tpu_custom_call.1} parent=91 // pred_region
          %s3602 = sand.u32 %s316, 1
          %s3603 = scalar_lea.sflag [#allocation4], %s3602
          %s3604 = sand.u32 %s316, 1
          %s3605 = smul.addr %s3604, 64
          %s3606 = scalar_lea.vmem [#allocation8], %s3605
          %3608 = dma.done %s3603, 1024
        $region96: #{tpu_custom_call.1} parent=91 // pred_fallthru
          _
      $region92: #{tpu_custom_call.1} parent=5 // pred_fallthru
        _
    $region6: #{tpu_custom_call.1} parent=1 // loop_footer
      %s28 = sadd.s32 1, %s24
    $region7: #{tpu_custom_call.1} parent=1 // loop_footer_branch
      %23 = sbr.rel target = $region3
    $region8: #{tpu_custom_call.1} parent=1 // loop_exit
      _
    %3609 = vsyncpa [#allocation3], 1
    %s3610 = scalar_lea.sflag [#allocation3], 1
    %3611 = vsyncpa %s3610, 1
    %3612 = vsyncpa [#allocation6], 1
    %3613 = vsyncpa [#allocation4], 1
    %s3614 = scalar_lea.sflag [#allocation4], 1
    %3615 = vsyncpa %s3614, 1

</llo_original>
